<compile_context>
chip_gen: v6e
topology: v6e:2x2x1
jax: 0.10.0
libtpu: 0.0.40
codegen_flags: <defaults>
</compile_context>

<pallas_src>
import numpy as np
import jax
import jax.numpy as jnp
from jax import lax
from jax.experimental import pallas as pl
from jax.experimental.pallas import tpu as pltpu


def _gaussian_1d(kernel_size, sigma):
    # deterministic "parameter" init, identical to the PyTorch __init__
    tics = np.arange(kernel_size, dtype=np.float64)
    g = np.exp(-((tics - kernel_size // 2) ** 2) / (2.0 * sigma ** 2))
    g = g / g.sum()
    return g.astype(np.float32)


def _toeplitz_h(g1d, H):
    """T_h (Ho, H): (T_h @ X)[i, :] = sum_u g[u] * X[i + u, :]  (valid conv along H)."""
    K = g1d.shape[0]
    Ho = H - K + 1
    T = np.zeros((Ho, H), dtype=np.float32)
    for i in range(Ho):
        T[i, i:i + K] = g1d
    return T


def _toeplitz_w_blockdiag(g1d, W, G):
    """Block-diag T_w (G*W, G*Wo): per packed plane, (Y @ T_w)[:, j] = sum_v g[v]*Y[:, j+v]."""
    K = g1d.shape[0]
    Wo = W - K + 1
    Tb = np.zeros((W, Wo), dtype=np.float32)
    for j in range(Wo):
        Tb[j:j + K, j] = g1d
    T = np.zeros((G * W, G * Wo), dtype=np.float32)
    for g in range(G):
        T[g * W:(g + 1) * W, g * Wo:(g + 1) * Wo] = Tb
    return T


def _make_ssim_kernel(c1, c2):
    def kernel(x1_ref, x2_ref, th_ref, tw_ref, o_ref):
        a = x1_ref[...].astype(jnp.float32)     # (GB, H, G*W)
        b = x2_ref[...].astype(jnp.float32)
        gb = a.shape[0]

        th = th_ref[...]                        # (Ho, H)
        tw = tw_ref[...]                        # (G*W, G*Wo)
        # hoisted once per grid step (tiny matrices)
        thb = jnp.broadcast_to(th[None], (gb,) + th.shape)
        twb = jnp.broadcast_to(tw[None], (gb,) + tw.shape)

        def bmm(lhs, rhs):
            # batched matmul on the MXU; fp32 contract precision so the
            # E[x^2]-mu^2 cancellation keeps full f32 accuracy.
            return lax.dot_general(
                lhs, rhs,
                dimension_numbers=(((2,), (1,)), ((0,), (0,))),
                precision=lax.Precision.HIGHEST,
                preferred_element_type=jnp.float32)

        def gfilter(x):
            # separable Gaussian: H pass (T_h @ X) then W pass (Y @ T_w_blkdiag)
            return bmm(bmm(thb, x), twb)        # (GB, Ho, G*Wo)

        # statistics images are matmul operands, so they are materialized once
        mu1 = gfilter(a)
        mu2 = gfilter(b)
        e11 = gfilter(a * a)
        e22 = gfilter(b * b)
        e12 = gfilter(a * b)

        mu1_sq = mu1 * mu1
        mu2_sq = mu2 * mu2
        mu1_mu2 = mu1 * mu2
        sigma1_sq = e11 - mu1_sq
        sigma2_sq = e22 - mu2_sq
        sigma12 = e12 - mu1_mu2

        tmp1 = (2.0 * mu1_mu2 + c1) * (2.0 * sigma12 + c2)
        tmp2 = (mu1_sq + mu2_sq + c1) * (sigma1_sq + sigma2_sq + c2)

        # EUP approximate reciprocal + one Newton-Raphson step (2 VALU ops)
        r = pl.reciprocal(tmp2, approx=True)
        r = r * (2.0 - tmp2 * r)
        ssim_map = tmp1 * r                     # (GB, Ho, G*Wo)

        # per-group partial sums; padded groups are dropped in the wrapper
        o_ref[...] = jnp.sum(ssim_map, axis=(1, 2), keepdims=True)

    return kernel


def ssim_pallas(im1, im2, n_channels=1, kernel_size=11, sigma=1.5):
    assert im1.shape == im2.shape, 'input shape mismatch'
    N, C, H, W = im1.shape
    if C == 1:
        # skip the channel broadcast: expanded channels are identical, so the
        # mean over n_channels copies equals the single-channel mean.
        C_eff = 1
    else:
        assert C == n_channels, 'number of channels mismatch'
        C_eff = C

    K = kernel_size
    assert H >= K and W >= K, 'image smaller than SSIM window'
    g1d = _gaussian_1d(K, sigma)
    Ho, Wo = H - K + 1, W - K + 1
    c1, c2 = 0.01 ** 2, 0.03 ** 2

    NC = N * C_eff
    x1 = im1[:, :C_eff].reshape(NC, H, W)
    x2 = im2[:, :C_eff].reshape(NC, H, W)

    # --- lane packing: G planes side-by-side along the lane axis ------------
    G = 1
    for g in range(min(NC, max(1, 128 // W)), 0, -1):
        if NC % g == 0:
            G = g
            break
    NG = NC // G
    GW, GWo = G * W, G * Wo

    def pack(x):
        return x.reshape(NG, G, H, W).transpose(0, 2, 1, 3).reshape(NG, H, GW)

    x1p, x2p = pack(x1), pack(x2)

    th = jnp.asarray(_toeplitz_h(g1d, H))                  # (Ho, H)
    tw = jnp.asarray(_toeplitz_w_blockdiag(g1d, W, G))     # (GW, GWo)

    # --- groups per block from a per-generation VMEM budget ------------------
    try:
        vmem_cap = int(pltpu.get_tpu_info().vmem_capacity_bytes)
    except Exception:
        vmem_cap = 64 * 1024 * 1024     # conservative (v7x per-TC) fallback
    budget = int(0.40 * vmem_cap)
    # inputs (double-buffered) + stats + filtered stats + Toeplitz broadcasts
    bytes_per_group = 4 * (10 * H * GW + Ho * H + GW * GWo + 4 * Ho * GWo)
    GB = max(1, min(NG, budget // max(bytes_per_group, 1)))
    if NG >= 2:
        GB = min(GB, -(-NG // 2))       # keep >= 2 grid blocks (v7x megacore)
    NB = -(-NG // GB)
    NG_pad = NB * GB
    if NG_pad > NG:
        pad = jnp.zeros((NG_pad - NG, H, GW), dtype=x1p.dtype)
        x1p = jnp.concatenate([x1p, pad], axis=0)
        x2p = jnp.concatenate([x2p, pad], axis=0)

    kernel = _make_ssim_kernel(c1, c2)
    partials = pl.pallas_call(
        kernel,
        out_shape=jax.ShapeDtypeStruct((NG_pad, 1, 1), jnp.float32),
        grid=(NB,),
        in_specs=[pl.BlockSpec((GB, H, GW), lambda i: (i, 0, 0)),
                  pl.BlockSpec((GB, H, GW), lambda i: (i, 0, 0)),
                  pl.BlockSpec((Ho, H), lambda i: (0, 0)),
                  pl.BlockSpec((GW, GWo), lambda i: (0, 0))],
        out_specs=pl.BlockSpec((GB, 1, 1), lambda i: (i, 0, 0)),
        compiler_params=pltpu.CompilerParams(
            dimension_semantics=("parallel",),
            vmem_limit_bytes=int(min(0.85 * vmem_cap, 128 * 1024 * 1024))),
    )(x1p, x2p, th, tw)

    total = float(NC * Ho * Wo)
    # padded groups (zeros -> SSIM 1 per pixel) are excluded here
    return jnp.sum(partials[:NG]) / total


def ssim_reference(im1, im2, n_channels=1, kernel_size=11, sigma=1.5):
    # pure-JAX reference mirroring the PyTorch forward (validation only)
    N, C, H, W = im1.shape
    if C == 1 and n_channels > 1:
        im1 = jnp.broadcast_to(im1, (N, n_channels, H, W))
        im2 = jnp.broadcast_to(im2, (N, n_channels, H, W))
        C = n_channels
    g = _gaussian_1d(kernel_size, sigma).astype(np.float64)
    gk = jnp.asarray(np.outer(g, g).astype(np.float32))
    kern = jnp.broadcast_to(gk, (C, 1, kernel_size, kernel_size))

    def conv(x):
        return lax.conv_general_dilated(
            x.astype(jnp.float32), kern, window_strides=(1, 1),
            padding='VALID', dimension_numbers=('NCHW', 'OIHW', 'NCHW'),
            feature_group_count=C, precision=lax.Precision.HIGHEST)

    c1, c2 = 0.01 ** 2, 0.03 ** 2
    im1 = im1.astype(jnp.float32)
    im2 = im2.astype(jnp.float32)
    mu1, mu2 = conv(im1), conv(im2)
    sigma1_sq = conv(im1 * im1) - mu1 * mu1
    sigma2_sq = conv(im2 * im2) - mu2 * mu2
    sigma12 = conv(im1 * im2) - mu1 * mu2
    tmp1 = (2 * mu1 * mu2 + c1) * (2 * sigma12 + c2)
    tmp2 = (mu1 * mu1 + mu2 * mu2 + c1) * (sigma1_sq + sigma2_sq + c2)
    return jnp.mean(tmp1 / tmp2)


if __name__ == "__main__":
    key = jax.random.PRNGKey(0)

    # Case 1: module defaults (n_channels=1), 16x16 -> 6x6 valid output.
    k1, k2, k3, k4 = jax.random.split(key, 4)
    N, C, H, W = 2, 1, 16, 16
    a1 = jax.random.uniform(k1, (N, C, H, W), dtype=jnp.float32)
    b1 = jnp.clip(a1 + 0.05 * jax.random.normal(k2, (N, C, H, W),
                                                dtype=jnp.float32), 0.0, 1.0)
    out1 = jax.block_until_ready(ssim_pallas(a1, b1, n_channels=1))
    ref1 = ssim_reference(a1, b1, n_channels=1)
    assert jnp.allclose(out1, ref1, rtol=1e-4, atol=1e-5), (out1, ref1)

    # Case 2: multi-channel (n_channels=3), rectangular spatial dims.
    N, C, H, W = 2, 3, 20, 24
    a2 = jax.random.uniform(k3, (N, C, H, W), dtype=jnp.float32)
    b2 = jnp.clip(a2 + 0.05 * jax.random.normal(k4, (N, C, H, W),
                                                dtype=jnp.float32), 0.0, 1.0)
    out2 = jax.block_until_ready(ssim_pallas(a2, b2, n_channels=3))
    ref2 = ssim_reference(a2, b2, n_channels=3)
    assert jnp.allclose(out2, ref2, rtol=1e-4, atol=1e-5), (out2, ref2)

    # Case 3: single-channel input with n_channels=3 (exercises the
    # broadcast-skip path against the reference that does broadcast).
    out3 = jax.block_until_ready(ssim_pallas(a1, b1, n_channels=3))
    ref3 = ssim_reference(a1, b1, n_channels=3)
    assert jnp.allclose(out3, ref3, rtol=1e-4, atol=1e-5), (out3, ref3)

    print("KERNEL_OK")
</pallas_src>

<mosaic_0001>
module attributes {stable_mosaic.version = 11 : i64} {
  func.func @kernel(%arg0: i32, %arg1: memref<1x16x32xf32, #tpu.memory_space<vmem>>, %arg2: memref<1x16x32xf32, #tpu.memory_space<vmem>>, %arg3: memref<6x16xf32, #tpu.memory_space<vmem>>, %arg4: memref<32x12xf32, #tpu.memory_space<vmem>>, %arg5: memref<1x1x1xf32, #tpu.memory_space<vmem>>) attributes {dimension_semantics = [#tpu.dimension_semantics<parallel>], iteration_bounds = array<i64: 1>, scalar_prefetch = 0 : i64, scratch_operands = 0 : i64, tpu.core_type = #tpu.core_type<tc>, window_params = [{transform_indices = @transform_0, window_bounds = array<i64: 1, 16, 32>}, {transform_indices = @transform_1, window_bounds = array<i64: 1, 16, 32>}, {pipeline_mode = #tpu.pipeline_mode<synchronous>, transform_indices = @transform_2, window_bounds = array<i64: 6, 16>}, {pipeline_mode = #tpu.pipeline_mode<synchronous>, transform_indices = @transform_3, window_bounds = array<i64: 32, 12>}, {transform_indices = @transform_4, window_bounds = array<i64: 1, 1, 1>}]} {
    %c0 = arith.constant 0 : index
    %c0_0 = arith.constant 0 : index
    %c0_1 = arith.constant 0 : index
    %0 = vector.load %arg1[%c0, %c0_0, %c0_1] : memref<1x16x32xf32, #tpu.memory_space<vmem>>, vector<1x16x32xf32>
    %c0_2 = arith.constant 0 : index
    %c0_3 = arith.constant 0 : index
    %c0_4 = arith.constant 0 : index
    %1 = vector.load %arg2[%c0_2, %c0_3, %c0_4] : memref<1x16x32xf32, #tpu.memory_space<vmem>>, vector<1x16x32xf32>
    %c0_5 = arith.constant 0 : index
    %c0_6 = arith.constant 0 : index
    %2 = vector.load %arg3[%c0_5, %c0_6] : memref<6x16xf32, #tpu.memory_space<vmem>>, vector<6x16xf32>
    %c0_7 = arith.constant 0 : index
    %c0_8 = arith.constant 0 : index
    %3 = vector.load %arg4[%c0_7, %c0_8] : memref<32x12xf32, #tpu.memory_space<vmem>>, vector<32x12xf32>
    %4 = vector.shape_cast %2 : vector<6x16xf32> to vector<1x6x16xf32>
    %5 = vector.shape_cast %3 : vector<32x12xf32> to vector<1x32x12xf32>
    %cst = arith.constant dense<0.000000e+00> : vector<1x6x32xf32>
    %6 = tpu.matmul %4, %0, %cst {dimension_numbers = #tpu.dot_dimension_numbers<[2], [1], [1], [2], [0, 0, 0, 1, 1, 2], [0], [0]>, precision = #tpu.contract_precision<fp32>} : vector<1x6x16xf32>, vector<1x16x32xf32>, vector<1x6x32xf32> -> vector<1x6x32xf32>
    %cst_9 = arith.constant dense<0.000000e+00> : vector<1x6x12xf32>
    %7 = tpu.matmul %6, %5, %cst_9 {dimension_numbers = #tpu.dot_dimension_numbers<[2], [1], [1], [2], [0, 0, 0, 1, 1, 2], [0], [0]>, precision = #tpu.contract_precision<fp32>} : vector<1x6x32xf32>, vector<1x32x12xf32>, vector<1x6x12xf32> -> vector<1x6x12xf32>
    %cst_10 = arith.constant dense<0.000000e+00> : vector<1x6x32xf32>
    %8 = tpu.matmul %4, %1, %cst_10 {dimension_numbers = #tpu.dot_dimension_numbers<[2], [1], [1], [2], [0, 0, 0, 1, 1, 2], [0], [0]>, precision = #tpu.contract_precision<fp32>} : vector<1x6x16xf32>, vector<1x16x32xf32>, vector<1x6x32xf32> -> vector<1x6x32xf32>
    %cst_11 = arith.constant dense<0.000000e+00> : vector<1x6x12xf32>
    %9 = tpu.matmul %8, %5, %cst_11 {dimension_numbers = #tpu.dot_dimension_numbers<[2], [1], [1], [2], [0, 0, 0, 1, 1, 2], [0], [0]>, precision = #tpu.contract_precision<fp32>} : vector<1x6x32xf32>, vector<1x32x12xf32>, vector<1x6x12xf32> -> vector<1x6x12xf32>
    %10 = arith.mulf %0, %0 : vector<1x16x32xf32>
    %cst_12 = arith.constant dense<0.000000e+00> : vector<1x6x32xf32>
    %11 = tpu.matmul %4, %10, %cst_12 {dimension_numbers = #tpu.dot_dimension_numbers<[2], [1], [1], [2], [0, 0, 0, 1, 1, 2], [0], [0]>, precision = #tpu.contract_precision<fp32>} : vector<1x6x16xf32>, vector<1x16x32xf32>, vector<1x6x32xf32> -> vector<1x6x32xf32>
    %cst_13 = arith.constant dense<0.000000e+00> : vector<1x6x12xf32>
    %12 = tpu.matmul %11, %5, %cst_13 {dimension_numbers = #tpu.dot_dimension_numbers<[2], [1], [1], [2], [0, 0, 0, 1, 1, 2], [0], [0]>, precision = #tpu.contract_precision<fp32>} : vector<1x6x32xf32>, vector<1x32x12xf32>, vector<1x6x12xf32> -> vector<1x6x12xf32>
    %13 = arith.mulf %1, %1 : vector<1x16x32xf32>
    %cst_14 = arith.constant dense<0.000000e+00> : vector<1x6x32xf32>
    %14 = tpu.matmul %4, %13, %cst_14 {dimension_numbers = #tpu.dot_dimension_numbers<[2], [1], [1], [2], [0, 0, 0, 1, 1, 2], [0], [0]>, precision = #tpu.contract_precision<fp32>} : vector<1x6x16xf32>, vector<1x16x32xf32>, vector<1x6x32xf32> -> vector<1x6x32xf32>
    %cst_15 = arith.constant dense<0.000000e+00> : vector<1x6x12xf32>
    %15 = tpu.matmul %14, %5, %cst_15 {dimension_numbers = #tpu.dot_dimension_numbers<[2], [1], [1], [2], [0, 0, 0, 1, 1, 2], [0], [0]>, precision = #tpu.contract_precision<fp32>} : vector<1x6x32xf32>, vector<1x32x12xf32>, vector<1x6x12xf32> -> vector<1x6x12xf32>
    %16 = arith.mulf %0, %1 : vector<1x16x32xf32>
    %cst_16 = arith.constant dense<0.000000e+00> : vector<1x6x32xf32>
    %17 = tpu.matmul %4, %16, %cst_16 {dimension_numbers = #tpu.dot_dimension_numbers<[2], [1], [1], [2], [0, 0, 0, 1, 1, 2], [0], [0]>, precision = #tpu.contract_precision<fp32>} : vector<1x6x16xf32>, vector<1x16x32xf32>, vector<1x6x32xf32> -> vector<1x6x32xf32>
    %cst_17 = arith.constant dense<0.000000e+00> : vector<1x6x12xf32>
    %18 = tpu.matmul %17, %5, %cst_17 {dimension_numbers = #tpu.dot_dimension_numbers<[2], [1], [1], [2], [0, 0, 0, 1, 1, 2], [0], [0]>, precision = #tpu.contract_precision<fp32>} : vector<1x6x32xf32>, vector<1x32x12xf32>, vector<1x6x12xf32> -> vector<1x6x12xf32>
    %19 = arith.mulf %7, %7 : vector<1x6x12xf32>
    %20 = arith.mulf %9, %9 : vector<1x6x12xf32>
    %21 = arith.mulf %7, %9 : vector<1x6x12xf32>
    %22 = arith.subf %12, %19 : vector<1x6x12xf32>
    %23 = arith.subf %15, %20 : vector<1x6x12xf32>
    %24 = arith.subf %18, %21 : vector<1x6x12xf32>
    %cst_18 = arith.constant 2.000000e+00 : f32
    %25 = vector.broadcast %cst_18 : f32 to vector<1x6x12xf32>
    %26 = arith.mulf %25, %21 : vector<1x6x12xf32>
    %cst_19 = arith.constant 9.99999974E-5 : f32
    %27 = vector.broadcast %cst_19 : f32 to vector<1x6x12xf32>
    %28 = arith.addf %26, %27 : vector<1x6x12xf32>
    %cst_20 = arith.constant 2.000000e+00 : f32
    %29 = vector.broadcast %cst_20 : f32 to vector<1x6x12xf32>
    %30 = arith.mulf %29, %24 : vector<1x6x12xf32>
    %cst_21 = arith.constant 8.99999984E-4 : f32
    %31 = vector.broadcast %cst_21 : f32 to vector<1x6x12xf32>
    %32 = arith.addf %30, %31 : vector<1x6x12xf32>
    %33 = arith.mulf %28, %32 : vector<1x6x12xf32>
    %34 = arith.addf %19, %20 : vector<1x6x12xf32>
    %cst_22 = arith.constant 9.99999974E-5 : f32
    %35 = vector.broadcast %cst_22 : f32 to vector<1x6x12xf32>
    %36 = arith.addf %34, %35 : vector<1x6x12xf32>
    %37 = arith.addf %22, %23 : vector<1x6x12xf32>
    %cst_23 = arith.constant 8.99999984E-4 : f32
    %38 = vector.broadcast %cst_23 : f32 to vector<1x6x12xf32>
    %39 = arith.addf %37, %38 : vector<1x6x12xf32>
    %40 = arith.mulf %36, %39 : vector<1x6x12xf32>
    %41 = tpu.reciprocal %40 {approx = true} : vector<1x6x12xf32> -> vector<1x6x12xf32>
    %42 = arith.mulf %40, %41 : vector<1x6x12xf32>
    %cst_24 = arith.constant 2.000000e+00 : f32
    %43 = vector.broadcast %cst_24 : f32 to vector<1x6x12xf32>
    %44 = arith.subf %43, %42 : vector<1x6x12xf32>
    %45 = arith.mulf %41, %44 : vector<1x6x12xf32>
    %46 = arith.mulf %33, %45 : vector<1x6x12xf32>
    %cst_25 = arith.constant dense<0.000000e+00> : vector<1xf32>
    %47 = vector.multi_reduction <add>, %46, %cst_25 [1, 2] : vector<1x6x12xf32> to vector<1xf32>
    %48 = vector.shape_cast %47 : vector<1xf32> to vector<1x1x1xf32>
    %c0_26 = arith.constant 0 : index
    %c0_27 = arith.constant 0 : index
    %c0_28 = arith.constant 0 : index
    %49 = vector.load %arg5[%c0_26, %c0_27, %c0_28] : memref<1x1x1xf32, #tpu.memory_space<vmem>>, vector<1x1x1xf32>
    tpu.vector_store %arg5[%c0_26, %c0_27, %c0_28], %48 {strides = array<i32>} : memref<1x1x1xf32, #tpu.memory_space<vmem>>, vector<1x1x1xf32>,
    return
  }
  func.func @transform_0(%arg0: i32) -> (i32, i32, i32) {
    %c0_i32 = arith.constant 0 : i32
    %c0_i32_0 = arith.constant 0 : i32
    %c0_i32_1 = arith.constant 0 : i32
    return %arg0, %c0_i32, %c0_i32_0 : i32, i32, i32
  }
  func.func @transform_1(%arg0: i32) -> (i32, i32, i32) {
    %c0_i32 = arith.constant 0 : i32
    %c0_i32_0 = arith.constant 0 : i32
    %c0_i32_1 = arith.constant 0 : i32
    return %arg0, %c0_i32, %c0_i32_0 : i32, i32, i32
  }
  func.func @transform_2(%arg0: i32) -> (i32, i32) {
    %c0_i32 = arith.constant 0 : i32
    %c0_i32_0 = arith.constant 0 : i32
    %c0_i32_1 = arith.constant 0 : i32
    return %c0_i32, %c0_i32_0 : i32, i32
  }
  func.func @transform_3(%arg0: i32) -> (i32, i32) {
    %c0_i32 = arith.constant 0 : i32
    %c0_i32_0 = arith.constant 0 : i32
    %c0_i32_1 = arith.constant 0 : i32
    return %c0_i32, %c0_i32_0 : i32, i32
  }
  func.func @transform_4(%arg0: i32) -> (i32, i32, i32) {
    %c0_i32 = arith.constant 0 : i32
    %c0_i32_0 = arith.constant 0 : i32
    %c0_i32_1 = arith.constant 0 : i32
    return %arg0, %c0_i32, %c0_i32_0 : i32, i32, i32
  }
}

</mosaic_0001>

<llo_original>
// kernel: tpu_custom_call.1
$region0: #{tpu_custom_call.1}
  #allocation0 [shape = 'u32[]', space=smem, size = 0x4, offset = 0x4, fixed_abs, tag = 'smem constant byte address 0x4 - core index']
  #allocation1 [shape = 'u32[144,128]{1,0:T(1,128)}', space=vmem, size = 0x12000, scoped, tag = 'internal scratch']
  %s0 = inlined_call_operand.vmem [shape: f32[1,16,32], index: 0, kind: input, shape index: {}]
  %s1 = inlined_call_operand.vmem [shape: f32[1,16,32], index: 1, kind: input, shape index: {}]
  %s2 = inlined_call_operand.vmem [shape: f32[6,16], index: 2, kind: input, shape index: {}]
  %s3 = inlined_call_operand.vmem [shape: f32[32,12], index: 3, kind: input, shape index: {}]
  %s4 = inlined_call_operand.hbm [shape: f32[1,1,1], index: 4, kind: output, shape index: {}]
  %s5 = sld [smem:[#allocation0]]
  $region26: #{tpu_custom_call.1} parent=0
    _
  %s7 = ssub.s32 1, %s5
  %s8 = scalar_select 0, %s7, %s5
  $region1: #{tpu_custom_call.1} parent=0
    #allocation2 [shape = 'u8[512]{0}', space=vmem, size = 0x400, scoped, tag = 'output window, operand 0, single buffered']
    #allocation3 [shape = 's32[1]{0}', space=sflag, size = 0x4, scoped, tag = 'scoped memory for tpu_custom_call.1']
    %9 = vsyncpa [#allocation3], 0
    // Predicated region
    $region2: #{tpu_custom_call.1} parent=1 // pred_check
      _
    $region3: #{tpu_custom_call.1} parent=1 // pred_check_branch
      %11 = sbr.rel (0) target = $region5
    $region4: #{tpu_custom_call.1} parent=1 // pred_region
      _
    $region5: #{tpu_custom_call.1} parent=1 // pred_fallthru
      _
    // Predicated region
    $region6: #{tpu_custom_call.1} parent=1 // pred_check
      _
    $region7: #{tpu_custom_call.1} parent=1 // pred_check_branch
      %13 = sbr.rel (0) target = $region9
    $region8: #{tpu_custom_call.1} parent=1 // pred_region
      _
    $region9: #{tpu_custom_call.1} parent=1 // pred_fallthru
      _
    // Predicated region
    $region10: #{tpu_custom_call.1} parent=1 // pred_check
      _
    $region11: #{tpu_custom_call.1} parent=1 // pred_check_branch
      %15 = sbr.rel (0) target = $region13
    $region12: #{tpu_custom_call.1} parent=1 // pred_region
      _
    $region13: #{tpu_custom_call.1} parent=1 // pred_fallthru
      _
    // Predicated region
    $region14: #{tpu_custom_call.1} parent=1 // pred_check
      _
    $region15: #{tpu_custom_call.1} parent=1 // pred_check_branch
      %17 = sbr.rel (0) target = $region17
    $region16: #{tpu_custom_call.1} parent=1 // pred_region
      _
    $region17: #{tpu_custom_call.1} parent=1 // pred_fallthru
      _
    %v18 = vld [vmem:[%s0] sm:$0xff]
    %v19 = vld [vmem:[%s0 + $0x8] sm:$0xff]
    %v20 = vld [vmem:[%s1] sm:$0xff]
    %v21 = vld [vmem:[%s1 + $0x8] sm:$0xff]
    %v22 = vld [vmem:[%s2] sm:$0x3f]
    %v23 = vld [vmem:[%s3] sm:$0xff]
    %v24 = vld [vmem:[%s3 + $0x8] sm:$0xff]
    %v25 = vld [vmem:[%s3 + $0x10] sm:$0xff]
    %v26 = vld [vmem:[%s3 + $0x18] sm:$0xff]
    %vm27 = vcmask 130048
    %v29 = vsel %vm27, %v22, 0
    %31 = vmatprep.subr.mxu0 0.0
    %32 = vmatpush1.msra.mxu0 0.0
    %33 = vmatprep.subr.mxu0 0.0
    %34 = vmatpush1.msra.mxu0 0.0
    %35 = vmatprep.subr.mxu0 0.0
    %36 = vmatpush1.msra.mxu0 0.0
    %37 = vmatprep.subr.mxu0 0.0
    %38 = vmatpush1.msra.mxu0 0.0
    %39 = vmatprep.subr.mxu0 0.0
    %40 = vmatpush1.msra.mxu0 0.0
    %41 = vmatprep.subr.mxu0 0.0
    %42 = vmatpush1.msra.mxu0 0.0
    %43 = vmatprep.subr.mxu0 0.0
    %44 = vmatpush1.msra.mxu0 0.0
    %45 = vmatprep.subr.mxu0 0.0
    %46 = vmatpush1.msra.mxu0 0.0
    %47 = vmatprep.subr.mxu0 0.0
    %48 = vmatpush1.msra.mxu0 0.0
    %49 = vmatprep.subr.mxu0 0.0
    %50 = vmatpush1.msra.mxu0 0.0
    %51 = vmatprep.subr.mxu0 0.0
    %52 = vmatpush1.msra.mxu0 0.0
    %53 = vmatprep.subr.mxu0 0.0
    %54 = vmatpush1.msra.mxu0 0.0
    %55 = vmatprep.subr.mxu0 0.0
    %56 = vmatpush1.msra.mxu0 0.0
    %57 = vmatprep.subr.mxu0 0.0
    %58 = vmatpush1.msra.mxu0 0.0
    %59 = vmatprep.subr.mxu0 0.0
    %v60 = vand.u32 %v19, 4294901760
    %61 = vmatpush1.msra.mxu0 %v60
    %62 = vmatprep.subr.mxu0 0.0
    %v63 = vand.u32 %v18, 4294901760
    %64 = vmatpush1.msra.mxu0 %v63
    %65 = vmatprep.subr.mxu0 0.0
    %66 = vmatpush2.msra.mxu0 0.0
    %67 = vmatprep.subr.mxu0 0.0
    %68 = vmatpush2.msra.mxu0 0.0
    %69 = vmatprep.subr.mxu0 0.0
    %70 = vmatpush2.msra.mxu0 0.0
    %71 = vmatprep.subr.mxu0 0.0
    %72 = vmatpush2.msra.mxu0 0.0
    %73 = vmatprep.subr.mxu0 0.0
    %74 = vmatpush2.msra.mxu0 0.0
    %75 = vmatprep.subr.mxu0 0.0
    %76 = vmatpush2.msra.mxu0 0.0
    %77 = vmatprep.subr.mxu0 0.0
    %78 = vmatpush2.msra.mxu0 0.0
    %79 = vmatprep.subr.mxu0 0.0
    %80 = vmatpush2.msra.mxu0 0.0
    %81 = vmatprep.subr.mxu0 0.0
    %82 = vmatpush2.msra.mxu0 0.0
    %83 = vmatprep.subr.mxu0 0.0
    %84 = vmatpush2.msra.mxu0 0.0
    %85 = vmatprep.subr.mxu0 0.0
    %86 = vmatpush2.msra.mxu0 0.0
    %87 = vmatprep.subr.mxu0 0.0
    %88 = vmatpush2.msra.mxu0 0.0
    %89 = vmatprep.subr.mxu0 0.0
    %90 = vmatpush2.msra.mxu0 0.0
    %91 = vmatprep.subr.mxu0 0.0
    %92 = vmatpush2.msra.mxu0 0.0
    %93 = vmatprep.subr.mxu0 0.0
    %94 = vmatpush2.msra.mxu0 0.0
    %95 = vmatprep.subr.mxu0 0.0
    %96 = vmatpush2.msra.mxu0 0.0
    %97 = vmatprep.mubr.f32.mxu0 0.0
    %v98 = vand.u32 %v29, 4294901760
    %v99 = vsub.f32 %v29, %v98
    %v100 = vand.u32 %v99, 4294901760
    %v101 = vsub.f32 %v99, %v100
    %v102 = vand.u32 %v101, 4294901760
    %103 = vmatmul.mubr.f32.gmra.mxu0 %v102
    %v104 = vpop.f32.mrf.mxu0
    %v105 = vadd.f32 0.0, %v104
    %v106 = vpop.f32.mrf.mxu0
    %107 = vdwg.mxu0
    %108 = vmatprep.subr.mxu0 0.0
    %109 = vmatpush1.msra.mxu0 0.0
    %110 = vmatprep.subr.mxu0 0.0
    %111 = vmatpush1.msra.mxu0 0.0
    %112 = vmatprep.subr.mxu0 0.0
    %113 = vmatpush1.msra.mxu0 0.0
    %114 = vmatprep.subr.mxu0 0.0
    %115 = vmatpush1.msra.mxu0 0.0
    %116 = vmatprep.subr.mxu0 0.0
    %117 = vmatpush1.msra.mxu0 0.0
    %118 = vmatprep.subr.mxu0 0.0
    %119 = vmatpush1.msra.mxu0 0.0
    %120 = vmatprep.subr.mxu0 0.0
    %121 = vmatpush1.msra.mxu0 0.0
    %122 = vmatprep.subr.mxu0 0.0
    %123 = vmatpush1.msra.mxu0 0.0
    %124 = vmatprep.subr.mxu0 0.0
    %125 = vmatpush1.msra.mxu0 0.0
    %126 = vmatprep.subr.mxu0 0.0
    %127 = vmatpush1.msra.mxu0 0.0
    %128 = vmatprep.subr.mxu0 0.0
    %129 = vmatpush1.msra.mxu0 0.0
    %130 = vmatprep.subr.mxu0 0.0
    %131 = vmatpush1.msra.mxu0 0.0
    %132 = vmatprep.subr.mxu0 0.0
    %133 = vmatpush1.msra.mxu0 0.0
    %134 = vmatprep.subr.mxu0 0.0
    %135 = vmatpush1.msra.mxu0 0.0
    %136 = vmatprep.subr.mxu0 0.0
    %v137 = vand.u32 %v19, 4294901760
    %v138 = vsub.f32 %v19, %v137
    %v139 = vand.u32 %v138, 4294901760
    %v140 = vsub.f32 %v138, %v139
    %v141 = vand.u32 %v140, 4294901760
    %142 = vmatpush1.msra.mxu0 %v141
    %143 = vmatprep.subr.mxu0 0.0
    %v144 = vand.u32 %v18, 4294901760
    %v145 = vsub.f32 %v18, %v144
    %v146 = vand.u32 %v145, 4294901760
    %v147 = vsub.f32 %v145, %v146
    %v148 = vand.u32 %v147, 4294901760
    %149 = vmatpush1.msra.mxu0 %v148
    %150 = vmatprep.subr.mxu0 0.0
    %151 = vmatpush2.msra.mxu0 0.0
    %152 = vmatprep.subr.mxu0 0.0
    %153 = vmatpush2.msra.mxu0 0.0
    %154 = vmatprep.subr.mxu0 0.0
    %155 = vmatpush2.msra.mxu0 0.0
    %156 = vmatprep.subr.mxu0 0.0
    %157 = vmatpush2.msra.mxu0 0.0
    %158 = vmatprep.subr.mxu0 0.0
    %159 = vmatpush2.msra.mxu0 0.0
    %160 = vmatprep.subr.mxu0 0.0
    %161 = vmatpush2.msra.mxu0 0.0
    %162 = vmatprep.subr.mxu0 0.0
    %163 = vmatpush2.msra.mxu0 0.0
    %164 = vmatprep.subr.mxu0 0.0
    %165 = vmatpush2.msra.mxu0 0.0
    %166 = vmatprep.subr.mxu0 0.0
    %167 = vmatpush2.msra.mxu0 0.0
    %168 = vmatprep.subr.mxu0 0.0
    %169 = vmatpush2.msra.mxu0 0.0
    %170 = vmatprep.subr.mxu0 0.0
    %171 = vmatpush2.msra.mxu0 0.0
    %172 = vmatprep.subr.mxu0 0.0
    %173 = vmatpush2.msra.mxu0 0.0
    %174 = vmatprep.subr.mxu0 0.0
    %175 = vmatpush2.msra.mxu0 0.0
    %176 = vmatprep.subr.mxu0 0.0
    %177 = vmatpush2.msra.mxu0 0.0
    %178 = vmatprep.subr.mxu0 0.0
    %179 = vmatpush2.msra.mxu0 0.0
    %180 = vmatprep.subr.mxu0 0.0
    %181 = vmatpush2.msra.mxu0 0.0
    %182 = vmatprep.mubr.f32.mxu0 0.0
    %v183 = vand.u32 %v29, 4294901760
    %184 = vmatmul.mubr.f32.gmra.mxu0 %v183
    %v185 = vpop.f32.mrf.mxu0
    %v186 = vadd.f32 %v105, %v185
    %v187 = vpop.f32.mrf.mxu0
    %188 = vdwg.mxu0
    %189 = vmatprep.subr.mxu0 0.0
    %190 = vmatpush1.msra.mxu0 0.0
    %191 = vmatprep.subr.mxu0 0.0
    %192 = vmatpush1.msra.mxu0 0.0
    %193 = vmatprep.subr.mxu0 0.0
    %194 = vmatpush1.msra.mxu0 0.0
    %195 = vmatprep.subr.mxu0 0.0
    %196 = vmatpush1.msra.mxu0 0.0
    %197 = vmatprep.subr.mxu0 0.0
    %198 = vmatpush1.msra.mxu0 0.0
    %199 = vmatprep.subr.mxu0 0.0
    %200 = vmatpush1.msra.mxu0 0.0
    %201 = vmatprep.subr.mxu0 0.0
    %202 = vmatpush1.msra.mxu0 0.0
    %203 = vmatprep.subr.mxu0 0.0
    %204 = vmatpush1.msra.mxu0 0.0
    %205 = vmatprep.subr.mxu0 0.0
    %206 = vmatpush1.msra.mxu0 0.0
    %207 = vmatprep.subr.mxu0 0.0
    %208 = vmatpush1.msra.mxu0 0.0
    %209 = vmatprep.subr.mxu0 0.0
    %210 = vmatpush1.msra.mxu0 0.0
    %211 = vmatprep.subr.mxu0 0.0
    %212 = vmatpush1.msra.mxu0 0.0
    %213 = vmatprep.subr.mxu0 0.0
    %214 = vmatpush1.msra.mxu0 0.0
    %215 = vmatprep.subr.mxu0 0.0
    %216 = vmatpush1.msra.mxu0 0.0
    %217 = vmatprep.subr.mxu0 0.0
    %v218 = vand.u32 %v19, 4294901760
    %v219 = vsub.f32 %v19, %v218
    %220 = vmatpush1.msra.mxu0 %v219
    %221 = vmatprep.subr.mxu0 0.0
    %v222 = vand.u32 %v18, 4294901760
    %v223 = vsub.f32 %v18, %v222
    %224 = vmatpush1.msra.mxu0 %v223
    %225 = vmatprep.subr.mxu0 0.0
    %226 = vmatpush2.msra.mxu0 0.0
    %227 = vmatprep.subr.mxu0 0.0
    %228 = vmatpush2.msra.mxu0 0.0
    %229 = vmatprep.subr.mxu0 0.0
    %230 = vmatpush2.msra.mxu0 0.0
    %231 = vmatprep.subr.mxu0 0.0
    %232 = vmatpush2.msra.mxu0 0.0
    %233 = vmatprep.subr.mxu0 0.0
    %234 = vmatpush2.msra.mxu0 0.0
    %235 = vmatprep.subr.mxu0 0.0
    %236 = vmatpush2.msra.mxu0 0.0
    %237 = vmatprep.subr.mxu0 0.0
    %238 = vmatpush2.msra.mxu0 0.0
    %239 = vmatprep.subr.mxu0 0.0
    %240 = vmatpush2.msra.mxu0 0.0
    %241 = vmatprep.subr.mxu0 0.0
    %242 = vmatpush2.msra.mxu0 0.0
    %243 = vmatprep.subr.mxu0 0.0
    %244 = vmatpush2.msra.mxu0 0.0
    %245 = vmatprep.subr.mxu0 0.0
    %246 = vmatpush2.msra.mxu0 0.0
    %247 = vmatprep.subr.mxu0 0.0
    %248 = vmatpush2.msra.mxu0 0.0
    %249 = vmatprep.subr.mxu0 0.0
    %250 = vmatpush2.msra.mxu0 0.0
    %251 = vmatprep.subr.mxu0 0.0
    %252 = vmatpush2.msra.mxu0 0.0
    %253 = vmatprep.subr.mxu0 0.0
    %254 = vmatpush2.msra.mxu0 0.0
    %255 = vmatprep.subr.mxu0 0.0
    %256 = vmatpush2.msra.mxu0 0.0
    %257 = vmatprep.mubr.f32.mxu0 0.0
    %v258 = vand.u32 %v29, 4294901760
    %v259 = vsub.f32 %v29, %v258
    %260 = vmatmul.mubr.f32.gmra.mxu0 %v259
    %v261 = vpop.f32.mrf.mxu0
    %v262 = vadd.f32 %v186, %v261
    %v263 = vpop.f32.mrf.mxu0
    %264 = vdwg.mxu0
    %265 = vmatprep.subr.mxu0 0.0
    %266 = vmatpush1.msra.mxu0 0.0
    %267 = vmatprep.subr.mxu0 0.0
    %268 = vmatpush1.msra.mxu0 0.0
    %269 = vmatprep.subr.mxu0 0.0
    %270 = vmatpush1.msra.mxu0 0.0
    %271 = vmatprep.subr.mxu0 0.0
    %272 = vmatpush1.msra.mxu0 0.0
    %273 = vmatprep.subr.mxu0 0.0
    %274 = vmatpush1.msra.mxu0 0.0
    %275 = vmatprep.subr.mxu0 0.0
    %276 = vmatpush1.msra.mxu0 0.0
    %277 = vmatprep.subr.mxu0 0.0
    %278 = vmatpush1.msra.mxu0 0.0
    %279 = vmatprep.subr.mxu0 0.0
    %280 = vmatpush1.msra.mxu0 0.0
    %281 = vmatprep.subr.mxu0 0.0
    %282 = vmatpush1.msra.mxu0 0.0
    %283 = vmatprep.subr.mxu0 0.0
    %284 = vmatpush1.msra.mxu0 0.0
    %285 = vmatprep.subr.mxu0 0.0
    %286 = vmatpush1.msra.mxu0 0.0
    %287 = vmatprep.subr.mxu0 0.0
    %288 = vmatpush1.msra.mxu0 0.0
    %289 = vmatprep.subr.mxu0 0.0
    %290 = vmatpush1.msra.mxu0 0.0
    %291 = vmatprep.subr.mxu0 0.0
    %292 = vmatpush1.msra.mxu0 0.0
    %293 = vmatprep.subr.mxu0 0.0
    %v294 = vand.u32 %v19, 4294901760
    %295 = vmatpush1.msra.mxu0 %v294
    %296 = vmatprep.subr.mxu0 0.0
    %v297 = vand.u32 %v18, 4294901760
    %298 = vmatpush1.msra.mxu0 %v297
    %299 = vmatprep.subr.mxu0 0.0
    %300 = vmatpush2.msra.mxu0 0.0
    %301 = vmatprep.subr.mxu0 0.0
    %302 = vmatpush2.msra.mxu0 0.0
    %303 = vmatprep.subr.mxu0 0.0
    %304 = vmatpush2.msra.mxu0 0.0
    %305 = vmatprep.subr.mxu0 0.0
    %306 = vmatpush2.msra.mxu0 0.0
    %307 = vmatprep.subr.mxu0 0.0
    %308 = vmatpush2.msra.mxu0 0.0
    %309 = vmatprep.subr.mxu0 0.0
    %310 = vmatpush2.msra.mxu0 0.0
    %311 = vmatprep.subr.mxu0 0.0
    %312 = vmatpush2.msra.mxu0 0.0
    %313 = vmatprep.subr.mxu0 0.0
    %314 = vmatpush2.msra.mxu0 0.0
    %315 = vmatprep.subr.mxu0 0.0
    %316 = vmatpush2.msra.mxu0 0.0
    %317 = vmatprep.subr.mxu0 0.0
    %318 = vmatpush2.msra.mxu0 0.0
    %319 = vmatprep.subr.mxu0 0.0
    %320 = vmatpush2.msra.mxu0 0.0
    %321 = vmatprep.subr.mxu0 0.0
    %322 = vmatpush2.msra.mxu0 0.0
    %323 = vmatprep.subr.mxu0 0.0
    %324 = vmatpush2.msra.mxu0 0.0
    %325 = vmatprep.subr.mxu0 0.0
    %326 = vmatpush2.msra.mxu0 0.0
    %327 = vmatprep.subr.mxu0 0.0
    %328 = vmatpush2.msra.mxu0 0.0
    %329 = vmatprep.subr.mxu0 0.0
    %330 = vmatpush2.msra.mxu0 0.0
    %331 = vmatprep.mubr.f32.mxu0 0.0
    %v332 = vand.u32 %v29, 4294901760
    %v333 = vsub.f32 %v29, %v332
    %v334 = vand.u32 %v333, 4294901760
    %335 = vmatmul.mubr.f32.gmra.mxu0 %v334
    %v336 = vpop.f32.mrf.mxu0
    %v337 = vadd.f32 %v262, %v336
    %v338 = vpop.f32.mrf.mxu0
    %339 = vdwg.mxu0
    %340 = vmatprep.subr.mxu0 0.0
    %341 = vmatpush1.msra.mxu0 0.0
    %342 = vmatprep.subr.mxu0 0.0
    %343 = vmatpush1.msra.mxu0 0.0
    %344 = vmatprep.subr.mxu0 0.0
    %345 = vmatpush1.msra.mxu0 0.0
    %346 = vmatprep.subr.mxu0 0.0
    %347 = vmatpush1.msra.mxu0 0.0
    %348 = vmatprep.subr.mxu0 0.0
    %349 = vmatpush1.msra.mxu0 0.0
    %350 = vmatprep.subr.mxu0 0.0
    %351 = vmatpush1.msra.mxu0 0.0
    %352 = vmatprep.subr.mxu0 0.0
    %353 = vmatpush1.msra.mxu0 0.0
    %354 = vmatprep.subr.mxu0 0.0
    %355 = vmatpush1.msra.mxu0 0.0
    %356 = vmatprep.subr.mxu0 0.0
    %357 = vmatpush1.msra.mxu0 0.0
    %358 = vmatprep.subr.mxu0 0.0
    %359 = vmatpush1.msra.mxu0 0.0
    %360 = vmatprep.subr.mxu0 0.0
    %361 = vmatpush1.msra.mxu0 0.0
    %362 = vmatprep.subr.mxu0 0.0
    %363 = vmatpush1.msra.mxu0 0.0
    %364 = vmatprep.subr.mxu0 0.0
    %365 = vmatpush1.msra.mxu0 0.0
    %366 = vmatprep.subr.mxu0 0.0
    %367 = vmatpush1.msra.mxu0 0.0
    %368 = vmatprep.subr.mxu0 0.0
    %v369 = vand.u32 %v19, 4294901760
    %v370 = vsub.f32 %v19, %v369
    %v371 = vand.u32 %v370, 4294901760
    %372 = vmatpush1.msra.mxu0 %v371
    %373 = vmatprep.subr.mxu0 0.0
    %v374 = vand.u32 %v18, 4294901760
    %v375 = vsub.f32 %v18, %v374
    %v376 = vand.u32 %v375, 4294901760
    %377 = vmatpush1.msra.mxu0 %v376
    %378 = vmatprep.subr.mxu0 0.0
    %379 = vmatpush2.msra.mxu0 0.0
    %380 = vmatprep.subr.mxu0 0.0
    %381 = vmatpush2.msra.mxu0 0.0
    %382 = vmatprep.subr.mxu0 0.0
    %383 = vmatpush2.msra.mxu0 0.0
    %384 = vmatprep.subr.mxu0 0.0
    %385 = vmatpush2.msra.mxu0 0.0
    %386 = vmatprep.subr.mxu0 0.0
    %387 = vmatpush2.msra.mxu0 0.0
    %388 = vmatprep.subr.mxu0 0.0
    %389 = vmatpush2.msra.mxu0 0.0
    %390 = vmatprep.subr.mxu0 0.0
    %391 = vmatpush2.msra.mxu0 0.0
    %392 = vmatprep.subr.mxu0 0.0
    %393 = vmatpush2.msra.mxu0 0.0
    %394 = vmatprep.subr.mxu0 0.0
    %395 = vmatpush2.msra.mxu0 0.0
    %396 = vmatprep.subr.mxu0 0.0
    %397 = vmatpush2.msra.mxu0 0.0
    %398 = vmatprep.subr.mxu0 0.0
    %399 = vmatpush2.msra.mxu0 0.0
    %400 = vmatprep.subr.mxu0 0.0
    %401 = vmatpush2.msra.mxu0 0.0
    %402 = vmatprep.subr.mxu0 0.0
    %403 = vmatpush2.msra.mxu0 0.0
    %404 = vmatprep.subr.mxu0 0.0
    %405 = vmatpush2.msra.mxu0 0.0
    %406 = vmatprep.subr.mxu0 0.0
    %407 = vmatpush2.msra.mxu0 0.0
    %408 = vmatprep.subr.mxu0 0.0
    %409 = vmatpush2.msra.mxu0 0.0
    %410 = vmatprep.mubr.f32.mxu0 0.0
    %v411 = vand.u32 %v29, 4294901760
    %412 = vmatmul.mubr.f32.gmra.mxu0 %v411
    %v413 = vpop.f32.mrf.mxu0
    %v414 = vadd.f32 %v337, %v413
    %v415 = vpop.f32.mrf.mxu0
    %416 = vdwg.mxu0
    %417 = vmatprep.subr.mxu0 0.0
    %418 = vmatpush1.msra.mxu0 0.0
    %419 = vmatprep.subr.mxu0 0.0
    %420 = vmatpush1.msra.mxu0 0.0
    %421 = vmatprep.subr.mxu0 0.0
    %422 = vmatpush1.msra.mxu0 0.0
    %423 = vmatprep.subr.mxu0 0.0
    %424 = vmatpush1.msra.mxu0 0.0
    %425 = vmatprep.subr.mxu0 0.0
    %426 = vmatpush1.msra.mxu0 0.0
    %427 = vmatprep.subr.mxu0 0.0
    %428 = vmatpush1.msra.mxu0 0.0
    %429 = vmatprep.subr.mxu0 0.0
    %430 = vmatpush1.msra.mxu0 0.0
    %431 = vmatprep.subr.mxu0 0.0
    %432 = vmatpush1.msra.mxu0 0.0
    %433 = vmatprep.subr.mxu0 0.0
    %434 = vmatpush1.msra.mxu0 0.0
    %435 = vmatprep.subr.mxu0 0.0
    %436 = vmatpush1.msra.mxu0 0.0
    %437 = vmatprep.subr.mxu0 0.0
    %438 = vmatpush1.msra.mxu0 0.0
    %439 = vmatprep.subr.mxu0 0.0
    %440 = vmatpush1.msra.mxu0 0.0
    %441 = vmatprep.subr.mxu0 0.0
    %442 = vmatpush1.msra.mxu0 0.0
    %443 = vmatprep.subr.mxu0 0.0
    %444 = vmatpush1.msra.mxu0 0.0
    %445 = vmatprep.subr.mxu0 0.0
    %v446 = vand.u32 %v19, 4294901760
    %447 = vmatpush1.msra.mxu0 %v446
    %448 = vmatprep.subr.mxu0 0.0
    %v449 = vand.u32 %v18, 4294901760
    %450 = vmatpush1.msra.mxu0 %v449
    %451 = vmatprep.subr.mxu0 0.0
    %452 = vmatpush2.msra.mxu0 0.0
    %453 = vmatprep.subr.mxu0 0.0
    %454 = vmatpush2.msra.mxu0 0.0
    %455 = vmatprep.subr.mxu0 0.0
    %456 = vmatpush2.msra.mxu0 0.0
    %457 = vmatprep.subr.mxu0 0.0
    %458 = vmatpush2.msra.mxu0 0.0
    %459 = vmatprep.subr.mxu0 0.0
    %460 = vmatpush2.msra.mxu0 0.0
    %461 = vmatprep.subr.mxu0 0.0
    %462 = vmatpush2.msra.mxu0 0.0
    %463 = vmatprep.subr.mxu0 0.0
    %464 = vmatpush2.msra.mxu0 0.0
    %465 = vmatprep.subr.mxu0 0.0
    %466 = vmatpush2.msra.mxu0 0.0
    %467 = vmatprep.subr.mxu0 0.0
    %468 = vmatpush2.msra.mxu0 0.0
    %469 = vmatprep.subr.mxu0 0.0
    %470 = vmatpush2.msra.mxu0 0.0
    %471 = vmatprep.subr.mxu0 0.0
    %472 = vmatpush2.msra.mxu0 0.0
    %473 = vmatprep.subr.mxu0 0.0
    %474 = vmatpush2.msra.mxu0 0.0
    %475 = vmatprep.subr.mxu0 0.0
    %476 = vmatpush2.msra.mxu0 0.0
    %477 = vmatprep.subr.mxu0 0.0
    %478 = vmatpush2.msra.mxu0 0.0
    %479 = vmatprep.subr.mxu0 0.0
    %480 = vmatpush2.msra.mxu0 0.0
    %481 = vmatprep.subr.mxu0 0.0
    %482 = vmatpush2.msra.mxu0 0.0
    %483 = vmatprep.mubr.f32.mxu0 0.0
    %v484 = vand.u32 %v29, 4294901760
    %485 = vmatmul.mubr.f32.gmra.mxu0 %v484
    %v486 = vpop.f32.mrf.mxu0
    %v487 = vadd.f32 %v414, %v486
    %v488 = vpop.f32.mrf.mxu0
    %489 = vdwg.mxu0
    %vm490 = vcmask 261120
    %v492 = vsel %vm490, %v487, 0
    %494 = vmatprep.subr.mxu0 0.0
    %495 = vmatpush1.msra.mxu0 0.0
    %496 = vmatprep.subr.mxu0 0.0
    %497 = vmatpush1.msra.mxu0 0.0
    %498 = vmatprep.subr.mxu0 0.0
    %499 = vmatpush1.msra.mxu0 0.0
    %500 = vmatprep.subr.mxu0 0.0
    %501 = vmatpush1.msra.mxu0 0.0
    %502 = vmatprep.subr.mxu0 0.0
    %503 = vmatpush1.msra.mxu0 0.0
    %504 = vmatprep.subr.mxu0 0.0
    %505 = vmatpush1.msra.mxu0 0.0
    %506 = vmatprep.subr.mxu0 0.0
    %507 = vmatpush1.msra.mxu0 0.0
    %508 = vmatprep.subr.mxu0 0.0
    %509 = vmatpush1.msra.mxu0 0.0
    %510 = vmatprep.subr.mxu0 0.0
    %511 = vmatpush1.msra.mxu0 0.0
    %512 = vmatprep.subr.mxu0 0.0
    %513 = vmatpush1.msra.mxu0 0.0
    %514 = vmatprep.subr.mxu0 0.0
    %515 = vmatpush1.msra.mxu0 0.0
    %516 = vmatprep.subr.mxu0 0.0
    %517 = vmatpush1.msra.mxu0 0.0
    %518 = vmatprep.subr.mxu0 0.0
    %v519 = vand.u32 %v26, 4294901760
    %520 = vmatpush1.msra.mxu0 %v519
    %521 = vmatprep.subr.mxu0 0.0
    %v522 = vand.u32 %v25, 4294901760
    %523 = vmatpush1.msra.mxu0 %v522
    %524 = vmatprep.subr.mxu0 0.0
    %v525 = vand.u32 %v24, 4294901760
    %526 = vmatpush1.msra.mxu0 %v525
    %527 = vmatprep.subr.mxu0 0.0
    %v528 = vand.u32 %v23, 4294901760
    %529 = vmatpush1.msra.mxu0 %v528
    %530 = vmatprep.subr.mxu0 0.0
    %531 = vmatpush2.msra.mxu0 0.0
    %532 = vmatprep.subr.mxu0 0.0
    %533 = vmatpush2.msra.mxu0 0.0
    %534 = vmatprep.subr.mxu0 0.0
    %535 = vmatpush2.msra.mxu0 0.0
    %536 = vmatprep.subr.mxu0 0.0
    %537 = vmatpush2.msra.mxu0 0.0
    %538 = vmatprep.subr.mxu0 0.0
    %539 = vmatpush2.msra.mxu0 0.0
    %540 = vmatprep.subr.mxu0 0.0
    %541 = vmatpush2.msra.mxu0 0.0
    %542 = vmatprep.subr.mxu0 0.0
    %543 = vmatpush2.msra.mxu0 0.0
    %544 = vmatprep.subr.mxu0 0.0
    %545 = vmatpush2.msra.mxu0 0.0
    %546 = vmatprep.subr.mxu0 0.0
    %547 = vmatpush2.msra.mxu0 0.0
    %548 = vmatprep.subr.mxu0 0.0
    %549 = vmatpush2.msra.mxu0 0.0
    %550 = vmatprep.subr.mxu0 0.0
    %551 = vmatpush2.msra.mxu0 0.0
    %552 = vmatprep.subr.mxu0 0.0
    %553 = vmatpush2.msra.mxu0 0.0
    %554 = vmatprep.subr.mxu0 0.0
    %555 = vmatpush2.msra.mxu0 0.0
    %556 = vmatprep.subr.mxu0 0.0
    %557 = vmatpush2.msra.mxu0 0.0
    %558 = vmatprep.subr.mxu0 0.0
    %559 = vmatpush2.msra.mxu0 0.0
    %560 = vmatprep.subr.mxu0 0.0
    %561 = vmatpush2.msra.mxu0 0.0
    %562 = vmatprep.mubr.f32.mxu0 0.0
    %v563 = vand.u32 %v492, 4294901760
    %v564 = vsub.f32 %v492, %v563
    %v565 = vand.u32 %v564, 4294901760
    %v566 = vsub.f32 %v564, %v565
    %v567 = vand.u32 %v566, 4294901760
    %568 = vmatmul.mubr.f32.gmra.mxu0 %v567
    %v569 = vpop.f32.mrf.mxu0
    %v570 = vadd.f32 0.0, %v569
    %v571 = vpop.f32.mrf.mxu0
    %572 = vdwg.mxu0
    %573 = vmatprep.subr.mxu0 0.0
    %574 = vmatpush1.msra.mxu0 0.0
    %575 = vmatprep.subr.mxu0 0.0
    %576 = vmatpush1.msra.mxu0 0.0
    %577 = vmatprep.subr.mxu0 0.0
    %578 = vmatpush1.msra.mxu0 0.0
    %579 = vmatprep.subr.mxu0 0.0
    %580 = vmatpush1.msra.mxu0 0.0
    %581 = vmatprep.subr.mxu0 0.0
    %582 = vmatpush1.msra.mxu0 0.0
    %583 = vmatprep.subr.mxu0 0.0
    %584 = vmatpush1.msra.mxu0 0.0
    %585 = vmatprep.subr.mxu0 0.0
    %586 = vmatpush1.msra.mxu0 0.0
    %587 = vmatprep.subr.mxu0 0.0
    %588 = vmatpush1.msra.mxu0 0.0
    %589 = vmatprep.subr.mxu0 0.0
    %590 = vmatpush1.msra.mxu0 0.0
    %591 = vmatprep.subr.mxu0 0.0
    %592 = vmatpush1.msra.mxu0 0.0
    %593 = vmatprep.subr.mxu0 0.0
    %594 = vmatpush1.msra.mxu0 0.0
    %595 = vmatprep.subr.mxu0 0.0
    %596 = vmatpush1.msra.mxu0 0.0
    %597 = vmatprep.subr.mxu0 0.0
    %v598 = vand.u32 %v26, 4294901760
    %v599 = vsub.f32 %v26, %v598
    %v600 = vand.u32 %v599, 4294901760
    %v601 = vsub.f32 %v599, %v600
    %v602 = vand.u32 %v601, 4294901760
    %603 = vmatpush1.msra.mxu0 %v602
    %604 = vmatprep.subr.mxu0 0.0
    %v605 = vand.u32 %v25, 4294901760
    %v606 = vsub.f32 %v25, %v605
    %v607 = vand.u32 %v606, 4294901760
    %v608 = vsub.f32 %v606, %v607
    %v609 = vand.u32 %v608, 4294901760
    %610 = vmatpush1.msra.mxu0 %v609
    %611 = vmatprep.subr.mxu0 0.0
    %v612 = vand.u32 %v24, 4294901760
    %v613 = vsub.f32 %v24, %v612
    %v614 = vand.u32 %v613, 4294901760
    %v615 = vsub.f32 %v613, %v614
    %v616 = vand.u32 %v615, 4294901760
    %617 = vmatpush1.msra.mxu0 %v616
    %618 = vmatprep.subr.mxu0 0.0
    %v619 = vand.u32 %v23, 4294901760
    %v620 = vsub.f32 %v23, %v619
    %v621 = vand.u32 %v620, 4294901760
    %v622 = vsub.f32 %v620, %v621
    %v623 = vand.u32 %v622, 4294901760
    %624 = vmatpush1.msra.mxu0 %v623
    %625 = vmatprep.subr.mxu0 0.0
    %626 = vmatpush2.msra.mxu0 0.0
    %627 = vmatprep.subr.mxu0 0.0
    %628 = vmatpush2.msra.mxu0 0.0
    %629 = vmatprep.subr.mxu0 0.0
    %630 = vmatpush2.msra.mxu0 0.0
    %631 = vmatprep.subr.mxu0 0.0
    %632 = vmatpush2.msra.mxu0 0.0
    %633 = vmatprep.subr.mxu0 0.0
    %634 = vmatpush2.msra.mxu0 0.0
    %635 = vmatprep.subr.mxu0 0.0
    %636 = vmatpush2.msra.mxu0 0.0
    %637 = vmatprep.subr.mxu0 0.0
    %638 = vmatpush2.msra.mxu0 0.0
    %639 = vmatprep.subr.mxu0 0.0
    %640 = vmatpush2.msra.mxu0 0.0
    %641 = vmatprep.subr.mxu0 0.0
    %642 = vmatpush2.msra.mxu0 0.0
    %643 = vmatprep.subr.mxu0 0.0
    %644 = vmatpush2.msra.mxu0 0.0
    %645 = vmatprep.subr.mxu0 0.0
    %646 = vmatpush2.msra.mxu0 0.0
    %647 = vmatprep.subr.mxu0 0.0
    %648 = vmatpush2.msra.mxu0 0.0
    %649 = vmatprep.subr.mxu0 0.0
    %650 = vmatpush2.msra.mxu0 0.0
    %651 = vmatprep.subr.mxu0 0.0
    %652 = vmatpush2.msra.mxu0 0.0
    %653 = vmatprep.subr.mxu0 0.0
    %654 = vmatpush2.msra.mxu0 0.0
    %655 = vmatprep.subr.mxu0 0.0
    %656 = vmatpush2.msra.mxu0 0.0
    %657 = vmatprep.mubr.f32.mxu0 0.0
    %v658 = vand.u32 %v492, 4294901760
    %659 = vmatmul.mubr.f32.gmra.mxu0 %v658
    %v660 = vpop.f32.mrf.mxu0
    %v661 = vadd.f32 %v570, %v660
    %v662 = vpop.f32.mrf.mxu0
    %663 = vdwg.mxu0
    %664 = vmatprep.subr.mxu0 0.0
    %665 = vmatpush1.msra.mxu0 0.0
    %666 = vmatprep.subr.mxu0 0.0
    %667 = vmatpush1.msra.mxu0 0.0
    %668 = vmatprep.subr.mxu0 0.0
    %669 = vmatpush1.msra.mxu0 0.0
    %670 = vmatprep.subr.mxu0 0.0
    %671 = vmatpush1.msra.mxu0 0.0
    %672 = vmatprep.subr.mxu0 0.0
    %673 = vmatpush1.msra.mxu0 0.0
    %674 = vmatprep.subr.mxu0 0.0
    %675 = vmatpush1.msra.mxu0 0.0
    %676 = vmatprep.subr.mxu0 0.0
    %677 = vmatpush1.msra.mxu0 0.0
    %678 = vmatprep.subr.mxu0 0.0
    %679 = vmatpush1.msra.mxu0 0.0
    %680 = vmatprep.subr.mxu0 0.0
    %681 = vmatpush1.msra.mxu0 0.0
    %682 = vmatprep.subr.mxu0 0.0
    %683 = vmatpush1.msra.mxu0 0.0
    %684 = vmatprep.subr.mxu0 0.0
    %685 = vmatpush1.msra.mxu0 0.0
    %686 = vmatprep.subr.mxu0 0.0
    %687 = vmatpush1.msra.mxu0 0.0
    %688 = vmatprep.subr.mxu0 0.0
    %v689 = vand.u32 %v26, 4294901760
    %v690 = vsub.f32 %v26, %v689
    %691 = vmatpush1.msra.mxu0 %v690
    %692 = vmatprep.subr.mxu0 0.0
    %v693 = vand.u32 %v25, 4294901760
    %v694 = vsub.f32 %v25, %v693
    %695 = vmatpush1.msra.mxu0 %v694
    %696 = vmatprep.subr.mxu0 0.0
    %v697 = vand.u32 %v24, 4294901760
    %v698 = vsub.f32 %v24, %v697
    %699 = vmatpush1.msra.mxu0 %v698
    %700 = vmatprep.subr.mxu0 0.0
    %v701 = vand.u32 %v23, 4294901760
    %v702 = vsub.f32 %v23, %v701
    %703 = vmatpush1.msra.mxu0 %v702
    %704 = vmatprep.subr.mxu0 0.0
    %705 = vmatpush2.msra.mxu0 0.0
    %706 = vmatprep.subr.mxu0 0.0
    %707 = vmatpush2.msra.mxu0 0.0
    %708 = vmatprep.subr.mxu0 0.0
    %709 = vmatpush2.msra.mxu0 0.0
    %710 = vmatprep.subr.mxu0 0.0
    %711 = vmatpush2.msra.mxu0 0.0
    %712 = vmatprep.subr.mxu0 0.0
    %713 = vmatpush2.msra.mxu0 0.0
    %714 = vmatprep.subr.mxu0 0.0
    %715 = vmatpush2.msra.mxu0 0.0
    %716 = vmatprep.subr.mxu0 0.0
    %717 = vmatpush2.msra.mxu0 0.0
    %718 = vmatprep.subr.mxu0 0.0
    %719 = vmatpush2.msra.mxu0 0.0
    %720 = vmatprep.subr.mxu0 0.0
    %721 = vmatpush2.msra.mxu0 0.0
    %722 = vmatprep.subr.mxu0 0.0
    %723 = vmatpush2.msra.mxu0 0.0
    %724 = vmatprep.subr.mxu0 0.0
    %725 = vmatpush2.msra.mxu0 0.0
    %726 = vmatprep.subr.mxu0 0.0
    %727 = vmatpush2.msra.mxu0 0.0
    %728 = vmatprep.subr.mxu0 0.0
    %729 = vmatpush2.msra.mxu0 0.0
    %730 = vmatprep.subr.mxu0 0.0
    %731 = vmatpush2.msra.mxu0 0.0
    %732 = vmatprep.subr.mxu0 0.0
    %733 = vmatpush2.msra.mxu0 0.0
    %734 = vmatprep.subr.mxu0 0.0
    %735 = vmatpush2.msra.mxu0 0.0
    %736 = vmatprep.mubr.f32.mxu0 0.0
    %v737 = vand.u32 %v492, 4294901760
    %v738 = vsub.f32 %v492, %v737
    %739 = vmatmul.mubr.f32.gmra.mxu0 %v738
    %v740 = vpop.f32.mrf.mxu0
    %v741 = vadd.f32 %v661, %v740
    %v742 = vpop.f32.mrf.mxu0
    %743 = vdwg.mxu0
    %744 = vmatprep.subr.mxu0 0.0
    %745 = vmatpush1.msra.mxu0 0.0
    %746 = vmatprep.subr.mxu0 0.0
    %747 = vmatpush1.msra.mxu0 0.0
    %748 = vmatprep.subr.mxu0 0.0
    %749 = vmatpush1.msra.mxu0 0.0
    %750 = vmatprep.subr.mxu0 0.0
    %751 = vmatpush1.msra.mxu0 0.0
    %752 = vmatprep.subr.mxu0 0.0
    %753 = vmatpush1.msra.mxu0 0.0
    %754 = vmatprep.subr.mxu0 0.0
    %755 = vmatpush1.msra.mxu0 0.0
    %756 = vmatprep.subr.mxu0 0.0
    %757 = vmatpush1.msra.mxu0 0.0
    %758 = vmatprep.subr.mxu0 0.0
    %759 = vmatpush1.msra.mxu0 0.0
    %760 = vmatprep.subr.mxu0 0.0
    %761 = vmatpush1.msra.mxu0 0.0
    %762 = vmatprep.subr.mxu0 0.0
    %763 = vmatpush1.msra.mxu0 0.0
    %764 = vmatprep.subr.mxu0 0.0
    %765 = vmatpush1.msra.mxu0 0.0
    %766 = vmatprep.subr.mxu0 0.0
    %767 = vmatpush1.msra.mxu0 0.0
    %768 = vmatprep.subr.mxu0 0.0
    %v769 = vand.u32 %v26, 4294901760
    %770 = vmatpush1.msra.mxu0 %v769
    %771 = vmatprep.subr.mxu0 0.0
    %v772 = vand.u32 %v25, 4294901760
    %773 = vmatpush1.msra.mxu0 %v772
    %774 = vmatprep.subr.mxu0 0.0
    %v775 = vand.u32 %v24, 4294901760
    %776 = vmatpush1.msra.mxu0 %v775
    %777 = vmatprep.subr.mxu0 0.0
    %v778 = vand.u32 %v23, 4294901760
    %779 = vmatpush1.msra.mxu0 %v778
    %780 = vmatprep.subr.mxu0 0.0
    %781 = vmatpush2.msra.mxu0 0.0
    %782 = vmatprep.subr.mxu0 0.0
    %783 = vmatpush2.msra.mxu0 0.0
    %784 = vmatprep.subr.mxu0 0.0
    %785 = vmatpush2.msra.mxu0 0.0
    %786 = vmatprep.subr.mxu0 0.0
    %787 = vmatpush2.msra.mxu0 0.0
    %788 = vmatprep.subr.mxu0 0.0
    %789 = vmatpush2.msra.mxu0 0.0
    %790 = vmatprep.subr.mxu0 0.0
    %791 = vmatpush2.msra.mxu0 0.0
    %792 = vmatprep.subr.mxu0 0.0
    %793 = vmatpush2.msra.mxu0 0.0
    %794 = vmatprep.subr.mxu0 0.0
    %795 = vmatpush2.msra.mxu0 0.0
    %796 = vmatprep.subr.mxu0 0.0
    %797 = vmatpush2.msra.mxu0 0.0
    %798 = vmatprep.subr.mxu0 0.0
    %799 = vmatpush2.msra.mxu0 0.0
    %800 = vmatprep.subr.mxu0 0.0
    %801 = vmatpush2.msra.mxu0 0.0
    %802 = vmatprep.subr.mxu0 0.0
    %803 = vmatpush2.msra.mxu0 0.0
    %804 = vmatprep.subr.mxu0 0.0
    %805 = vmatpush2.msra.mxu0 0.0
    %806 = vmatprep.subr.mxu0 0.0
    %807 = vmatpush2.msra.mxu0 0.0
    %808 = vmatprep.subr.mxu0 0.0
    %809 = vmatpush2.msra.mxu0 0.0
    %810 = vmatprep.subr.mxu0 0.0
    %811 = vmatpush2.msra.mxu0 0.0
    %812 = vmatprep.mubr.f32.mxu0 0.0
    %v813 = vand.u32 %v492, 4294901760
    %v814 = vsub.f32 %v492, %v813
    %v815 = vand.u32 %v814, 4294901760
    %816 = vmatmul.mubr.f32.gmra.mxu0 %v815
    %v817 = vpop.f32.mrf.mxu0
    %v818 = vadd.f32 %v741, %v817
    %v819 = vpop.f32.mrf.mxu0
    %820 = vdwg.mxu0
    %821 = vmatprep.subr.mxu0 0.0
    %822 = vmatpush1.msra.mxu0 0.0
    %823 = vmatprep.subr.mxu0 0.0
    %824 = vmatpush1.msra.mxu0 0.0
    %825 = vmatprep.subr.mxu0 0.0
    %826 = vmatpush1.msra.mxu0 0.0
    %827 = vmatprep.subr.mxu0 0.0
    %828 = vmatpush1.msra.mxu0 0.0
    %829 = vmatprep.subr.mxu0 0.0
    %830 = vmatpush1.msra.mxu0 0.0
    %831 = vmatprep.subr.mxu0 0.0
    %832 = vmatpush1.msra.mxu0 0.0
    %833 = vmatprep.subr.mxu0 0.0
    %834 = vmatpush1.msra.mxu0 0.0
    %835 = vmatprep.subr.mxu0 0.0
    %836 = vmatpush1.msra.mxu0 0.0
    %837 = vmatprep.subr.mxu0 0.0
    %838 = vmatpush1.msra.mxu0 0.0
    %839 = vmatprep.subr.mxu0 0.0
    %840 = vmatpush1.msra.mxu0 0.0
    %841 = vmatprep.subr.mxu0 0.0
    %842 = vmatpush1.msra.mxu0 0.0
    %843 = vmatprep.subr.mxu0 0.0
    %844 = vmatpush1.msra.mxu0 0.0
    %845 = vmatprep.subr.mxu0 0.0
    %v846 = vand.u32 %v26, 4294901760
    %v847 = vsub.f32 %v26, %v846
    %v848 = vand.u32 %v847, 4294901760
    %849 = vmatpush1.msra.mxu0 %v848
    %850 = vmatprep.subr.mxu0 0.0
    %v851 = vand.u32 %v25, 4294901760
    %v852 = vsub.f32 %v25, %v851
    %v853 = vand.u32 %v852, 4294901760
    %854 = vmatpush1.msra.mxu0 %v853
    %855 = vmatprep.subr.mxu0 0.0
    %v856 = vand.u32 %v24, 4294901760
    %v857 = vsub.f32 %v24, %v856
    %v858 = vand.u32 %v857, 4294901760
    %859 = vmatpush1.msra.mxu0 %v858
    %860 = vmatprep.subr.mxu0 0.0
    %v861 = vand.u32 %v23, 4294901760
    %v862 = vsub.f32 %v23, %v861
    %v863 = vand.u32 %v862, 4294901760
    %864 = vmatpush1.msra.mxu0 %v863
    %865 = vmatprep.subr.mxu0 0.0
    %866 = vmatpush2.msra.mxu0 0.0
    %867 = vmatprep.subr.mxu0 0.0
    %868 = vmatpush2.msra.mxu0 0.0
    %869 = vmatprep.subr.mxu0 0.0
    %870 = vmatpush2.msra.mxu0 0.0
    %871 = vmatprep.subr.mxu0 0.0
    %872 = vmatpush2.msra.mxu0 0.0
    %873 = vmatprep.subr.mxu0 0.0
    %874 = vmatpush2.msra.mxu0 0.0
    %875 = vmatprep.subr.mxu0 0.0
    %876 = vmatpush2.msra.mxu0 0.0
    %877 = vmatprep.subr.mxu0 0.0
    %878 = vmatpush2.msra.mxu0 0.0
    %879 = vmatprep.subr.mxu0 0.0
    %880 = vmatpush2.msra.mxu0 0.0
    %881 = vmatprep.subr.mxu0 0.0
    %882 = vmatpush2.msra.mxu0 0.0
    %883 = vmatprep.subr.mxu0 0.0
    %884 = vmatpush2.msra.mxu0 0.0
    %885 = vmatprep.subr.mxu0 0.0
    %886 = vmatpush2.msra.mxu0 0.0
    %887 = vmatprep.subr.mxu0 0.0
    %888 = vmatpush2.msra.mxu0 0.0
    %889 = vmatprep.subr.mxu0 0.0
    %890 = vmatpush2.msra.mxu0 0.0
    %891 = vmatprep.subr.mxu0 0.0
    %892 = vmatpush2.msra.mxu0 0.0
    %893 = vmatprep.subr.mxu0 0.0
    %894 = vmatpush2.msra.mxu0 0.0
    %895 = vmatprep.subr.mxu0 0.0
    %896 = vmatpush2.msra.mxu0 0.0
    %897 = vmatprep.mubr.f32.mxu0 0.0
    %v898 = vand.u32 %v492, 4294901760
    %899 = vmatmul.mubr.f32.gmra.mxu0 %v898
    %v900 = vpop.f32.mrf.mxu0
    %v901 = vadd.f32 %v818, %v900
    %v902 = vpop.f32.mrf.mxu0
    %903 = vdwg.mxu0
    %904 = vmatprep.subr.mxu0 0.0
    %905 = vmatpush1.msra.mxu0 0.0
    %906 = vmatprep.subr.mxu0 0.0
    %907 = vmatpush1.msra.mxu0 0.0
    %908 = vmatprep.subr.mxu0 0.0
    %909 = vmatpush1.msra.mxu0 0.0
    %910 = vmatprep.subr.mxu0 0.0
    %911 = vmatpush1.msra.mxu0 0.0
    %912 = vmatprep.subr.mxu0 0.0
    %913 = vmatpush1.msra.mxu0 0.0
    %914 = vmatprep.subr.mxu0 0.0
    %915 = vmatpush1.msra.mxu0 0.0
    %916 = vmatprep.subr.mxu0 0.0
    %917 = vmatpush1.msra.mxu0 0.0
    %918 = vmatprep.subr.mxu0 0.0
    %919 = vmatpush1.msra.mxu0 0.0
    %920 = vmatprep.subr.mxu0 0.0
    %921 = vmatpush1.msra.mxu0 0.0
    %922 = vmatprep.subr.mxu0 0.0
    %923 = vmatpush1.msra.mxu0 0.0
    %924 = vmatprep.subr.mxu0 0.0
    %925 = vmatpush1.msra.mxu0 0.0
    %926 = vmatprep.subr.mxu0 0.0
    %927 = vmatpush1.msra.mxu0 0.0
    %928 = vmatprep.subr.mxu0 0.0
    %v929 = vand.u32 %v26, 4294901760
    %930 = vmatpush1.msra.mxu0 %v929
    %931 = vmatprep.subr.mxu0 0.0
    %v932 = vand.u32 %v25, 4294901760
    %933 = vmatpush1.msra.mxu0 %v932
    %934 = vmatprep.subr.mxu0 0.0
    %v935 = vand.u32 %v24, 4294901760
    %936 = vmatpush1.msra.mxu0 %v935
    %937 = vmatprep.subr.mxu0 0.0
    %v938 = vand.u32 %v23, 4294901760
    %939 = vmatpush1.msra.mxu0 %v938
    %940 = vmatprep.subr.mxu0 0.0
    %941 = vmatpush2.msra.mxu0 0.0
    %942 = vmatprep.subr.mxu0 0.0
    %943 = vmatpush2.msra.mxu0 0.0
    %944 = vmatprep.subr.mxu0 0.0
    %945 = vmatpush2.msra.mxu0 0.0
    %946 = vmatprep.subr.mxu0 0.0
    %947 = vmatpush2.msra.mxu0 0.0
    %948 = vmatprep.subr.mxu0 0.0
    %949 = vmatpush2.msra.mxu0 0.0
    %950 = vmatprep.subr.mxu0 0.0
    %951 = vmatpush2.msra.mxu0 0.0
    %952 = vmatprep.subr.mxu0 0.0
    %953 = vmatpush2.msra.mxu0 0.0
    %954 = vmatprep.subr.mxu0 0.0
    %955 = vmatpush2.msra.mxu0 0.0
    %956 = vmatprep.subr.mxu0 0.0
    %957 = vmatpush2.msra.mxu0 0.0
    %958 = vmatprep.subr.mxu0 0.0
    %959 = vmatpush2.msra.mxu0 0.0
    %960 = vmatprep.subr.mxu0 0.0
    %961 = vmatpush2.msra.mxu0 0.0
    %962 = vmatprep.subr.mxu0 0.0
    %963 = vmatpush2.msra.mxu0 0.0
    %964 = vmatprep.subr.mxu0 0.0
    %965 = vmatpush2.msra.mxu0 0.0
    %966 = vmatprep.subr.mxu0 0.0
    %967 = vmatpush2.msra.mxu0 0.0
    %968 = vmatprep.subr.mxu0 0.0
    %969 = vmatpush2.msra.mxu0 0.0
    %970 = vmatprep.subr.mxu0 0.0
    %971 = vmatpush2.msra.mxu0 0.0
    %972 = vmatprep.mubr.f32.mxu0 0.0
    %v973 = vand.u32 %v492, 4294901760
    %974 = vmatmul.mubr.f32.gmra.mxu0 %v973
    %v975 = vpop.f32.mrf.mxu0
    %v976 = vadd.f32 %v901, %v975
    %v977 = vpop.f32.mrf.mxu0
    %978 = vdwg.mxu0
    %979 = vmatprep.subr.mxu0 0.0
    %980 = vmatpush1.msra.mxu0 0.0
    %981 = vmatprep.subr.mxu0 0.0
    %982 = vmatpush1.msra.mxu0 0.0
    %983 = vmatprep.subr.mxu0 0.0
    %984 = vmatpush1.msra.mxu0 0.0
    %985 = vmatprep.subr.mxu0 0.0
    %986 = vmatpush1.msra.mxu0 0.0
    %987 = vmatprep.subr.mxu0 0.0
    %988 = vmatpush1.msra.mxu0 0.0
    %989 = vmatprep.subr.mxu0 0.0
    %990 = vmatpush1.msra.mxu0 0.0
    %991 = vmatprep.subr.mxu0 0.0
    %992 = vmatpush1.msra.mxu0 0.0
    %993 = vmatprep.subr.mxu0 0.0
    %994 = vmatpush1.msra.mxu0 0.0
    %995 = vmatprep.subr.mxu0 0.0
    %996 = vmatpush1.msra.mxu0 0.0
    %997 = vmatprep.subr.mxu0 0.0
    %998 = vmatpush1.msra.mxu0 0.0
    %999 = vmatprep.subr.mxu0 0.0
    %1000 = vmatpush1.msra.mxu0 0.0
    %1001 = vmatprep.subr.mxu0 0.0
    %1002 = vmatpush1.msra.mxu0 0.0
    %1003 = vmatprep.subr.mxu0 0.0
    %1004 = vmatpush1.msra.mxu0 0.0
    %1005 = vmatprep.subr.mxu0 0.0
    %1006 = vmatpush1.msra.mxu0 0.0
    %1007 = vmatprep.subr.mxu0 0.0
    %v1008 = vand.u32 %v21, 4294901760
    %1009 = vmatpush1.msra.mxu0 %v1008
    %1010 = vmatprep.subr.mxu0 0.0
    %v1011 = vand.u32 %v20, 4294901760
    %1012 = vmatpush1.msra.mxu0 %v1011
    %1013 = vmatprep.subr.mxu0 0.0
    %1014 = vmatpush2.msra.mxu0 0.0
    %1015 = vmatprep.subr.mxu0 0.0
    %1016 = vmatpush2.msra.mxu0 0.0
    %1017 = vmatprep.subr.mxu0 0.0
    %1018 = vmatpush2.msra.mxu0 0.0
    %1019 = vmatprep.subr.mxu0 0.0
    %1020 = vmatpush2.msra.mxu0 0.0
    %1021 = vmatprep.subr.mxu0 0.0
    %1022 = vmatpush2.msra.mxu0 0.0
    %1023 = vmatprep.subr.mxu0 0.0
    %1024 = vmatpush2.msra.mxu0 0.0
    %1025 = vmatprep.subr.mxu0 0.0
    %1026 = vmatpush2.msra.mxu0 0.0
    %1027 = vmatprep.subr.mxu0 0.0
    %1028 = vmatpush2.msra.mxu0 0.0
    %1029 = vmatprep.subr.mxu0 0.0
    %1030 = vmatpush2.msra.mxu0 0.0
    %1031 = vmatprep.subr.mxu0 0.0
    %1032 = vmatpush2.msra.mxu0 0.0
    %1033 = vmatprep.subr.mxu0 0.0
    %1034 = vmatpush2.msra.mxu0 0.0
    %1035 = vmatprep.subr.mxu0 0.0
    %1036 = vmatpush2.msra.mxu0 0.0
    %1037 = vmatprep.subr.mxu0 0.0
    %1038 = vmatpush2.msra.mxu0 0.0
    %1039 = vmatprep.subr.mxu0 0.0
    %1040 = vmatpush2.msra.mxu0 0.0
    %1041 = vmatprep.subr.mxu0 0.0
    %1042 = vmatpush2.msra.mxu0 0.0
    %1043 = vmatprep.subr.mxu0 0.0
    %1044 = vmatpush2.msra.mxu0 0.0
    %1045 = vmatprep.mubr.f32.mxu0 0.0
    %v1046 = vand.u32 %v29, 4294901760
    %v1047 = vsub.f32 %v29, %v1046
    %v1048 = vand.u32 %v1047, 4294901760
    %v1049 = vsub.f32 %v1047, %v1048
    %v1050 = vand.u32 %v1049, 4294901760
    %1051 = vmatmul.mubr.f32.gmra.mxu0 %v1050
    %v1052 = vpop.f32.mrf.mxu0
    %v1053 = vadd.f32 0.0, %v1052
    %v1054 = vpop.f32.mrf.mxu0
    %1055 = vdwg.mxu0
    %1056 = vmatprep.subr.mxu0 0.0
    %1057 = vmatpush1.msra.mxu0 0.0
    %1058 = vmatprep.subr.mxu0 0.0
    %1059 = vmatpush1.msra.mxu0 0.0
    %1060 = vmatprep.subr.mxu0 0.0
    %1061 = vmatpush1.msra.mxu0 0.0
    %1062 = vmatprep.subr.mxu0 0.0
    %1063 = vmatpush1.msra.mxu0 0.0
    %1064 = vmatprep.subr.mxu0 0.0
    %1065 = vmatpush1.msra.mxu0 0.0
    %1066 = vmatprep.subr.mxu0 0.0
    %1067 = vmatpush1.msra.mxu0 0.0
    %1068 = vmatprep.subr.mxu0 0.0
    %1069 = vmatpush1.msra.mxu0 0.0
    %1070 = vmatprep.subr.mxu0 0.0
    %1071 = vmatpush1.msra.mxu0 0.0
    %1072 = vmatprep.subr.mxu0 0.0
    %1073 = vmatpush1.msra.mxu0 0.0
    %1074 = vmatprep.subr.mxu0 0.0
    %1075 = vmatpush1.msra.mxu0 0.0
    %1076 = vmatprep.subr.mxu0 0.0
    %1077 = vmatpush1.msra.mxu0 0.0
    %1078 = vmatprep.subr.mxu0 0.0
    %1079 = vmatpush1.msra.mxu0 0.0
    %1080 = vmatprep.subr.mxu0 0.0
    %1081 = vmatpush1.msra.mxu0 0.0
    %1082 = vmatprep.subr.mxu0 0.0
    %1083 = vmatpush1.msra.mxu0 0.0
    %1084 = vmatprep.subr.mxu0 0.0
    %v1085 = vand.u32 %v21, 4294901760
    %v1086 = vsub.f32 %v21, %v1085
    %v1087 = vand.u32 %v1086, 4294901760
    %v1088 = vsub.f32 %v1086, %v1087
    %v1089 = vand.u32 %v1088, 4294901760
    %1090 = vmatpush1.msra.mxu0 %v1089
    %1091 = vmatprep.subr.mxu0 0.0
    %v1092 = vand.u32 %v20, 4294901760
    %v1093 = vsub.f32 %v20, %v1092
    %v1094 = vand.u32 %v1093, 4294901760
    %v1095 = vsub.f32 %v1093, %v1094
    %v1096 = vand.u32 %v1095, 4294901760
    %1097 = vmatpush1.msra.mxu0 %v1096
    %1098 = vmatprep.subr.mxu0 0.0
    %1099 = vmatpush2.msra.mxu0 0.0
    %1100 = vmatprep.subr.mxu0 0.0
    %1101 = vmatpush2.msra.mxu0 0.0
    %1102 = vmatprep.subr.mxu0 0.0
    %1103 = vmatpush2.msra.mxu0 0.0
    %1104 = vmatprep.subr.mxu0 0.0
    %1105 = vmatpush2.msra.mxu0 0.0
    %1106 = vmatprep.subr.mxu0 0.0
    %1107 = vmatpush2.msra.mxu0 0.0
    %1108 = vmatprep.subr.mxu0 0.0
    %1109 = vmatpush2.msra.mxu0 0.0
    %1110 = vmatprep.subr.mxu0 0.0
    %1111 = vmatpush2.msra.mxu0 0.0
    %1112 = vmatprep.subr.mxu0 0.0
    %1113 = vmatpush2.msra.mxu0 0.0
    %1114 = vmatprep.subr.mxu0 0.0
    %1115 = vmatpush2.msra.mxu0 0.0
    %1116 = vmatprep.subr.mxu0 0.0
    %1117 = vmatpush2.msra.mxu0 0.0
    %1118 = vmatprep.subr.mxu0 0.0
    %1119 = vmatpush2.msra.mxu0 0.0
    %1120 = vmatprep.subr.mxu0 0.0
    %1121 = vmatpush2.msra.mxu0 0.0
    %1122 = vmatprep.subr.mxu0 0.0
    %1123 = vmatpush2.msra.mxu0 0.0
    %1124 = vmatprep.subr.mxu0 0.0
    %1125 = vmatpush2.msra.mxu0 0.0
    %1126 = vmatprep.subr.mxu0 0.0
    %1127 = vmatpush2.msra.mxu0 0.0
    %1128 = vmatprep.subr.mxu0 0.0
    %1129 = vmatpush2.msra.mxu0 0.0
    %1130 = vmatprep.mubr.f32.mxu0 0.0
    %v1131 = vand.u32 %v29, 4294901760
    %1132 = vmatmul.mubr.f32.gmra.mxu0 %v1131
    %v1133 = vpop.f32.mrf.mxu0
    %v1134 = vadd.f32 %v1053, %v1133
    %v1135 = vpop.f32.mrf.mxu0
    %1136 = vdwg.mxu0
    %1137 = vmatprep.subr.mxu0 0.0
    %1138 = vmatpush1.msra.mxu0 0.0
    %1139 = vmatprep.subr.mxu0 0.0
    %1140 = vmatpush1.msra.mxu0 0.0
    %1141 = vmatprep.subr.mxu0 0.0
    %1142 = vmatpush1.msra.mxu0 0.0
    %1143 = vmatprep.subr.mxu0 0.0
    %1144 = vmatpush1.msra.mxu0 0.0
    %1145 = vmatprep.subr.mxu0 0.0
    %1146 = vmatpush1.msra.mxu0 0.0
    %1147 = vmatprep.subr.mxu0 0.0
    %1148 = vmatpush1.msra.mxu0 0.0
    %1149 = vmatprep.subr.mxu0 0.0
    %1150 = vmatpush1.msra.mxu0 0.0
    %1151 = vmatprep.subr.mxu0 0.0
    %1152 = vmatpush1.msra.mxu0 0.0
    %1153 = vmatprep.subr.mxu0 0.0
    %1154 = vmatpush1.msra.mxu0 0.0
    %1155 = vmatprep.subr.mxu0 0.0
    %1156 = vmatpush1.msra.mxu0 0.0
    %1157 = vmatprep.subr.mxu0 0.0
    %1158 = vmatpush1.msra.mxu0 0.0
    %1159 = vmatprep.subr.mxu0 0.0
    %1160 = vmatpush1.msra.mxu0 0.0
    %1161 = vmatprep.subr.mxu0 0.0
    %1162 = vmatpush1.msra.mxu0 0.0
    %1163 = vmatprep.subr.mxu0 0.0
    %1164 = vmatpush1.msra.mxu0 0.0
    %1165 = vmatprep.subr.mxu0 0.0
    %v1166 = vand.u32 %v21, 4294901760
    %v1167 = vsub.f32 %v21, %v1166
    %1168 = vmatpush1.msra.mxu0 %v1167
    %1169 = vmatprep.subr.mxu0 0.0
    %v1170 = vand.u32 %v20, 4294901760
    %v1171 = vsub.f32 %v20, %v1170
    %1172 = vmatpush1.msra.mxu0 %v1171
    %1173 = vmatprep.subr.mxu0 0.0
    %1174 = vmatpush2.msra.mxu0 0.0
    %1175 = vmatprep.subr.mxu0 0.0
    %1176 = vmatpush2.msra.mxu0 0.0
    %1177 = vmatprep.subr.mxu0 0.0
    %1178 = vmatpush2.msra.mxu0 0.0
    %1179 = vmatprep.subr.mxu0 0.0
    %1180 = vmatpush2.msra.mxu0 0.0
    %1181 = vmatprep.subr.mxu0 0.0
    %1182 = vmatpush2.msra.mxu0 0.0
    %1183 = vmatprep.subr.mxu0 0.0
    %1184 = vmatpush2.msra.mxu0 0.0
    %1185 = vmatprep.subr.mxu0 0.0
    %1186 = vmatpush2.msra.mxu0 0.0
    %1187 = vmatprep.subr.mxu0 0.0
    %1188 = vmatpush2.msra.mxu0 0.0
    %1189 = vmatprep.subr.mxu0 0.0
    %1190 = vmatpush2.msra.mxu0 0.0
    %1191 = vmatprep.subr.mxu0 0.0
    %1192 = vmatpush2.msra.mxu0 0.0
    %1193 = vmatprep.subr.mxu0 0.0
    %1194 = vmatpush2.msra.mxu0 0.0
    %1195 = vmatprep.subr.mxu0 0.0
    %1196 = vmatpush2.msra.mxu0 0.0
    %1197 = vmatprep.subr.mxu0 0.0
    %1198 = vmatpush2.msra.mxu0 0.0
    %1199 = vmatprep.subr.mxu0 0.0
    %1200 = vmatpush2.msra.mxu0 0.0
    %1201 = vmatprep.subr.mxu0 0.0
    %1202 = vmatpush2.msra.mxu0 0.0
    %1203 = vmatprep.subr.mxu0 0.0
    %1204 = vmatpush2.msra.mxu0 0.0
    %1205 = vmatprep.mubr.f32.mxu0 0.0
    %v1206 = vand.u32 %v29, 4294901760
    %v1207 = vsub.f32 %v29, %v1206
    %1208 = vmatmul.mubr.f32.gmra.mxu0 %v1207
    %v1209 = vpop.f32.mrf.mxu0
    %v1210 = vadd.f32 %v1134, %v1209
    %v1211 = vpop.f32.mrf.mxu0
    %1212 = vdwg.mxu0
    %1213 = vmatprep.subr.mxu0 0.0
    %1214 = vmatpush1.msra.mxu0 0.0
    %1215 = vmatprep.subr.mxu0 0.0
    %1216 = vmatpush1.msra.mxu0 0.0
    %1217 = vmatprep.subr.mxu0 0.0
    %1218 = vmatpush1.msra.mxu0 0.0
    %1219 = vmatprep.subr.mxu0 0.0
    %1220 = vmatpush1.msra.mxu0 0.0
    %1221 = vmatprep.subr.mxu0 0.0
    %1222 = vmatpush1.msra.mxu0 0.0
    %1223 = vmatprep.subr.mxu0 0.0
    %1224 = vmatpush1.msra.mxu0 0.0
    %1225 = vmatprep.subr.mxu0 0.0
    %1226 = vmatpush1.msra.mxu0 0.0
    %1227 = vmatprep.subr.mxu0 0.0
    %1228 = vmatpush1.msra.mxu0 0.0
    %1229 = vmatprep.subr.mxu0 0.0
    %1230 = vmatpush1.msra.mxu0 0.0
    %1231 = vmatprep.subr.mxu0 0.0
    %1232 = vmatpush1.msra.mxu0 0.0
    %1233 = vmatprep.subr.mxu0 0.0
    %1234 = vmatpush1.msra.mxu0 0.0
    %1235 = vmatprep.subr.mxu0 0.0
    %1236 = vmatpush1.msra.mxu0 0.0
    %1237 = vmatprep.subr.mxu0 0.0
    %1238 = vmatpush1.msra.mxu0 0.0
    %1239 = vmatprep.subr.mxu0 0.0
    %1240 = vmatpush1.msra.mxu0 0.0
    %1241 = vmatprep.subr.mxu0 0.0
    %v1242 = vand.u32 %v21, 4294901760
    %1243 = vmatpush1.msra.mxu0 %v1242
    %1244 = vmatprep.subr.mxu0 0.0
    %v1245 = vand.u32 %v20, 4294901760
    %1246 = vmatpush1.msra.mxu0 %v1245
    %1247 = vmatprep.subr.mxu0 0.0
    %1248 = vmatpush2.msra.mxu0 0.0
    %1249 = vmatprep.subr.mxu0 0.0
    %1250 = vmatpush2.msra.mxu0 0.0
    %1251 = vmatprep.subr.mxu0 0.0
    %1252 = vmatpush2.msra.mxu0 0.0
    %1253 = vmatprep.subr.mxu0 0.0
    %1254 = vmatpush2.msra.mxu0 0.0
    %1255 = vmatprep.subr.mxu0 0.0
    %1256 = vmatpush2.msra.mxu0 0.0
    %1257 = vmatprep.subr.mxu0 0.0
    %1258 = vmatpush2.msra.mxu0 0.0
    %1259 = vmatprep.subr.mxu0 0.0
    %1260 = vmatpush2.msra.mxu0 0.0
    %1261 = vmatprep.subr.mxu0 0.0
    %1262 = vmatpush2.msra.mxu0 0.0
    %1263 = vmatprep.subr.mxu0 0.0
    %1264 = vmatpush2.msra.mxu0 0.0
    %1265 = vmatprep.subr.mxu0 0.0
    %1266 = vmatpush2.msra.mxu0 0.0
    %1267 = vmatprep.subr.mxu0 0.0
    %1268 = vmatpush2.msra.mxu0 0.0
    %1269 = vmatprep.subr.mxu0 0.0
    %1270 = vmatpush2.msra.mxu0 0.0
    %1271 = vmatprep.subr.mxu0 0.0
    %1272 = vmatpush2.msra.mxu0 0.0
    %1273 = vmatprep.subr.mxu0 0.0
    %1274 = vmatpush2.msra.mxu0 0.0
    %1275 = vmatprep.subr.mxu0 0.0
    %1276 = vmatpush2.msra.mxu0 0.0
    %1277 = vmatprep.subr.mxu0 0.0
    %1278 = vmatpush2.msra.mxu0 0.0
    %1279 = vmatprep.mubr.f32.mxu0 0.0
    %v1280 = vand.u32 %v29, 4294901760
    %v1281 = vsub.f32 %v29, %v1280
    %v1282 = vand.u32 %v1281, 4294901760
    %1283 = vmatmul.mubr.f32.gmra.mxu0 %v1282
    %v1284 = vpop.f32.mrf.mxu0
    %v1285 = vadd.f32 %v1210, %v1284
    %v1286 = vpop.f32.mrf.mxu0
    %1287 = vdwg.mxu0
    %1288 = vmatprep.subr.mxu0 0.0
    %1289 = vmatpush1.msra.mxu0 0.0
    %1290 = vmatprep.subr.mxu0 0.0
    %1291 = vmatpush1.msra.mxu0 0.0
    %1292 = vmatprep.subr.mxu0 0.0
    %1293 = vmatpush1.msra.mxu0 0.0
    %1294 = vmatprep.subr.mxu0 0.0
    %1295 = vmatpush1.msra.mxu0 0.0
    %1296 = vmatprep.subr.mxu0 0.0
    %1297 = vmatpush1.msra.mxu0 0.0
    %1298 = vmatprep.subr.mxu0 0.0
    %1299 = vmatpush1.msra.mxu0 0.0
    %1300 = vmatprep.subr.mxu0 0.0
    %1301 = vmatpush1.msra.mxu0 0.0
    %1302 = vmatprep.subr.mxu0 0.0
    %1303 = vmatpush1.msra.mxu0 0.0
    %1304 = vmatprep.subr.mxu0 0.0
    %1305 = vmatpush1.msra.mxu0 0.0
    %1306 = vmatprep.subr.mxu0 0.0
    %1307 = vmatpush1.msra.mxu0 0.0
    %1308 = vmatprep.subr.mxu0 0.0
    %1309 = vmatpush1.msra.mxu0 0.0
    %1310 = vmatprep.subr.mxu0 0.0
    %1311 = vmatpush1.msra.mxu0 0.0
    %1312 = vmatprep.subr.mxu0 0.0
    %1313 = vmatpush1.msra.mxu0 0.0
    %1314 = vmatprep.subr.mxu0 0.0
    %1315 = vmatpush1.msra.mxu0 0.0
    %1316 = vmatprep.subr.mxu0 0.0
    %v1317 = vand.u32 %v21, 4294901760
    %v1318 = vsub.f32 %v21, %v1317
    %v1319 = vand.u32 %v1318, 4294901760
    %1320 = vmatpush1.msra.mxu0 %v1319
    %1321 = vmatprep.subr.mxu0 0.0
    %v1322 = vand.u32 %v20, 4294901760
    %v1323 = vsub.f32 %v20, %v1322
    %v1324 = vand.u32 %v1323, 4294901760
    %1325 = vmatpush1.msra.mxu0 %v1324
    %1326 = vmatprep.subr.mxu0 0.0
    %1327 = vmatpush2.msra.mxu0 0.0
    %1328 = vmatprep.subr.mxu0 0.0
    %1329 = vmatpush2.msra.mxu0 0.0
    %1330 = vmatprep.subr.mxu0 0.0
    %1331 = vmatpush2.msra.mxu0 0.0
    %1332 = vmatprep.subr.mxu0 0.0
    %1333 = vmatpush2.msra.mxu0 0.0
    %1334 = vmatprep.subr.mxu0 0.0
    %1335 = vmatpush2.msra.mxu0 0.0
    %1336 = vmatprep.subr.mxu0 0.0
    %1337 = vmatpush2.msra.mxu0 0.0
    %1338 = vmatprep.subr.mxu0 0.0
    %1339 = vmatpush2.msra.mxu0 0.0
    %1340 = vmatprep.subr.mxu0 0.0
    %1341 = vmatpush2.msra.mxu0 0.0
    %1342 = vmatprep.subr.mxu0 0.0
    %1343 = vmatpush2.msra.mxu0 0.0
    %1344 = vmatprep.subr.mxu0 0.0
    %1345 = vmatpush2.msra.mxu0 0.0
    %1346 = vmatprep.subr.mxu0 0.0
    %1347 = vmatpush2.msra.mxu0 0.0
    %1348 = vmatprep.subr.mxu0 0.0
    %1349 = vmatpush2.msra.mxu0 0.0
    %1350 = vmatprep.subr.mxu0 0.0
    %1351 = vmatpush2.msra.mxu0 0.0
    %1352 = vmatprep.subr.mxu0 0.0
    %1353 = vmatpush2.msra.mxu0 0.0
    %1354 = vmatprep.subr.mxu0 0.0
    %1355 = vmatpush2.msra.mxu0 0.0
    %1356 = vmatprep.subr.mxu0 0.0
    %1357 = vmatpush2.msra.mxu0 0.0
    %1358 = vmatprep.mubr.f32.mxu0 0.0
    %v1359 = vand.u32 %v29, 4294901760
    %1360 = vmatmul.mubr.f32.gmra.mxu0 %v1359
    %v1361 = vpop.f32.mrf.mxu0
    %v1362 = vadd.f32 %v1285, %v1361
    %v1363 = vpop.f32.mrf.mxu0
    %1364 = vdwg.mxu0
    %1365 = vmatprep.subr.mxu0 0.0
    %1366 = vmatpush1.msra.mxu0 0.0
    %1367 = vmatprep.subr.mxu0 0.0
    %1368 = vmatpush1.msra.mxu0 0.0
    %1369 = vmatprep.subr.mxu0 0.0
    %1370 = vmatpush1.msra.mxu0 0.0
    %1371 = vmatprep.subr.mxu0 0.0
    %1372 = vmatpush1.msra.mxu0 0.0
    %1373 = vmatprep.subr.mxu0 0.0
    %1374 = vmatpush1.msra.mxu0 0.0
    %1375 = vmatprep.subr.mxu0 0.0
    %1376 = vmatpush1.msra.mxu0 0.0
    %1377 = vmatprep.subr.mxu0 0.0
    %1378 = vmatpush1.msra.mxu0 0.0
    %1379 = vmatprep.subr.mxu0 0.0
    %1380 = vmatpush1.msra.mxu0 0.0
    %1381 = vmatprep.subr.mxu0 0.0
    %1382 = vmatpush1.msra.mxu0 0.0
    %1383 = vmatprep.subr.mxu0 0.0
    %1384 = vmatpush1.msra.mxu0 0.0
    %1385 = vmatprep.subr.mxu0 0.0
    %1386 = vmatpush1.msra.mxu0 0.0
    %1387 = vmatprep.subr.mxu0 0.0
    %1388 = vmatpush1.msra.mxu0 0.0
    %1389 = vmatprep.subr.mxu0 0.0
    %1390 = vmatpush1.msra.mxu0 0.0
    %1391 = vmatprep.subr.mxu0 0.0
    %1392 = vmatpush1.msra.mxu0 0.0
    %1393 = vmatprep.subr.mxu0 0.0
    %v1394 = vand.u32 %v21, 4294901760
    %1395 = vmatpush1.msra.mxu0 %v1394
    %1396 = vmatprep.subr.mxu0 0.0
    %v1397 = vand.u32 %v20, 4294901760
    %1398 = vmatpush1.msra.mxu0 %v1397
    %1399 = vmatprep.subr.mxu0 0.0
    %1400 = vmatpush2.msra.mxu0 0.0
    %1401 = vmatprep.subr.mxu0 0.0
    %1402 = vmatpush2.msra.mxu0 0.0
    %1403 = vmatprep.subr.mxu0 0.0
    %1404 = vmatpush2.msra.mxu0 0.0
    %1405 = vmatprep.subr.mxu0 0.0
    %1406 = vmatpush2.msra.mxu0 0.0
    %1407 = vmatprep.subr.mxu0 0.0
    %1408 = vmatpush2.msra.mxu0 0.0
    %1409 = vmatprep.subr.mxu0 0.0
    %1410 = vmatpush2.msra.mxu0 0.0
    %1411 = vmatprep.subr.mxu0 0.0
    %1412 = vmatpush2.msra.mxu0 0.0
    %1413 = vmatprep.subr.mxu0 0.0
    %1414 = vmatpush2.msra.mxu0 0.0
    %1415 = vmatprep.subr.mxu0 0.0
    %1416 = vmatpush2.msra.mxu0 0.0
    %1417 = vmatprep.subr.mxu0 0.0
    %1418 = vmatpush2.msra.mxu0 0.0
    %1419 = vmatprep.subr.mxu0 0.0
    %1420 = vmatpush2.msra.mxu0 0.0
    %1421 = vmatprep.subr.mxu0 0.0
    %1422 = vmatpush2.msra.mxu0 0.0
    %1423 = vmatprep.subr.mxu0 0.0
    %1424 = vmatpush2.msra.mxu0 0.0
    %1425 = vmatprep.subr.mxu0 0.0
    %1426 = vmatpush2.msra.mxu0 0.0
    %1427 = vmatprep.subr.mxu0 0.0
    %1428 = vmatpush2.msra.mxu0 0.0
    %1429 = vmatprep.subr.mxu0 0.0
    %1430 = vmatpush2.msra.mxu0 0.0
    %1431 = vmatprep.mubr.f32.mxu0 0.0
    %v1432 = vand.u32 %v29, 4294901760
    %1433 = vmatmul.mubr.f32.gmra.mxu0 %v1432
    %v1434 = vpop.f32.mrf.mxu0
    %v1435 = vadd.f32 %v1362, %v1434
    %v1436 = vpop.f32.mrf.mxu0
    %1437 = vdwg.mxu0
    %v1439 = vsel %vm490, %v1435, 0
    %1441 = vmatprep.subr.mxu0 0.0
    %1442 = vmatpush1.msra.mxu0 0.0
    %1443 = vmatprep.subr.mxu0 0.0
    %1444 = vmatpush1.msra.mxu0 0.0
    %1445 = vmatprep.subr.mxu0 0.0
    %1446 = vmatpush1.msra.mxu0 0.0
    %1447 = vmatprep.subr.mxu0 0.0
    %1448 = vmatpush1.msra.mxu0 0.0
    %1449 = vmatprep.subr.mxu0 0.0
    %1450 = vmatpush1.msra.mxu0 0.0
    %1451 = vmatprep.subr.mxu0 0.0
    %1452 = vmatpush1.msra.mxu0 0.0
    %1453 = vmatprep.subr.mxu0 0.0
    %1454 = vmatpush1.msra.mxu0 0.0
    %1455 = vmatprep.subr.mxu0 0.0
    %1456 = vmatpush1.msra.mxu0 0.0
    %1457 = vmatprep.subr.mxu0 0.0
    %1458 = vmatpush1.msra.mxu0 0.0
    %1459 = vmatprep.subr.mxu0 0.0
    %1460 = vmatpush1.msra.mxu0 0.0
    %1461 = vmatprep.subr.mxu0 0.0
    %1462 = vmatpush1.msra.mxu0 0.0
    %1463 = vmatprep.subr.mxu0 0.0
    %1464 = vmatpush1.msra.mxu0 0.0
    %1465 = vmatprep.subr.mxu0 0.0
    %v1466 = vand.u32 %v26, 4294901760
    %1467 = vmatpush1.msra.mxu0 %v1466
    %1468 = vmatprep.subr.mxu0 0.0
    %v1469 = vand.u32 %v25, 4294901760
    %1470 = vmatpush1.msra.mxu0 %v1469
    %1471 = vmatprep.subr.mxu0 0.0
    %v1472 = vand.u32 %v24, 4294901760
    %1473 = vmatpush1.msra.mxu0 %v1472
    %1474 = vmatprep.subr.mxu0 0.0
    %v1475 = vand.u32 %v23, 4294901760
    %1476 = vmatpush1.msra.mxu0 %v1475
    %1477 = vmatprep.subr.mxu0 0.0
    %1478 = vmatpush2.msra.mxu0 0.0
    %1479 = vmatprep.subr.mxu0 0.0
    %1480 = vmatpush2.msra.mxu0 0.0
    %1481 = vmatprep.subr.mxu0 0.0
    %1482 = vmatpush2.msra.mxu0 0.0
    %1483 = vmatprep.subr.mxu0 0.0
    %1484 = vmatpush2.msra.mxu0 0.0
    %1485 = vmatprep.subr.mxu0 0.0
    %1486 = vmatpush2.msra.mxu0 0.0
    %1487 = vmatprep.subr.mxu0 0.0
    %1488 = vmatpush2.msra.mxu0 0.0
    %1489 = vmatprep.subr.mxu0 0.0
    %1490 = vmatpush2.msra.mxu0 0.0
    %1491 = vmatprep.subr.mxu0 0.0
    %1492 = vmatpush2.msra.mxu0 0.0
    %1493 = vmatprep.subr.mxu0 0.0
    %1494 = vmatpush2.msra.mxu0 0.0
    %1495 = vmatprep.subr.mxu0 0.0
    %1496 = vmatpush2.msra.mxu0 0.0
    %1497 = vmatprep.subr.mxu0 0.0
    %1498 = vmatpush2.msra.mxu0 0.0
    %1499 = vmatprep.subr.mxu0 0.0
    %1500 = vmatpush2.msra.mxu0 0.0
    %1501 = vmatprep.subr.mxu0 0.0
    %1502 = vmatpush2.msra.mxu0 0.0
    %1503 = vmatprep.subr.mxu0 0.0
    %1504 = vmatpush2.msra.mxu0 0.0
    %1505 = vmatprep.subr.mxu0 0.0
    %1506 = vmatpush2.msra.mxu0 0.0
    %1507 = vmatprep.subr.mxu0 0.0
    %1508 = vmatpush2.msra.mxu0 0.0
    %1509 = vmatprep.mubr.f32.mxu0 0.0
    %v1510 = vand.u32 %v1439, 4294901760
    %v1511 = vsub.f32 %v1439, %v1510
    %v1512 = vand.u32 %v1511, 4294901760
    %v1513 = vsub.f32 %v1511, %v1512
    %v1514 = vand.u32 %v1513, 4294901760
    %1515 = vmatmul.mubr.f32.gmra.mxu0 %v1514
    %v1516 = vpop.f32.mrf.mxu0
    %v1517 = vadd.f32 0.0, %v1516
    %v1518 = vpop.f32.mrf.mxu0
    %1519 = vdwg.mxu0
    %1520 = vmatprep.subr.mxu0 0.0
    %1521 = vmatpush1.msra.mxu0 0.0
    %1522 = vmatprep.subr.mxu0 0.0
    %1523 = vmatpush1.msra.mxu0 0.0
    %1524 = vmatprep.subr.mxu0 0.0
    %1525 = vmatpush1.msra.mxu0 0.0
    %1526 = vmatprep.subr.mxu0 0.0
    %1527 = vmatpush1.msra.mxu0 0.0
    %1528 = vmatprep.subr.mxu0 0.0
    %1529 = vmatpush1.msra.mxu0 0.0
    %1530 = vmatprep.subr.mxu0 0.0
    %1531 = vmatpush1.msra.mxu0 0.0
    %1532 = vmatprep.subr.mxu0 0.0
    %1533 = vmatpush1.msra.mxu0 0.0
    %1534 = vmatprep.subr.mxu0 0.0
    %1535 = vmatpush1.msra.mxu0 0.0
    %1536 = vmatprep.subr.mxu0 0.0
    %1537 = vmatpush1.msra.mxu0 0.0
    %1538 = vmatprep.subr.mxu0 0.0
    %1539 = vmatpush1.msra.mxu0 0.0
    %1540 = vmatprep.subr.mxu0 0.0
    %1541 = vmatpush1.msra.mxu0 0.0
    %1542 = vmatprep.subr.mxu0 0.0
    %1543 = vmatpush1.msra.mxu0 0.0
    %1544 = vmatprep.subr.mxu0 0.0
    %v1545 = vand.u32 %v26, 4294901760
    %v1546 = vsub.f32 %v26, %v1545
    %v1547 = vand.u32 %v1546, 4294901760
    %v1548 = vsub.f32 %v1546, %v1547
    %v1549 = vand.u32 %v1548, 4294901760
    %1550 = vmatpush1.msra.mxu0 %v1549
    %1551 = vmatprep.subr.mxu0 0.0
    %v1552 = vand.u32 %v25, 4294901760
    %v1553 = vsub.f32 %v25, %v1552
    %v1554 = vand.u32 %v1553, 4294901760
    %v1555 = vsub.f32 %v1553, %v1554
    %v1556 = vand.u32 %v1555, 4294901760
    %1557 = vmatpush1.msra.mxu0 %v1556
    %1558 = vmatprep.subr.mxu0 0.0
    %v1559 = vand.u32 %v24, 4294901760
    %v1560 = vsub.f32 %v24, %v1559
    %v1561 = vand.u32 %v1560, 4294901760
    %v1562 = vsub.f32 %v1560, %v1561
    %v1563 = vand.u32 %v1562, 4294901760
    %1564 = vmatpush1.msra.mxu0 %v1563
    %1565 = vmatprep.subr.mxu0 0.0
    %v1566 = vand.u32 %v23, 4294901760
    %v1567 = vsub.f32 %v23, %v1566
    %v1568 = vand.u32 %v1567, 4294901760
    %v1569 = vsub.f32 %v1567, %v1568
    %v1570 = vand.u32 %v1569, 4294901760
    %1571 = vmatpush1.msra.mxu0 %v1570
    %1572 = vmatprep.subr.mxu0 0.0
    %1573 = vmatpush2.msra.mxu0 0.0
    %1574 = vmatprep.subr.mxu0 0.0
    %1575 = vmatpush2.msra.mxu0 0.0
    %1576 = vmatprep.subr.mxu0 0.0
    %1577 = vmatpush2.msra.mxu0 0.0
    %1578 = vmatprep.subr.mxu0 0.0
    %1579 = vmatpush2.msra.mxu0 0.0
    %1580 = vmatprep.subr.mxu0 0.0
    %1581 = vmatpush2.msra.mxu0 0.0
    %1582 = vmatprep.subr.mxu0 0.0
    %1583 = vmatpush2.msra.mxu0 0.0
    %1584 = vmatprep.subr.mxu0 0.0
    %1585 = vmatpush2.msra.mxu0 0.0
    %1586 = vmatprep.subr.mxu0 0.0
    %1587 = vmatpush2.msra.mxu0 0.0
    %1588 = vmatprep.subr.mxu0 0.0
    %1589 = vmatpush2.msra.mxu0 0.0
    %1590 = vmatprep.subr.mxu0 0.0
    %1591 = vmatpush2.msra.mxu0 0.0
    %1592 = vmatprep.subr.mxu0 0.0
    %1593 = vmatpush2.msra.mxu0 0.0
    %1594 = vmatprep.subr.mxu0 0.0
    %1595 = vmatpush2.msra.mxu0 0.0
    %1596 = vmatprep.subr.mxu0 0.0
    %1597 = vmatpush2.msra.mxu0 0.0
    %1598 = vmatprep.subr.mxu0 0.0
    %1599 = vmatpush2.msra.mxu0 0.0
    %1600 = vmatprep.subr.mxu0 0.0
    %1601 = vmatpush2.msra.mxu0 0.0
    %1602 = vmatprep.subr.mxu0 0.0
    %1603 = vmatpush2.msra.mxu0 0.0
    %1604 = vmatprep.mubr.f32.mxu0 0.0
    %v1605 = vand.u32 %v1439, 4294901760
    %1606 = vmatmul.mubr.f32.gmra.mxu0 %v1605
    %v1607 = vpop.f32.mrf.mxu0
    %v1608 = vadd.f32 %v1517, %v1607
    %v1609 = vpop.f32.mrf.mxu0
    %1610 = vdwg.mxu0
    %1611 = vmatprep.subr.mxu0 0.0
    %1612 = vmatpush1.msra.mxu0 0.0
    %1613 = vmatprep.subr.mxu0 0.0
    %1614 = vmatpush1.msra.mxu0 0.0
    %1615 = vmatprep.subr.mxu0 0.0
    %1616 = vmatpush1.msra.mxu0 0.0
    %1617 = vmatprep.subr.mxu0 0.0
    %1618 = vmatpush1.msra.mxu0 0.0
    %1619 = vmatprep.subr.mxu0 0.0
    %1620 = vmatpush1.msra.mxu0 0.0
    %1621 = vmatprep.subr.mxu0 0.0
    %1622 = vmatpush1.msra.mxu0 0.0
    %1623 = vmatprep.subr.mxu0 0.0
    %1624 = vmatpush1.msra.mxu0 0.0
    %1625 = vmatprep.subr.mxu0 0.0
    %1626 = vmatpush1.msra.mxu0 0.0
    %1627 = vmatprep.subr.mxu0 0.0
    %1628 = vmatpush1.msra.mxu0 0.0
    %1629 = vmatprep.subr.mxu0 0.0
    %1630 = vmatpush1.msra.mxu0 0.0
    %1631 = vmatprep.subr.mxu0 0.0
    %1632 = vmatpush1.msra.mxu0 0.0
    %1633 = vmatprep.subr.mxu0 0.0
    %1634 = vmatpush1.msra.mxu0 0.0
    %1635 = vmatprep.subr.mxu0 0.0
    %v1636 = vand.u32 %v26, 4294901760
    %v1637 = vsub.f32 %v26, %v1636
    %1638 = vmatpush1.msra.mxu0 %v1637
    %1639 = vmatprep.subr.mxu0 0.0
    %v1640 = vand.u32 %v25, 4294901760
    %v1641 = vsub.f32 %v25, %v1640
    %1642 = vmatpush1.msra.mxu0 %v1641
    %1643 = vmatprep.subr.mxu0 0.0
    %v1644 = vand.u32 %v24, 4294901760
    %v1645 = vsub.f32 %v24, %v1644
    %1646 = vmatpush1.msra.mxu0 %v1645
    %1647 = vmatprep.subr.mxu0 0.0
    %v1648 = vand.u32 %v23, 4294901760
    %v1649 = vsub.f32 %v23, %v1648
    %1650 = vmatpush1.msra.mxu0 %v1649
    %1651 = vmatprep.subr.mxu0 0.0
    %1652 = vmatpush2.msra.mxu0 0.0
    %1653 = vmatprep.subr.mxu0 0.0
    %1654 = vmatpush2.msra.mxu0 0.0
    %1655 = vmatprep.subr.mxu0 0.0
    %1656 = vmatpush2.msra.mxu0 0.0
    %1657 = vmatprep.subr.mxu0 0.0
    %1658 = vmatpush2.msra.mxu0 0.0
    %1659 = vmatprep.subr.mxu0 0.0
    %1660 = vmatpush2.msra.mxu0 0.0
    %1661 = vmatprep.subr.mxu0 0.0
    %1662 = vmatpush2.msra.mxu0 0.0
    %1663 = vmatprep.subr.mxu0 0.0
    %1664 = vmatpush2.msra.mxu0 0.0
    %1665 = vmatprep.subr.mxu0 0.0
    %1666 = vmatpush2.msra.mxu0 0.0
    %1667 = vmatprep.subr.mxu0 0.0
    %1668 = vmatpush2.msra.mxu0 0.0
    %1669 = vmatprep.subr.mxu0 0.0
    %1670 = vmatpush2.msra.mxu0 0.0
    %1671 = vmatprep.subr.mxu0 0.0
    %1672 = vmatpush2.msra.mxu0 0.0
    %1673 = vmatprep.subr.mxu0 0.0
    %1674 = vmatpush2.msra.mxu0 0.0
    %1675 = vmatprep.subr.mxu0 0.0
    %1676 = vmatpush2.msra.mxu0 0.0
    %1677 = vmatprep.subr.mxu0 0.0
    %1678 = vmatpush2.msra.mxu0 0.0
    %1679 = vmatprep.subr.mxu0 0.0
    %1680 = vmatpush2.msra.mxu0 0.0
    %1681 = vmatprep.subr.mxu0 0.0
    %1682 = vmatpush2.msra.mxu0 0.0
    %1683 = vmatprep.mubr.f32.mxu0 0.0
    %v1684 = vand.u32 %v1439, 4294901760
    %v1685 = vsub.f32 %v1439, %v1684
    %1686 = vmatmul.mubr.f32.gmra.mxu0 %v1685
    %v1687 = vpop.f32.mrf.mxu0
    %v1688 = vadd.f32 %v1608, %v1687
    %v1689 = vpop.f32.mrf.mxu0
    %1690 = vdwg.mxu0
    %1691 = vmatprep.subr.mxu0 0.0
    %1692 = vmatpush1.msra.mxu0 0.0
    %1693 = vmatprep.subr.mxu0 0.0
    %1694 = vmatpush1.msra.mxu0 0.0
    %1695 = vmatprep.subr.mxu0 0.0
    %1696 = vmatpush1.msra.mxu0 0.0
    %1697 = vmatprep.subr.mxu0 0.0
    %1698 = vmatpush1.msra.mxu0 0.0
    %1699 = vmatprep.subr.mxu0 0.0
    %1700 = vmatpush1.msra.mxu0 0.0
    %1701 = vmatprep.subr.mxu0 0.0
    %1702 = vmatpush1.msra.mxu0 0.0
    %1703 = vmatprep.subr.mxu0 0.0
    %1704 = vmatpush1.msra.mxu0 0.0
    %1705 = vmatprep.subr.mxu0 0.0
    %1706 = vmatpush1.msra.mxu0 0.0
    %1707 = vmatprep.subr.mxu0 0.0
    %1708 = vmatpush1.msra.mxu0 0.0
    %1709 = vmatprep.subr.mxu0 0.0
    %1710 = vmatpush1.msra.mxu0 0.0
    %1711 = vmatprep.subr.mxu0 0.0
    %1712 = vmatpush1.msra.mxu0 0.0
    %1713 = vmatprep.subr.mxu0 0.0
    %1714 = vmatpush1.msra.mxu0 0.0
    %1715 = vmatprep.subr.mxu0 0.0
    %v1716 = vand.u32 %v26, 4294901760
    %1717 = vmatpush1.msra.mxu0 %v1716
    %1718 = vmatprep.subr.mxu0 0.0
    %v1719 = vand.u32 %v25, 4294901760
    %1720 = vmatpush1.msra.mxu0 %v1719
    %1721 = vmatprep.subr.mxu0 0.0
    %v1722 = vand.u32 %v24, 4294901760
    %1723 = vmatpush1.msra.mxu0 %v1722
    %1724 = vmatprep.subr.mxu0 0.0
    %v1725 = vand.u32 %v23, 4294901760
    %1726 = vmatpush1.msra.mxu0 %v1725
    %1727 = vmatprep.subr.mxu0 0.0
    %1728 = vmatpush2.msra.mxu0 0.0
    %1729 = vmatprep.subr.mxu0 0.0
    %1730 = vmatpush2.msra.mxu0 0.0
    %1731 = vmatprep.subr.mxu0 0.0
    %1732 = vmatpush2.msra.mxu0 0.0
    %1733 = vmatprep.subr.mxu0 0.0
    %1734 = vmatpush2.msra.mxu0 0.0
    %1735 = vmatprep.subr.mxu0 0.0
    %1736 = vmatpush2.msra.mxu0 0.0
    %1737 = vmatprep.subr.mxu0 0.0
    %1738 = vmatpush2.msra.mxu0 0.0
    %1739 = vmatprep.subr.mxu0 0.0
    %1740 = vmatpush2.msra.mxu0 0.0
    %1741 = vmatprep.subr.mxu0 0.0
    %1742 = vmatpush2.msra.mxu0 0.0
    %1743 = vmatprep.subr.mxu0 0.0
    %1744 = vmatpush2.msra.mxu0 0.0
    %1745 = vmatprep.subr.mxu0 0.0
    %1746 = vmatpush2.msra.mxu0 0.0
    %1747 = vmatprep.subr.mxu0 0.0
    %1748 = vmatpush2.msra.mxu0 0.0
    %1749 = vmatprep.subr.mxu0 0.0
    %1750 = vmatpush2.msra.mxu0 0.0
    %1751 = vmatprep.subr.mxu0 0.0
    %1752 = vmatpush2.msra.mxu0 0.0
    %1753 = vmatprep.subr.mxu0 0.0
    %1754 = vmatpush2.msra.mxu0 0.0
    %1755 = vmatprep.subr.mxu0 0.0
    %1756 = vmatpush2.msra.mxu0 0.0
    %1757 = vmatprep.subr.mxu0 0.0
    %1758 = vmatpush2.msra.mxu0 0.0
    %1759 = vmatprep.mubr.f32.mxu0 0.0
    %v1760 = vand.u32 %v1439, 4294901760
    %v1761 = vsub.f32 %v1439, %v1760
    %v1762 = vand.u32 %v1761, 4294901760
    %1763 = vmatmul.mubr.f32.gmra.mxu0 %v1762
    %v1764 = vpop.f32.mrf.mxu0
    %v1765 = vadd.f32 %v1688, %v1764
    %v1766 = vpop.f32.mrf.mxu0
    %1767 = vdwg.mxu0
    %1768 = vmatprep.subr.mxu0 0.0
    %1769 = vmatpush1.msra.mxu0 0.0
    %1770 = vmatprep.subr.mxu0 0.0
    %1771 = vmatpush1.msra.mxu0 0.0
    %1772 = vmatprep.subr.mxu0 0.0
    %1773 = vmatpush1.msra.mxu0 0.0
    %1774 = vmatprep.subr.mxu0 0.0
    %1775 = vmatpush1.msra.mxu0 0.0
    %1776 = vmatprep.subr.mxu0 0.0
    %1777 = vmatpush1.msra.mxu0 0.0
    %1778 = vmatprep.subr.mxu0 0.0
    %1779 = vmatpush1.msra.mxu0 0.0
    %1780 = vmatprep.subr.mxu0 0.0
    %1781 = vmatpush1.msra.mxu0 0.0
    %1782 = vmatprep.subr.mxu0 0.0
    %1783 = vmatpush1.msra.mxu0 0.0
    %1784 = vmatprep.subr.mxu0 0.0
    %1785 = vmatpush1.msra.mxu0 0.0
    %1786 = vmatprep.subr.mxu0 0.0
    %1787 = vmatpush1.msra.mxu0 0.0
    %1788 = vmatprep.subr.mxu0 0.0
    %1789 = vmatpush1.msra.mxu0 0.0
    %1790 = vmatprep.subr.mxu0 0.0
    %1791 = vmatpush1.msra.mxu0 0.0
    %1792 = vmatprep.subr.mxu0 0.0
    %v1793 = vand.u32 %v26, 4294901760
    %v1794 = vsub.f32 %v26, %v1793
    %v1795 = vand.u32 %v1794, 4294901760
    %1796 = vmatpush1.msra.mxu0 %v1795
    %1797 = vmatprep.subr.mxu0 0.0
    %v1798 = vand.u32 %v25, 4294901760
    %v1799 = vsub.f32 %v25, %v1798
    %v1800 = vand.u32 %v1799, 4294901760
    %1801 = vmatpush1.msra.mxu0 %v1800
    %1802 = vmatprep.subr.mxu0 0.0
    %v1803 = vand.u32 %v24, 4294901760
    %v1804 = vsub.f32 %v24, %v1803
    %v1805 = vand.u32 %v1804, 4294901760
    %1806 = vmatpush1.msra.mxu0 %v1805
    %1807 = vmatprep.subr.mxu0 0.0
    %v1808 = vand.u32 %v23, 4294901760
    %v1809 = vsub.f32 %v23, %v1808
    %v1810 = vand.u32 %v1809, 4294901760
    %1811 = vmatpush1.msra.mxu0 %v1810
    %1812 = vmatprep.subr.mxu0 0.0
    %1813 = vmatpush2.msra.mxu0 0.0
    %1814 = vmatprep.subr.mxu0 0.0
    %1815 = vmatpush2.msra.mxu0 0.0
    %1816 = vmatprep.subr.mxu0 0.0
    %1817 = vmatpush2.msra.mxu0 0.0
    %1818 = vmatprep.subr.mxu0 0.0
    %1819 = vmatpush2.msra.mxu0 0.0
    %1820 = vmatprep.subr.mxu0 0.0
    %1821 = vmatpush2.msra.mxu0 0.0
    %1822 = vmatprep.subr.mxu0 0.0
    %1823 = vmatpush2.msra.mxu0 0.0
    %1824 = vmatprep.subr.mxu0 0.0
    %1825 = vmatpush2.msra.mxu0 0.0
    %1826 = vmatprep.subr.mxu0 0.0
    %1827 = vmatpush2.msra.mxu0 0.0
    %1828 = vmatprep.subr.mxu0 0.0
    %1829 = vmatpush2.msra.mxu0 0.0
    %1830 = vmatprep.subr.mxu0 0.0
    %1831 = vmatpush2.msra.mxu0 0.0
    %1832 = vmatprep.subr.mxu0 0.0
    %1833 = vmatpush2.msra.mxu0 0.0
    %1834 = vmatprep.subr.mxu0 0.0
    %1835 = vmatpush2.msra.mxu0 0.0
    %1836 = vmatprep.subr.mxu0 0.0
    %1837 = vmatpush2.msra.mxu0 0.0
    %1838 = vmatprep.subr.mxu0 0.0
    %1839 = vmatpush2.msra.mxu0 0.0
    %1840 = vmatprep.subr.mxu0 0.0
    %1841 = vmatpush2.msra.mxu0 0.0
    %1842 = vmatprep.subr.mxu0 0.0
    %1843 = vmatpush2.msra.mxu0 0.0
    %1844 = vmatprep.mubr.f32.mxu0 0.0
    %v1845 = vand.u32 %v1439, 4294901760
    %1846 = vmatmul.mubr.f32.gmra.mxu0 %v1845
    %v1847 = vpop.f32.mrf.mxu0
    %v1848 = vadd.f32 %v1765, %v1847
    %v1849 = vpop.f32.mrf.mxu0
    %1850 = vdwg.mxu0
    %1851 = vmatprep.subr.mxu0 0.0
    %1852 = vmatpush1.msra.mxu0 0.0
    %1853 = vmatprep.subr.mxu0 0.0
    %1854 = vmatpush1.msra.mxu0 0.0
    %1855 = vmatprep.subr.mxu0 0.0
    %1856 = vmatpush1.msra.mxu0 0.0
    %1857 = vmatprep.subr.mxu0 0.0
    %1858 = vmatpush1.msra.mxu0 0.0
    %1859 = vmatprep.subr.mxu0 0.0
    %1860 = vmatpush1.msra.mxu0 0.0
    %1861 = vmatprep.subr.mxu0 0.0
    %1862 = vmatpush1.msra.mxu0 0.0
    %1863 = vmatprep.subr.mxu0 0.0
    %1864 = vmatpush1.msra.mxu0 0.0
    %1865 = vmatprep.subr.mxu0 0.0
    %1866 = vmatpush1.msra.mxu0 0.0
    %1867 = vmatprep.subr.mxu0 0.0
    %1868 = vmatpush1.msra.mxu0 0.0
    %1869 = vmatprep.subr.mxu0 0.0
    %1870 = vmatpush1.msra.mxu0 0.0
    %1871 = vmatprep.subr.mxu0 0.0
    %1872 = vmatpush1.msra.mxu0 0.0
    %1873 = vmatprep.subr.mxu0 0.0
    %1874 = vmatpush1.msra.mxu0 0.0
    %1875 = vmatprep.subr.mxu0 0.0
    %v1876 = vand.u32 %v26, 4294901760
    %1877 = vmatpush1.msra.mxu0 %v1876
    %1878 = vmatprep.subr.mxu0 0.0
    %v1879 = vand.u32 %v25, 4294901760
    %1880 = vmatpush1.msra.mxu0 %v1879
    %1881 = vmatprep.subr.mxu0 0.0
    %v1882 = vand.u32 %v24, 4294901760
    %1883 = vmatpush1.msra.mxu0 %v1882
    %1884 = vmatprep.subr.mxu0 0.0
    %v1885 = vand.u32 %v23, 4294901760
    %1886 = vmatpush1.msra.mxu0 %v1885
    %1887 = vmatprep.subr.mxu0 0.0
    %1888 = vmatpush2.msra.mxu0 0.0
    %1889 = vmatprep.subr.mxu0 0.0
    %1890 = vmatpush2.msra.mxu0 0.0
    %1891 = vmatprep.subr.mxu0 0.0
    %1892 = vmatpush2.msra.mxu0 0.0
    %1893 = vmatprep.subr.mxu0 0.0
    %1894 = vmatpush2.msra.mxu0 0.0
    %1895 = vmatprep.subr.mxu0 0.0
    %1896 = vmatpush2.msra.mxu0 0.0
    %1897 = vmatprep.subr.mxu0 0.0
    %1898 = vmatpush2.msra.mxu0 0.0
    %1899 = vmatprep.subr.mxu0 0.0
    %1900 = vmatpush2.msra.mxu0 0.0
    %1901 = vmatprep.subr.mxu0 0.0
    %1902 = vmatpush2.msra.mxu0 0.0
    %1903 = vmatprep.subr.mxu0 0.0
    %1904 = vmatpush2.msra.mxu0 0.0
    %1905 = vmatprep.subr.mxu0 0.0
    %1906 = vmatpush2.msra.mxu0 0.0
    %1907 = vmatprep.subr.mxu0 0.0
    %1908 = vmatpush2.msra.mxu0 0.0
    %1909 = vmatprep.subr.mxu0 0.0
    %1910 = vmatpush2.msra.mxu0 0.0
    %1911 = vmatprep.subr.mxu0 0.0
    %1912 = vmatpush2.msra.mxu0 0.0
    %1913 = vmatprep.subr.mxu0 0.0
    %1914 = vmatpush2.msra.mxu0 0.0
    %1915 = vmatprep.subr.mxu0 0.0
    %1916 = vmatpush2.msra.mxu0 0.0
    %1917 = vmatprep.subr.mxu0 0.0
    %1918 = vmatpush2.msra.mxu0 0.0
    %1919 = vmatprep.mubr.f32.mxu0 0.0
    %v1920 = vand.u32 %v1439, 4294901760
    %1921 = vmatmul.mubr.f32.gmra.mxu0 %v1920
    %v1922 = vpop.f32.mrf.mxu0
    %v1923 = vadd.f32 %v1848, %v1922
    %v1924 = vpop.f32.mrf.mxu0
    %1925 = vdwg.mxu0
    %v1926 = vmul.f32 %v18, %v18
    %v1927 = vmul.f32 %v19, %v19
    %1928 = vmatprep.subr.mxu0 0.0
    %1929 = vmatpush1.msra.mxu0 0.0
    %1930 = vmatprep.subr.mxu0 0.0
    %1931 = vmatpush1.msra.mxu0 0.0
    %1932 = vmatprep.subr.mxu0 0.0
    %1933 = vmatpush1.msra.mxu0 0.0
    %1934 = vmatprep.subr.mxu0 0.0
    %1935 = vmatpush1.msra.mxu0 0.0
    %1936 = vmatprep.subr.mxu0 0.0
    %1937 = vmatpush1.msra.mxu0 0.0
    %1938 = vmatprep.subr.mxu0 0.0
    %1939 = vmatpush1.msra.mxu0 0.0
    %1940 = vmatprep.subr.mxu0 0.0
    %1941 = vmatpush1.msra.mxu0 0.0
    %1942 = vmatprep.subr.mxu0 0.0
    %1943 = vmatpush1.msra.mxu0 0.0
    %1944 = vmatprep.subr.mxu0 0.0
    %1945 = vmatpush1.msra.mxu0 0.0
    %1946 = vmatprep.subr.mxu0 0.0
    %1947 = vmatpush1.msra.mxu0 0.0
    %1948 = vmatprep.subr.mxu0 0.0
    %1949 = vmatpush1.msra.mxu0 0.0
    %1950 = vmatprep.subr.mxu0 0.0
    %1951 = vmatpush1.msra.mxu0 0.0
    %1952 = vmatprep.subr.mxu0 0.0
    %1953 = vmatpush1.msra.mxu0 0.0
    %1954 = vmatprep.subr.mxu0 0.0
    %1955 = vmatpush1.msra.mxu0 0.0
    %1956 = vmatprep.subr.mxu0 0.0
    %v1957 = vand.u32 %v1927, 4294901760
    %1958 = vmatpush1.msra.mxu0 %v1957
    %1959 = vmatprep.subr.mxu0 0.0
    %v1960 = vand.u32 %v1926, 4294901760
    %1961 = vmatpush1.msra.mxu0 %v1960
    %1962 = vmatprep.subr.mxu0 0.0
    %1963 = vmatpush2.msra.mxu0 0.0
    %1964 = vmatprep.subr.mxu0 0.0
    %1965 = vmatpush2.msra.mxu0 0.0
    %1966 = vmatprep.subr.mxu0 0.0
    %1967 = vmatpush2.msra.mxu0 0.0
    %1968 = vmatprep.subr.mxu0 0.0
    %1969 = vmatpush2.msra.mxu0 0.0
    %1970 = vmatprep.subr.mxu0 0.0
    %1971 = vmatpush2.msra.mxu0 0.0
    %1972 = vmatprep.subr.mxu0 0.0
    %1973 = vmatpush2.msra.mxu0 0.0
    %1974 = vmatprep.subr.mxu0 0.0
    %1975 = vmatpush2.msra.mxu0 0.0
    %1976 = vmatprep.subr.mxu0 0.0
    %1977 = vmatpush2.msra.mxu0 0.0
    %1978 = vmatprep.subr.mxu0 0.0
    %1979 = vmatpush2.msra.mxu0 0.0
    %1980 = vmatprep.subr.mxu0 0.0
    %1981 = vmatpush2.msra.mxu0 0.0
    %1982 = vmatprep.subr.mxu0 0.0
    %1983 = vmatpush2.msra.mxu0 0.0
    %1984 = vmatprep.subr.mxu0 0.0
    %1985 = vmatpush2.msra.mxu0 0.0
    %1986 = vmatprep.subr.mxu0 0.0
    %1987 = vmatpush2.msra.mxu0 0.0
    %1988 = vmatprep.subr.mxu0 0.0
    %1989 = vmatpush2.msra.mxu0 0.0
    %1990 = vmatprep.subr.mxu0 0.0
    %1991 = vmatpush2.msra.mxu0 0.0
    %1992 = vmatprep.subr.mxu0 0.0
    %1993 = vmatpush2.msra.mxu0 0.0
    %1994 = vmatprep.mubr.f32.mxu0 0.0
    %v1995 = vand.u32 %v29, 4294901760
    %v1996 = vsub.f32 %v29, %v1995
    %v1997 = vand.u32 %v1996, 4294901760
    %v1998 = vsub.f32 %v1996, %v1997
    %v1999 = vand.u32 %v1998, 4294901760
    %2000 = vmatmul.mubr.f32.gmra.mxu0 %v1999
    %v2001 = vpop.f32.mrf.mxu0
    %v2002 = vadd.f32 0.0, %v2001
    %v2003 = vpop.f32.mrf.mxu0
    %2004 = vdwg.mxu0
    %2005 = vmatprep.subr.mxu0 0.0
    %2006 = vmatpush1.msra.mxu0 0.0
    %2007 = vmatprep.subr.mxu0 0.0
    %2008 = vmatpush1.msra.mxu0 0.0
    %2009 = vmatprep.subr.mxu0 0.0
    %2010 = vmatpush1.msra.mxu0 0.0
    %2011 = vmatprep.subr.mxu0 0.0
    %2012 = vmatpush1.msra.mxu0 0.0
    %2013 = vmatprep.subr.mxu0 0.0
    %2014 = vmatpush1.msra.mxu0 0.0
    %2015 = vmatprep.subr.mxu0 0.0
    %2016 = vmatpush1.msra.mxu0 0.0
    %2017 = vmatprep.subr.mxu0 0.0
    %2018 = vmatpush1.msra.mxu0 0.0
    %2019 = vmatprep.subr.mxu0 0.0
    %2020 = vmatpush1.msra.mxu0 0.0
    %2021 = vmatprep.subr.mxu0 0.0
    %2022 = vmatpush1.msra.mxu0 0.0
    %2023 = vmatprep.subr.mxu0 0.0
    %2024 = vmatpush1.msra.mxu0 0.0
    %2025 = vmatprep.subr.mxu0 0.0
    %2026 = vmatpush1.msra.mxu0 0.0
    %2027 = vmatprep.subr.mxu0 0.0
    %2028 = vmatpush1.msra.mxu0 0.0
    %2029 = vmatprep.subr.mxu0 0.0
    %2030 = vmatpush1.msra.mxu0 0.0
    %2031 = vmatprep.subr.mxu0 0.0
    %2032 = vmatpush1.msra.mxu0 0.0
    %2033 = vmatprep.subr.mxu0 0.0
    %v2034 = vand.u32 %v1927, 4294901760
    %v2035 = vsub.f32 %v1927, %v2034
    %v2036 = vand.u32 %v2035, 4294901760
    %v2037 = vsub.f32 %v2035, %v2036
    %v2038 = vand.u32 %v2037, 4294901760
    %2039 = vmatpush1.msra.mxu0 %v2038
    %2040 = vmatprep.subr.mxu0 0.0
    %v2041 = vand.u32 %v1926, 4294901760
    %v2042 = vsub.f32 %v1926, %v2041
    %v2043 = vand.u32 %v2042, 4294901760
    %v2044 = vsub.f32 %v2042, %v2043
    %v2045 = vand.u32 %v2044, 4294901760
    %2046 = vmatpush1.msra.mxu0 %v2045
    %2047 = vmatprep.subr.mxu0 0.0
    %2048 = vmatpush2.msra.mxu0 0.0
    %2049 = vmatprep.subr.mxu0 0.0
    %2050 = vmatpush2.msra.mxu0 0.0
    %2051 = vmatprep.subr.mxu0 0.0
    %2052 = vmatpush2.msra.mxu0 0.0
    %2053 = vmatprep.subr.mxu0 0.0
    %2054 = vmatpush2.msra.mxu0 0.0
    %2055 = vmatprep.subr.mxu0 0.0
    %2056 = vmatpush2.msra.mxu0 0.0
    %2057 = vmatprep.subr.mxu0 0.0
    %2058 = vmatpush2.msra.mxu0 0.0
    %2059 = vmatprep.subr.mxu0 0.0
    %2060 = vmatpush2.msra.mxu0 0.0
    %2061 = vmatprep.subr.mxu0 0.0
    %2062 = vmatpush2.msra.mxu0 0.0
    %2063 = vmatprep.subr.mxu0 0.0
    %2064 = vmatpush2.msra.mxu0 0.0
    %2065 = vmatprep.subr.mxu0 0.0
    %2066 = vmatpush2.msra.mxu0 0.0
    %2067 = vmatprep.subr.mxu0 0.0
    %2068 = vmatpush2.msra.mxu0 0.0
    %2069 = vmatprep.subr.mxu0 0.0
    %2070 = vmatpush2.msra.mxu0 0.0
    %2071 = vmatprep.subr.mxu0 0.0
    %2072 = vmatpush2.msra.mxu0 0.0
    %2073 = vmatprep.subr.mxu0 0.0
    %2074 = vmatpush2.msra.mxu0 0.0
    %2075 = vmatprep.subr.mxu0 0.0
    %2076 = vmatpush2.msra.mxu0 0.0
    %2077 = vmatprep.subr.mxu0 0.0
    %2078 = vmatpush2.msra.mxu0 0.0
    %2079 = vmatprep.mubr.f32.mxu0 0.0
    %v2080 = vand.u32 %v29, 4294901760
    %2081 = vmatmul.mubr.f32.gmra.mxu0 %v2080
    %v2082 = vpop.f32.mrf.mxu0
    %v2083 = vadd.f32 %v2002, %v2082
    %v2084 = vpop.f32.mrf.mxu0
    %2085 = vdwg.mxu0
    %2086 = vmatprep.subr.mxu0 0.0
    %2087 = vmatpush1.msra.mxu0 0.0
    %2088 = vmatprep.subr.mxu0 0.0
    %2089 = vmatpush1.msra.mxu0 0.0
    %2090 = vmatprep.subr.mxu0 0.0
    %2091 = vmatpush1.msra.mxu0 0.0
    %2092 = vmatprep.subr.mxu0 0.0
    %2093 = vmatpush1.msra.mxu0 0.0
    %2094 = vmatprep.subr.mxu0 0.0
    %2095 = vmatpush1.msra.mxu0 0.0
    %2096 = vmatprep.subr.mxu0 0.0
    %2097 = vmatpush1.msra.mxu0 0.0
    %2098 = vmatprep.subr.mxu0 0.0
    %2099 = vmatpush1.msra.mxu0 0.0
    %2100 = vmatprep.subr.mxu0 0.0
    %2101 = vmatpush1.msra.mxu0 0.0
    %2102 = vmatprep.subr.mxu0 0.0
    %2103 = vmatpush1.msra.mxu0 0.0
    %2104 = vmatprep.subr.mxu0 0.0
    %2105 = vmatpush1.msra.mxu0 0.0
    %2106 = vmatprep.subr.mxu0 0.0
    %2107 = vmatpush1.msra.mxu0 0.0
    %2108 = vmatprep.subr.mxu0 0.0
    %2109 = vmatpush1.msra.mxu0 0.0
    %2110 = vmatprep.subr.mxu0 0.0
    %2111 = vmatpush1.msra.mxu0 0.0
    %2112 = vmatprep.subr.mxu0 0.0
    %2113 = vmatpush1.msra.mxu0 0.0
    %2114 = vmatprep.subr.mxu0 0.0
    %v2115 = vand.u32 %v1927, 4294901760
    %v2116 = vsub.f32 %v1927, %v2115
    %2117 = vmatpush1.msra.mxu0 %v2116
    %2118 = vmatprep.subr.mxu0 0.0
    %v2119 = vand.u32 %v1926, 4294901760
    %v2120 = vsub.f32 %v1926, %v2119
    %2121 = vmatpush1.msra.mxu0 %v2120
    %2122 = vmatprep.subr.mxu0 0.0
    %2123 = vmatpush2.msra.mxu0 0.0
    %2124 = vmatprep.subr.mxu0 0.0
    %2125 = vmatpush2.msra.mxu0 0.0
    %2126 = vmatprep.subr.mxu0 0.0
    %2127 = vmatpush2.msra.mxu0 0.0
    %2128 = vmatprep.subr.mxu0 0.0
    %2129 = vmatpush2.msra.mxu0 0.0
    %2130 = vmatprep.subr.mxu0 0.0
    %2131 = vmatpush2.msra.mxu0 0.0
    %2132 = vmatprep.subr.mxu0 0.0
    %2133 = vmatpush2.msra.mxu0 0.0
    %2134 = vmatprep.subr.mxu0 0.0
    %2135 = vmatpush2.msra.mxu0 0.0
    %2136 = vmatprep.subr.mxu0 0.0
    %2137 = vmatpush2.msra.mxu0 0.0
    %2138 = vmatprep.subr.mxu0 0.0
    %2139 = vmatpush2.msra.mxu0 0.0
    %2140 = vmatprep.subr.mxu0 0.0
    %2141 = vmatpush2.msra.mxu0 0.0
    %2142 = vmatprep.subr.mxu0 0.0
    %2143 = vmatpush2.msra.mxu0 0.0
    %2144 = vmatprep.subr.mxu0 0.0
    %2145 = vmatpush2.msra.mxu0 0.0
    %2146 = vmatprep.subr.mxu0 0.0
    %2147 = vmatpush2.msra.mxu0 0.0
    %2148 = vmatprep.subr.mxu0 0.0
    %2149 = vmatpush2.msra.mxu0 0.0
    %2150 = vmatprep.subr.mxu0 0.0
    %2151 = vmatpush2.msra.mxu0 0.0
    %2152 = vmatprep.subr.mxu0 0.0
    %2153 = vmatpush2.msra.mxu0 0.0
    %2154 = vmatprep.mubr.f32.mxu0 0.0
    %v2155 = vand.u32 %v29, 4294901760
    %v2156 = vsub.f32 %v29, %v2155
    %2157 = vmatmul.mubr.f32.gmra.mxu0 %v2156
    %v2158 = vpop.f32.mrf.mxu0
    %v2159 = vadd.f32 %v2083, %v2158
    %v2160 = vpop.f32.mrf.mxu0
    %2161 = vdwg.mxu0
    %2162 = vmatprep.subr.mxu0 0.0
    %2163 = vmatpush1.msra.mxu0 0.0
    %2164 = vmatprep.subr.mxu0 0.0
    %2165 = vmatpush1.msra.mxu0 0.0
    %2166 = vmatprep.subr.mxu0 0.0
    %2167 = vmatpush1.msra.mxu0 0.0
    %2168 = vmatprep.subr.mxu0 0.0
    %2169 = vmatpush1.msra.mxu0 0.0
    %2170 = vmatprep.subr.mxu0 0.0
    %2171 = vmatpush1.msra.mxu0 0.0
    %2172 = vmatprep.subr.mxu0 0.0
    %2173 = vmatpush1.msra.mxu0 0.0
    %2174 = vmatprep.subr.mxu0 0.0
    %2175 = vmatpush1.msra.mxu0 0.0
    %2176 = vmatprep.subr.mxu0 0.0
    %2177 = vmatpush1.msra.mxu0 0.0
    %2178 = vmatprep.subr.mxu0 0.0
    %2179 = vmatpush1.msra.mxu0 0.0
    %2180 = vmatprep.subr.mxu0 0.0
    %2181 = vmatpush1.msra.mxu0 0.0
    %2182 = vmatprep.subr.mxu0 0.0
    %2183 = vmatpush1.msra.mxu0 0.0
    %2184 = vmatprep.subr.mxu0 0.0
    %2185 = vmatpush1.msra.mxu0 0.0
    %2186 = vmatprep.subr.mxu0 0.0
    %2187 = vmatpush1.msra.mxu0 0.0
    %2188 = vmatprep.subr.mxu0 0.0
    %2189 = vmatpush1.msra.mxu0 0.0
    %2190 = vmatprep.subr.mxu0 0.0
    %v2191 = vand.u32 %v1927, 4294901760
    %2192 = vmatpush1.msra.mxu0 %v2191
    %2193 = vmatprep.subr.mxu0 0.0
    %v2194 = vand.u32 %v1926, 4294901760
    %2195 = vmatpush1.msra.mxu0 %v2194
    %2196 = vmatprep.subr.mxu0 0.0
    %2197 = vmatpush2.msra.mxu0 0.0
    %2198 = vmatprep.subr.mxu0 0.0
    %2199 = vmatpush2.msra.mxu0 0.0
    %2200 = vmatprep.subr.mxu0 0.0
    %2201 = vmatpush2.msra.mxu0 0.0
    %2202 = vmatprep.subr.mxu0 0.0
    %2203 = vmatpush2.msra.mxu0 0.0
    %2204 = vmatprep.subr.mxu0 0.0
    %2205 = vmatpush2.msra.mxu0 0.0
    %2206 = vmatprep.subr.mxu0 0.0
    %2207 = vmatpush2.msra.mxu0 0.0
    %2208 = vmatprep.subr.mxu0 0.0
    %2209 = vmatpush2.msra.mxu0 0.0
    %2210 = vmatprep.subr.mxu0 0.0
    %2211 = vmatpush2.msra.mxu0 0.0
    %2212 = vmatprep.subr.mxu0 0.0
    %2213 = vmatpush2.msra.mxu0 0.0
    %2214 = vmatprep.subr.mxu0 0.0
    %2215 = vmatpush2.msra.mxu0 0.0
    %2216 = vmatprep.subr.mxu0 0.0
    %2217 = vmatpush2.msra.mxu0 0.0
    %2218 = vmatprep.subr.mxu0 0.0
    %2219 = vmatpush2.msra.mxu0 0.0
    %2220 = vmatprep.subr.mxu0 0.0
    %2221 = vmatpush2.msra.mxu0 0.0
    %2222 = vmatprep.subr.mxu0 0.0
    %2223 = vmatpush2.msra.mxu0 0.0
    %2224 = vmatprep.subr.mxu0 0.0
    %2225 = vmatpush2.msra.mxu0 0.0
    %2226 = vmatprep.subr.mxu0 0.0
    %2227 = vmatpush2.msra.mxu0 0.0
    %2228 = vmatprep.mubr.f32.mxu0 0.0
    %v2229 = vand.u32 %v29, 4294901760
    %v2230 = vsub.f32 %v29, %v2229
    %v2231 = vand.u32 %v2230, 4294901760
    %2232 = vmatmul.mubr.f32.gmra.mxu0 %v2231
    %v2233 = vpop.f32.mrf.mxu0
    %v2234 = vadd.f32 %v2159, %v2233
    %v2235 = vpop.f32.mrf.mxu0
    %2236 = vdwg.mxu0
    %2237 = vmatprep.subr.mxu0 0.0
    %2238 = vmatpush1.msra.mxu0 0.0
    %2239 = vmatprep.subr.mxu0 0.0
    %2240 = vmatpush1.msra.mxu0 0.0
    %2241 = vmatprep.subr.mxu0 0.0
    %2242 = vmatpush1.msra.mxu0 0.0
    %2243 = vmatprep.subr.mxu0 0.0
    %2244 = vmatpush1.msra.mxu0 0.0
    %2245 = vmatprep.subr.mxu0 0.0
    %2246 = vmatpush1.msra.mxu0 0.0
    %2247 = vmatprep.subr.mxu0 0.0
    %2248 = vmatpush1.msra.mxu0 0.0
    %2249 = vmatprep.subr.mxu0 0.0
    %2250 = vmatpush1.msra.mxu0 0.0
    %2251 = vmatprep.subr.mxu0 0.0
    %2252 = vmatpush1.msra.mxu0 0.0
    %2253 = vmatprep.subr.mxu0 0.0
    %2254 = vmatpush1.msra.mxu0 0.0
    %2255 = vmatprep.subr.mxu0 0.0
    %2256 = vmatpush1.msra.mxu0 0.0
    %2257 = vmatprep.subr.mxu0 0.0
    %2258 = vmatpush1.msra.mxu0 0.0
    %2259 = vmatprep.subr.mxu0 0.0
    %2260 = vmatpush1.msra.mxu0 0.0
    %2261 = vmatprep.subr.mxu0 0.0
    %2262 = vmatpush1.msra.mxu0 0.0
    %2263 = vmatprep.subr.mxu0 0.0
    %2264 = vmatpush1.msra.mxu0 0.0
    %2265 = vmatprep.subr.mxu0 0.0
    %v2266 = vand.u32 %v1927, 4294901760
    %v2267 = vsub.f32 %v1927, %v2266
    %v2268 = vand.u32 %v2267, 4294901760
    %2269 = vmatpush1.msra.mxu0 %v2268
    %2270 = vmatprep.subr.mxu0 0.0
    %v2271 = vand.u32 %v1926, 4294901760
    %v2272 = vsub.f32 %v1926, %v2271
    %v2273 = vand.u32 %v2272, 4294901760
    %2274 = vmatpush1.msra.mxu0 %v2273
    %2275 = vmatprep.subr.mxu0 0.0
    %2276 = vmatpush2.msra.mxu0 0.0
    %2277 = vmatprep.subr.mxu0 0.0
    %2278 = vmatpush2.msra.mxu0 0.0
    %2279 = vmatprep.subr.mxu0 0.0
    %2280 = vmatpush2.msra.mxu0 0.0
    %2281 = vmatprep.subr.mxu0 0.0
    %2282 = vmatpush2.msra.mxu0 0.0
    %2283 = vmatprep.subr.mxu0 0.0
    %2284 = vmatpush2.msra.mxu0 0.0
    %2285 = vmatprep.subr.mxu0 0.0
    %2286 = vmatpush2.msra.mxu0 0.0
    %2287 = vmatprep.subr.mxu0 0.0
    %2288 = vmatpush2.msra.mxu0 0.0
    %2289 = vmatprep.subr.mxu0 0.0
    %2290 = vmatpush2.msra.mxu0 0.0
    %2291 = vmatprep.subr.mxu0 0.0
    %2292 = vmatpush2.msra.mxu0 0.0
    %2293 = vmatprep.subr.mxu0 0.0
    %2294 = vmatpush2.msra.mxu0 0.0
    %2295 = vmatprep.subr.mxu0 0.0
    %2296 = vmatpush2.msra.mxu0 0.0
    %2297 = vmatprep.subr.mxu0 0.0
    %2298 = vmatpush2.msra.mxu0 0.0
    %2299 = vmatprep.subr.mxu0 0.0
    %2300 = vmatpush2.msra.mxu0 0.0
    %2301 = vmatprep.subr.mxu0 0.0
    %2302 = vmatpush2.msra.mxu0 0.0
    %2303 = vmatprep.subr.mxu0 0.0
    %2304 = vmatpush2.msra.mxu0 0.0
    %2305 = vmatprep.subr.mxu0 0.0
    %2306 = vmatpush2.msra.mxu0 0.0
    %2307 = vmatprep.mubr.f32.mxu0 0.0
    %v2308 = vand.u32 %v29, 4294901760
    %2309 = vmatmul.mubr.f32.gmra.mxu0 %v2308
    %v2310 = vpop.f32.mrf.mxu0
    %v2311 = vadd.f32 %v2234, %v2310
    %v2312 = vpop.f32.mrf.mxu0
    %2313 = vdwg.mxu0
    %2314 = vmatprep.subr.mxu0 0.0
    %2315 = vmatpush1.msra.mxu0 0.0
    %2316 = vmatprep.subr.mxu0 0.0
    %2317 = vmatpush1.msra.mxu0 0.0
    %2318 = vmatprep.subr.mxu0 0.0
    %2319 = vmatpush1.msra.mxu0 0.0
    %2320 = vmatprep.subr.mxu0 0.0
    %2321 = vmatpush1.msra.mxu0 0.0
    %2322 = vmatprep.subr.mxu0 0.0
    %2323 = vmatpush1.msra.mxu0 0.0
    %2324 = vmatprep.subr.mxu0 0.0
    %2325 = vmatpush1.msra.mxu0 0.0
    %2326 = vmatprep.subr.mxu0 0.0
    %2327 = vmatpush1.msra.mxu0 0.0
    %2328 = vmatprep.subr.mxu0 0.0
    %2329 = vmatpush1.msra.mxu0 0.0
    %2330 = vmatprep.subr.mxu0 0.0
    %2331 = vmatpush1.msra.mxu0 0.0
    %2332 = vmatprep.subr.mxu0 0.0
    %2333 = vmatpush1.msra.mxu0 0.0
    %2334 = vmatprep.subr.mxu0 0.0
    %2335 = vmatpush1.msra.mxu0 0.0
    %2336 = vmatprep.subr.mxu0 0.0
    %2337 = vmatpush1.msra.mxu0 0.0
    %2338 = vmatprep.subr.mxu0 0.0
    %2339 = vmatpush1.msra.mxu0 0.0
    %2340 = vmatprep.subr.mxu0 0.0
    %2341 = vmatpush1.msra.mxu0 0.0
    %2342 = vmatprep.subr.mxu0 0.0
    %v2343 = vand.u32 %v1927, 4294901760
    %2344 = vmatpush1.msra.mxu0 %v2343
    %2345 = vmatprep.subr.mxu0 0.0
    %v2346 = vand.u32 %v1926, 4294901760
    %2347 = vmatpush1.msra.mxu0 %v2346
    %2348 = vmatprep.subr.mxu0 0.0
    %2349 = vmatpush2.msra.mxu0 0.0
    %2350 = vmatprep.subr.mxu0 0.0
    %2351 = vmatpush2.msra.mxu0 0.0
    %2352 = vmatprep.subr.mxu0 0.0
    %2353 = vmatpush2.msra.mxu0 0.0
    %2354 = vmatprep.subr.mxu0 0.0
    %2355 = vmatpush2.msra.mxu0 0.0
    %2356 = vmatprep.subr.mxu0 0.0
    %2357 = vmatpush2.msra.mxu0 0.0
    %2358 = vmatprep.subr.mxu0 0.0
    %2359 = vmatpush2.msra.mxu0 0.0
    %2360 = vmatprep.subr.mxu0 0.0
    %2361 = vmatpush2.msra.mxu0 0.0
    %2362 = vmatprep.subr.mxu0 0.0
    %2363 = vmatpush2.msra.mxu0 0.0
    %2364 = vmatprep.subr.mxu0 0.0
    %2365 = vmatpush2.msra.mxu0 0.0
    %2366 = vmatprep.subr.mxu0 0.0
    %2367 = vmatpush2.msra.mxu0 0.0
    %2368 = vmatprep.subr.mxu0 0.0
    %2369 = vmatpush2.msra.mxu0 0.0
    %2370 = vmatprep.subr.mxu0 0.0
    %2371 = vmatpush2.msra.mxu0 0.0
    %2372 = vmatprep.subr.mxu0 0.0
    %2373 = vmatpush2.msra.mxu0 0.0
    %2374 = vmatprep.subr.mxu0 0.0
    %2375 = vmatpush2.msra.mxu0 0.0
    %2376 = vmatprep.subr.mxu0 0.0
    %2377 = vmatpush2.msra.mxu0 0.0
    %2378 = vmatprep.subr.mxu0 0.0
    %2379 = vmatpush2.msra.mxu0 0.0
    %2380 = vmatprep.mubr.f32.mxu0 0.0
    %v2381 = vand.u32 %v29, 4294901760
    %2382 = vmatmul.mubr.f32.gmra.mxu0 %v2381
    %v2383 = vpop.f32.mrf.mxu0
    %v2384 = vadd.f32 %v2311, %v2383
    %v2385 = vpop.f32.mrf.mxu0
    %2386 = vdwg.mxu0
    %v2388 = vsel %vm490, %v2384, 0
    %2390 = vmatprep.subr.mxu0 0.0
    %2391 = vmatpush1.msra.mxu0 0.0
    %2392 = vmatprep.subr.mxu0 0.0
    %2393 = vmatpush1.msra.mxu0 0.0
    %2394 = vmatprep.subr.mxu0 0.0
    %2395 = vmatpush1.msra.mxu0 0.0
    %2396 = vmatprep.subr.mxu0 0.0
    %2397 = vmatpush1.msra.mxu0 0.0
    %2398 = vmatprep.subr.mxu0 0.0
    %2399 = vmatpush1.msra.mxu0 0.0
    %2400 = vmatprep.subr.mxu0 0.0
    %2401 = vmatpush1.msra.mxu0 0.0
    %2402 = vmatprep.subr.mxu0 0.0
    %2403 = vmatpush1.msra.mxu0 0.0
    %2404 = vmatprep.subr.mxu0 0.0
    %2405 = vmatpush1.msra.mxu0 0.0
    %2406 = vmatprep.subr.mxu0 0.0
    %2407 = vmatpush1.msra.mxu0 0.0
    %2408 = vmatprep.subr.mxu0 0.0
    %2409 = vmatpush1.msra.mxu0 0.0
    %2410 = vmatprep.subr.mxu0 0.0
    %2411 = vmatpush1.msra.mxu0 0.0
    %2412 = vmatprep.subr.mxu0 0.0
    %2413 = vmatpush1.msra.mxu0 0.0
    %2414 = vmatprep.subr.mxu0 0.0
    %v2415 = vand.u32 %v26, 4294901760
    %2416 = vmatpush1.msra.mxu0 %v2415
    %2417 = vmatprep.subr.mxu0 0.0
    %v2418 = vand.u32 %v25, 4294901760
    %2419 = vmatpush1.msra.mxu0 %v2418
    %2420 = vmatprep.subr.mxu0 0.0
    %v2421 = vand.u32 %v24, 4294901760
    %2422 = vmatpush1.msra.mxu0 %v2421
    %2423 = vmatprep.subr.mxu0 0.0
    %v2424 = vand.u32 %v23, 4294901760
    %2425 = vmatpush1.msra.mxu0 %v2424
    %2426 = vmatprep.subr.mxu0 0.0
    %2427 = vmatpush2.msra.mxu0 0.0
    %2428 = vmatprep.subr.mxu0 0.0
    %2429 = vmatpush2.msra.mxu0 0.0
    %2430 = vmatprep.subr.mxu0 0.0
    %2431 = vmatpush2.msra.mxu0 0.0
    %2432 = vmatprep.subr.mxu0 0.0
    %2433 = vmatpush2.msra.mxu0 0.0
    %2434 = vmatprep.subr.mxu0 0.0
    %2435 = vmatpush2.msra.mxu0 0.0
    %2436 = vmatprep.subr.mxu0 0.0
    %2437 = vmatpush2.msra.mxu0 0.0
    %2438 = vmatprep.subr.mxu0 0.0
    %2439 = vmatpush2.msra.mxu0 0.0
    %2440 = vmatprep.subr.mxu0 0.0
    %2441 = vmatpush2.msra.mxu0 0.0
    %2442 = vmatprep.subr.mxu0 0.0
    %2443 = vmatpush2.msra.mxu0 0.0
    %2444 = vmatprep.subr.mxu0 0.0
    %2445 = vmatpush2.msra.mxu0 0.0
    %2446 = vmatprep.subr.mxu0 0.0
    %2447 = vmatpush2.msra.mxu0 0.0
    %2448 = vmatprep.subr.mxu0 0.0
    %2449 = vmatpush2.msra.mxu0 0.0
    %2450 = vmatprep.subr.mxu0 0.0
    %2451 = vmatpush2.msra.mxu0 0.0
    %2452 = vmatprep.subr.mxu0 0.0
    %2453 = vmatpush2.msra.mxu0 0.0
    %2454 = vmatprep.subr.mxu0 0.0
    %2455 = vmatpush2.msra.mxu0 0.0
    %2456 = vmatprep.subr.mxu0 0.0
    %2457 = vmatpush2.msra.mxu0 0.0
    %2458 = vmatprep.mubr.f32.mxu0 0.0
    %v2459 = vand.u32 %v2388, 4294901760
    %v2460 = vsub.f32 %v2388, %v2459
    %v2461 = vand.u32 %v2460, 4294901760
    %v2462 = vsub.f32 %v2460, %v2461
    %v2463 = vand.u32 %v2462, 4294901760
    %2464 = vmatmul.mubr.f32.gmra.mxu0 %v2463
    %v2465 = vpop.f32.mrf.mxu0
    %v2466 = vadd.f32 0.0, %v2465
    %v2467 = vpop.f32.mrf.mxu0
    %2468 = vdwg.mxu0
    %2469 = vmatprep.subr.mxu0 0.0
    %2470 = vmatpush1.msra.mxu0 0.0
    %2471 = vmatprep.subr.mxu0 0.0
    %2472 = vmatpush1.msra.mxu0 0.0
    %2473 = vmatprep.subr.mxu0 0.0
    %2474 = vmatpush1.msra.mxu0 0.0
    %2475 = vmatprep.subr.mxu0 0.0
    %2476 = vmatpush1.msra.mxu0 0.0
    %2477 = vmatprep.subr.mxu0 0.0
    %2478 = vmatpush1.msra.mxu0 0.0
    %2479 = vmatprep.subr.mxu0 0.0
    %2480 = vmatpush1.msra.mxu0 0.0
    %2481 = vmatprep.subr.mxu0 0.0
    %2482 = vmatpush1.msra.mxu0 0.0
    %2483 = vmatprep.subr.mxu0 0.0
    %2484 = vmatpush1.msra.mxu0 0.0
    %2485 = vmatprep.subr.mxu0 0.0
    %2486 = vmatpush1.msra.mxu0 0.0
    %2487 = vmatprep.subr.mxu0 0.0
    %2488 = vmatpush1.msra.mxu0 0.0
    %2489 = vmatprep.subr.mxu0 0.0
    %2490 = vmatpush1.msra.mxu0 0.0
    %2491 = vmatprep.subr.mxu0 0.0
    %2492 = vmatpush1.msra.mxu0 0.0
    %2493 = vmatprep.subr.mxu0 0.0
    %v2494 = vand.u32 %v26, 4294901760
    %v2495 = vsub.f32 %v26, %v2494
    %v2496 = vand.u32 %v2495, 4294901760
    %v2497 = vsub.f32 %v2495, %v2496
    %v2498 = vand.u32 %v2497, 4294901760
    %2499 = vmatpush1.msra.mxu0 %v2498
    %2500 = vmatprep.subr.mxu0 0.0
    %v2501 = vand.u32 %v25, 4294901760
    %v2502 = vsub.f32 %v25, %v2501
    %v2503 = vand.u32 %v2502, 4294901760
    %v2504 = vsub.f32 %v2502, %v2503
    %v2505 = vand.u32 %v2504, 4294901760
    %2506 = vmatpush1.msra.mxu0 %v2505
    %2507 = vmatprep.subr.mxu0 0.0
    %v2508 = vand.u32 %v24, 4294901760
    %v2509 = vsub.f32 %v24, %v2508
    %v2510 = vand.u32 %v2509, 4294901760
    %v2511 = vsub.f32 %v2509, %v2510
    %v2512 = vand.u32 %v2511, 4294901760
    %2513 = vmatpush1.msra.mxu0 %v2512
    %2514 = vmatprep.subr.mxu0 0.0
    %v2515 = vand.u32 %v23, 4294901760
    %v2516 = vsub.f32 %v23, %v2515
    %v2517 = vand.u32 %v2516, 4294901760
    %v2518 = vsub.f32 %v2516, %v2517
    %v2519 = vand.u32 %v2518, 4294901760
    %2520 = vmatpush1.msra.mxu0 %v2519
    %2521 = vmatprep.subr.mxu0 0.0
    %2522 = vmatpush2.msra.mxu0 0.0
    %2523 = vmatprep.subr.mxu0 0.0
    %2524 = vmatpush2.msra.mxu0 0.0
    %2525 = vmatprep.subr.mxu0 0.0
    %2526 = vmatpush2.msra.mxu0 0.0
    %2527 = vmatprep.subr.mxu0 0.0
    %2528 = vmatpush2.msra.mxu0 0.0
    %2529 = vmatprep.subr.mxu0 0.0
    %2530 = vmatpush2.msra.mxu0 0.0
    %2531 = vmatprep.subr.mxu0 0.0
    %2532 = vmatpush2.msra.mxu0 0.0
    %2533 = vmatprep.subr.mxu0 0.0
    %2534 = vmatpush2.msra.mxu0 0.0
    %2535 = vmatprep.subr.mxu0 0.0
    %2536 = vmatpush2.msra.mxu0 0.0
    %2537 = vmatprep.subr.mxu0 0.0
    %2538 = vmatpush2.msra.mxu0 0.0
    %2539 = vmatprep.subr.mxu0 0.0
    %2540 = vmatpush2.msra.mxu0 0.0
    %2541 = vmatprep.subr.mxu0 0.0
    %2542 = vmatpush2.msra.mxu0 0.0
    %2543 = vmatprep.subr.mxu0 0.0
    %2544 = vmatpush2.msra.mxu0 0.0
    %2545 = vmatprep.subr.mxu0 0.0
    %2546 = vmatpush2.msra.mxu0 0.0
    %2547 = vmatprep.subr.mxu0 0.0
    %2548 = vmatpush2.msra.mxu0 0.0
    %2549 = vmatprep.subr.mxu0 0.0
    %2550 = vmatpush2.msra.mxu0 0.0
    %2551 = vmatprep.subr.mxu0 0.0
    %2552 = vmatpush2.msra.mxu0 0.0
    %2553 = vmatprep.mubr.f32.mxu0 0.0
    %v2554 = vand.u32 %v2388, 4294901760
    %2555 = vmatmul.mubr.f32.gmra.mxu0 %v2554
    %v2556 = vpop.f32.mrf.mxu0
    %v2557 = vadd.f32 %v2466, %v2556
    %v2558 = vpop.f32.mrf.mxu0
    %2559 = vdwg.mxu0
    %2560 = vmatprep.subr.mxu0 0.0
    %2561 = vmatpush1.msra.mxu0 0.0
    %2562 = vmatprep.subr.mxu0 0.0
    %2563 = vmatpush1.msra.mxu0 0.0
    %2564 = vmatprep.subr.mxu0 0.0
    %2565 = vmatpush1.msra.mxu0 0.0
    %2566 = vmatprep.subr.mxu0 0.0
    %2567 = vmatpush1.msra.mxu0 0.0
    %2568 = vmatprep.subr.mxu0 0.0
    %2569 = vmatpush1.msra.mxu0 0.0
    %2570 = vmatprep.subr.mxu0 0.0
    %2571 = vmatpush1.msra.mxu0 0.0
    %2572 = vmatprep.subr.mxu0 0.0
    %2573 = vmatpush1.msra.mxu0 0.0
    %2574 = vmatprep.subr.mxu0 0.0
    %2575 = vmatpush1.msra.mxu0 0.0
    %2576 = vmatprep.subr.mxu0 0.0
    %2577 = vmatpush1.msra.mxu0 0.0
    %2578 = vmatprep.subr.mxu0 0.0
    %2579 = vmatpush1.msra.mxu0 0.0
    %2580 = vmatprep.subr.mxu0 0.0
    %2581 = vmatpush1.msra.mxu0 0.0
    %2582 = vmatprep.subr.mxu0 0.0
    %2583 = vmatpush1.msra.mxu0 0.0
    %2584 = vmatprep.subr.mxu0 0.0
    %v2585 = vand.u32 %v26, 4294901760
    %v2586 = vsub.f32 %v26, %v2585
    %2587 = vmatpush1.msra.mxu0 %v2586
    %2588 = vmatprep.subr.mxu0 0.0
    %v2589 = vand.u32 %v25, 4294901760
    %v2590 = vsub.f32 %v25, %v2589
    %2591 = vmatpush1.msra.mxu0 %v2590
    %2592 = vmatprep.subr.mxu0 0.0
    %v2593 = vand.u32 %v24, 4294901760
    %v2594 = vsub.f32 %v24, %v2593
    %2595 = vmatpush1.msra.mxu0 %v2594
    %2596 = vmatprep.subr.mxu0 0.0
    %v2597 = vand.u32 %v23, 4294901760
    %v2598 = vsub.f32 %v23, %v2597
    %2599 = vmatpush1.msra.mxu0 %v2598
    %2600 = vmatprep.subr.mxu0 0.0
    %2601 = vmatpush2.msra.mxu0 0.0
    %2602 = vmatprep.subr.mxu0 0.0
    %2603 = vmatpush2.msra.mxu0 0.0
    %2604 = vmatprep.subr.mxu0 0.0
    %2605 = vmatpush2.msra.mxu0 0.0
    %2606 = vmatprep.subr.mxu0 0.0
    %2607 = vmatpush2.msra.mxu0 0.0
    %2608 = vmatprep.subr.mxu0 0.0
    %2609 = vmatpush2.msra.mxu0 0.0
    %2610 = vmatprep.subr.mxu0 0.0
    %2611 = vmatpush2.msra.mxu0 0.0
    %2612 = vmatprep.subr.mxu0 0.0
    %2613 = vmatpush2.msra.mxu0 0.0
    %2614 = vmatprep.subr.mxu0 0.0
    %2615 = vmatpush2.msra.mxu0 0.0
    %2616 = vmatprep.subr.mxu0 0.0
    %2617 = vmatpush2.msra.mxu0 0.0
    %2618 = vmatprep.subr.mxu0 0.0
    %2619 = vmatpush2.msra.mxu0 0.0
    %2620 = vmatprep.subr.mxu0 0.0
    %2621 = vmatpush2.msra.mxu0 0.0
    %2622 = vmatprep.subr.mxu0 0.0
    %2623 = vmatpush2.msra.mxu0 0.0
    %2624 = vmatprep.subr.mxu0 0.0
    %2625 = vmatpush2.msra.mxu0 0.0
    %2626 = vmatprep.subr.mxu0 0.0
    %2627 = vmatpush2.msra.mxu0 0.0
    %2628 = vmatprep.subr.mxu0 0.0
    %2629 = vmatpush2.msra.mxu0 0.0
    %2630 = vmatprep.subr.mxu0 0.0
    %2631 = vmatpush2.msra.mxu0 0.0
    %2632 = vmatprep.mubr.f32.mxu0 0.0
    %v2633 = vand.u32 %v2388, 4294901760
    %v2634 = vsub.f32 %v2388, %v2633
    %2635 = vmatmul.mubr.f32.gmra.mxu0 %v2634
    %v2636 = vpop.f32.mrf.mxu0
    %v2637 = vadd.f32 %v2557, %v2636
    %v2638 = vpop.f32.mrf.mxu0
    %2639 = vdwg.mxu0
    %2640 = vmatprep.subr.mxu0 0.0
    %2641 = vmatpush1.msra.mxu0 0.0
    %2642 = vmatprep.subr.mxu0 0.0
    %2643 = vmatpush1.msra.mxu0 0.0
    %2644 = vmatprep.subr.mxu0 0.0
    %2645 = vmatpush1.msra.mxu0 0.0
    %2646 = vmatprep.subr.mxu0 0.0
    %2647 = vmatpush1.msra.mxu0 0.0
    %2648 = vmatprep.subr.mxu0 0.0
    %2649 = vmatpush1.msra.mxu0 0.0
    %2650 = vmatprep.subr.mxu0 0.0
    %2651 = vmatpush1.msra.mxu0 0.0
    %2652 = vmatprep.subr.mxu0 0.0
    %2653 = vmatpush1.msra.mxu0 0.0
    %2654 = vmatprep.subr.mxu0 0.0
    %2655 = vmatpush1.msra.mxu0 0.0
    %2656 = vmatprep.subr.mxu0 0.0
    %2657 = vmatpush1.msra.mxu0 0.0
    %2658 = vmatprep.subr.mxu0 0.0
    %2659 = vmatpush1.msra.mxu0 0.0
    %2660 = vmatprep.subr.mxu0 0.0
    %2661 = vmatpush1.msra.mxu0 0.0
    %2662 = vmatprep.subr.mxu0 0.0
    %2663 = vmatpush1.msra.mxu0 0.0
    %2664 = vmatprep.subr.mxu0 0.0
    %v2665 = vand.u32 %v26, 4294901760
    %2666 = vmatpush1.msra.mxu0 %v2665
    %2667 = vmatprep.subr.mxu0 0.0
    %v2668 = vand.u32 %v25, 4294901760
    %2669 = vmatpush1.msra.mxu0 %v2668
    %2670 = vmatprep.subr.mxu0 0.0
    %v2671 = vand.u32 %v24, 4294901760
    %2672 = vmatpush1.msra.mxu0 %v2671
    %2673 = vmatprep.subr.mxu0 0.0
    %v2674 = vand.u32 %v23, 4294901760
    %2675 = vmatpush1.msra.mxu0 %v2674
    %2676 = vmatprep.subr.mxu0 0.0
    %2677 = vmatpush2.msra.mxu0 0.0
    %2678 = vmatprep.subr.mxu0 0.0
    %2679 = vmatpush2.msra.mxu0 0.0
    %2680 = vmatprep.subr.mxu0 0.0
    %2681 = vmatpush2.msra.mxu0 0.0
    %2682 = vmatprep.subr.mxu0 0.0
    %2683 = vmatpush2.msra.mxu0 0.0
    %2684 = vmatprep.subr.mxu0 0.0
    %2685 = vmatpush2.msra.mxu0 0.0
    %2686 = vmatprep.subr.mxu0 0.0
    %2687 = vmatpush2.msra.mxu0 0.0
    %2688 = vmatprep.subr.mxu0 0.0
    %2689 = vmatpush2.msra.mxu0 0.0
    %2690 = vmatprep.subr.mxu0 0.0
    %2691 = vmatpush2.msra.mxu0 0.0
    %2692 = vmatprep.subr.mxu0 0.0
    %2693 = vmatpush2.msra.mxu0 0.0
    %2694 = vmatprep.subr.mxu0 0.0
    %2695 = vmatpush2.msra.mxu0 0.0
    %2696 = vmatprep.subr.mxu0 0.0
    %2697 = vmatpush2.msra.mxu0 0.0
    %2698 = vmatprep.subr.mxu0 0.0
    %2699 = vmatpush2.msra.mxu0 0.0
    %2700 = vmatprep.subr.mxu0 0.0
    %2701 = vmatpush2.msra.mxu0 0.0
    %2702 = vmatprep.subr.mxu0 0.0
    %2703 = vmatpush2.msra.mxu0 0.0
    %2704 = vmatprep.subr.mxu0 0.0
    %2705 = vmatpush2.msra.mxu0 0.0
    %2706 = vmatprep.subr.mxu0 0.0
    %2707 = vmatpush2.msra.mxu0 0.0
    %2708 = vmatprep.mubr.f32.mxu0 0.0
    %v2709 = vand.u32 %v2388, 4294901760
    %v2710 = vsub.f32 %v2388, %v2709
    %v2711 = vand.u32 %v2710, 4294901760
    %2712 = vmatmul.mubr.f32.gmra.mxu0 %v2711
    %v2713 = vpop.f32.mrf.mxu0
    %v2714 = vadd.f32 %v2637, %v2713
    %v2715 = vpop.f32.mrf.mxu0
    %2716 = vdwg.mxu0
    %2717 = vmatprep.subr.mxu0 0.0
    %2718 = vmatpush1.msra.mxu0 0.0
    %2719 = vmatprep.subr.mxu0 0.0
    %2720 = vmatpush1.msra.mxu0 0.0
    %2721 = vmatprep.subr.mxu0 0.0
    %2722 = vmatpush1.msra.mxu0 0.0
    %2723 = vmatprep.subr.mxu0 0.0
    %2724 = vmatpush1.msra.mxu0 0.0
    %2725 = vmatprep.subr.mxu0 0.0
    %2726 = vmatpush1.msra.mxu0 0.0
    %2727 = vmatprep.subr.mxu0 0.0
    %2728 = vmatpush1.msra.mxu0 0.0
    %2729 = vmatprep.subr.mxu0 0.0
    %2730 = vmatpush1.msra.mxu0 0.0
    %2731 = vmatprep.subr.mxu0 0.0
    %2732 = vmatpush1.msra.mxu0 0.0
    %2733 = vmatprep.subr.mxu0 0.0
    %2734 = vmatpush1.msra.mxu0 0.0
    %2735 = vmatprep.subr.mxu0 0.0
    %2736 = vmatpush1.msra.mxu0 0.0
    %2737 = vmatprep.subr.mxu0 0.0
    %2738 = vmatpush1.msra.mxu0 0.0
    %2739 = vmatprep.subr.mxu0 0.0
    %2740 = vmatpush1.msra.mxu0 0.0
    %2741 = vmatprep.subr.mxu0 0.0
    %v2742 = vand.u32 %v26, 4294901760
    %v2743 = vsub.f32 %v26, %v2742
    %v2744 = vand.u32 %v2743, 4294901760
    %2745 = vmatpush1.msra.mxu0 %v2744
    %2746 = vmatprep.subr.mxu0 0.0
    %v2747 = vand.u32 %v25, 4294901760
    %v2748 = vsub.f32 %v25, %v2747
    %v2749 = vand.u32 %v2748, 4294901760
    %2750 = vmatpush1.msra.mxu0 %v2749
    %2751 = vmatprep.subr.mxu0 0.0
    %v2752 = vand.u32 %v24, 4294901760
    %v2753 = vsub.f32 %v24, %v2752
    %v2754 = vand.u32 %v2753, 4294901760
    %2755 = vmatpush1.msra.mxu0 %v2754
    %2756 = vmatprep.subr.mxu0 0.0
    %v2757 = vand.u32 %v23, 4294901760
    %v2758 = vsub.f32 %v23, %v2757
    %v2759 = vand.u32 %v2758, 4294901760
    %2760 = vmatpush1.msra.mxu0 %v2759
    %2761 = vmatprep.subr.mxu0 0.0
    %2762 = vmatpush2.msra.mxu0 0.0
    %2763 = vmatprep.subr.mxu0 0.0
    %2764 = vmatpush2.msra.mxu0 0.0
    %2765 = vmatprep.subr.mxu0 0.0
    %2766 = vmatpush2.msra.mxu0 0.0
    %2767 = vmatprep.subr.mxu0 0.0
    %2768 = vmatpush2.msra.mxu0 0.0
    %2769 = vmatprep.subr.mxu0 0.0
    %2770 = vmatpush2.msra.mxu0 0.0
    %2771 = vmatprep.subr.mxu0 0.0
    %2772 = vmatpush2.msra.mxu0 0.0
    %2773 = vmatprep.subr.mxu0 0.0
    %2774 = vmatpush2.msra.mxu0 0.0
    %2775 = vmatprep.subr.mxu0 0.0
    %2776 = vmatpush2.msra.mxu0 0.0
    %2777 = vmatprep.subr.mxu0 0.0
    %2778 = vmatpush2.msra.mxu0 0.0
    %2779 = vmatprep.subr.mxu0 0.0
    %2780 = vmatpush2.msra.mxu0 0.0
    %2781 = vmatprep.subr.mxu0 0.0
    %2782 = vmatpush2.msra.mxu0 0.0
    %2783 = vmatprep.subr.mxu0 0.0
    %2784 = vmatpush2.msra.mxu0 0.0
    %2785 = vmatprep.subr.mxu0 0.0
    %2786 = vmatpush2.msra.mxu0 0.0
    %2787 = vmatprep.subr.mxu0 0.0
    %2788 = vmatpush2.msra.mxu0 0.0
    %2789 = vmatprep.subr.mxu0 0.0
    %2790 = vmatpush2.msra.mxu0 0.0
    %2791 = vmatprep.subr.mxu0 0.0
    %2792 = vmatpush2.msra.mxu0 0.0
    %2793 = vmatprep.mubr.f32.mxu0 0.0
    %v2794 = vand.u32 %v2388, 4294901760
    %2795 = vmatmul.mubr.f32.gmra.mxu0 %v2794
    %v2796 = vpop.f32.mrf.mxu0
    %v2797 = vadd.f32 %v2714, %v2796
    %v2798 = vpop.f32.mrf.mxu0
    %2799 = vdwg.mxu0
    %2800 = vmatprep.subr.mxu0 0.0
    %2801 = vmatpush1.msra.mxu0 0.0
    %2802 = vmatprep.subr.mxu0 0.0
    %2803 = vmatpush1.msra.mxu0 0.0
    %2804 = vmatprep.subr.mxu0 0.0
    %2805 = vmatpush1.msra.mxu0 0.0
    %2806 = vmatprep.subr.mxu0 0.0
    %2807 = vmatpush1.msra.mxu0 0.0
    %2808 = vmatprep.subr.mxu0 0.0
    %2809 = vmatpush1.msra.mxu0 0.0
    %2810 = vmatprep.subr.mxu0 0.0
    %2811 = vmatpush1.msra.mxu0 0.0
    %2812 = vmatprep.subr.mxu0 0.0
    %2813 = vmatpush1.msra.mxu0 0.0
    %2814 = vmatprep.subr.mxu0 0.0
    %2815 = vmatpush1.msra.mxu0 0.0
    %2816 = vmatprep.subr.mxu0 0.0
    %2817 = vmatpush1.msra.mxu0 0.0
    %2818 = vmatprep.subr.mxu0 0.0
    %2819 = vmatpush1.msra.mxu0 0.0
    %2820 = vmatprep.subr.mxu0 0.0
    %2821 = vmatpush1.msra.mxu0 0.0
    %2822 = vmatprep.subr.mxu0 0.0
    %2823 = vmatpush1.msra.mxu0 0.0
    %2824 = vmatprep.subr.mxu0 0.0
    %v2825 = vand.u32 %v26, 4294901760
    %2826 = vmatpush1.msra.mxu0 %v2825
    %2827 = vmatprep.subr.mxu0 0.0
    %v2828 = vand.u32 %v25, 4294901760
    %2829 = vmatpush1.msra.mxu0 %v2828
    %2830 = vmatprep.subr.mxu0 0.0
    %v2831 = vand.u32 %v24, 4294901760
    %2832 = vmatpush1.msra.mxu0 %v2831
    %2833 = vmatprep.subr.mxu0 0.0
    %v2834 = vand.u32 %v23, 4294901760
    %2835 = vmatpush1.msra.mxu0 %v2834
    %2836 = vmatprep.subr.mxu0 0.0
    %2837 = vmatpush2.msra.mxu0 0.0
    %2838 = vmatprep.subr.mxu0 0.0
    %2839 = vmatpush2.msra.mxu0 0.0
    %2840 = vmatprep.subr.mxu0 0.0
    %2841 = vmatpush2.msra.mxu0 0.0
    %2842 = vmatprep.subr.mxu0 0.0
    %2843 = vmatpush2.msra.mxu0 0.0
    %2844 = vmatprep.subr.mxu0 0.0
    %2845 = vmatpush2.msra.mxu0 0.0
    %2846 = vmatprep.subr.mxu0 0.0
    %2847 = vmatpush2.msra.mxu0 0.0
    %2848 = vmatprep.subr.mxu0 0.0
    %2849 = vmatpush2.msra.mxu0 0.0
    %2850 = vmatprep.subr.mxu0 0.0
    %2851 = vmatpush2.msra.mxu0 0.0
    %2852 = vmatprep.subr.mxu0 0.0
    %2853 = vmatpush2.msra.mxu0 0.0
    %2854 = vmatprep.subr.mxu0 0.0
    %2855 = vmatpush2.msra.mxu0 0.0
    %2856 = vmatprep.subr.mxu0 0.0
    %2857 = vmatpush2.msra.mxu0 0.0
    %2858 = vmatprep.subr.mxu0 0.0
    %2859 = vmatpush2.msra.mxu0 0.0
    %2860 = vmatprep.subr.mxu0 0.0
    %2861 = vmatpush2.msra.mxu0 0.0
    %2862 = vmatprep.subr.mxu0 0.0
    %2863 = vmatpush2.msra.mxu0 0.0
    %2864 = vmatprep.subr.mxu0 0.0
    %2865 = vmatpush2.msra.mxu0 0.0
    %2866 = vmatprep.subr.mxu0 0.0
    %2867 = vmatpush2.msra.mxu0 0.0
    %2868 = vmatprep.mubr.f32.mxu0 0.0
    %v2869 = vand.u32 %v2388, 4294901760
    %2870 = vmatmul.mubr.f32.gmra.mxu0 %v2869
    %v2871 = vpop.f32.mrf.mxu0
    %v2872 = vadd.f32 %v2797, %v2871
    %v2873 = vpop.f32.mrf.mxu0
    %2874 = vdwg.mxu0
    %v2875 = vmul.f32 %v20, %v20
    %v2876 = vmul.f32 %v21, %v21
    %2877 = vmatprep.subr.mxu0 0.0
    %2878 = vmatpush1.msra.mxu0 0.0
    %2879 = vmatprep.subr.mxu0 0.0
    %2880 = vmatpush1.msra.mxu0 0.0
    %2881 = vmatprep.subr.mxu0 0.0
    %2882 = vmatpush1.msra.mxu0 0.0
    %2883 = vmatprep.subr.mxu0 0.0
    %2884 = vmatpush1.msra.mxu0 0.0
    %2885 = vmatprep.subr.mxu0 0.0
    %2886 = vmatpush1.msra.mxu0 0.0
    %2887 = vmatprep.subr.mxu0 0.0
    %2888 = vmatpush1.msra.mxu0 0.0
    %2889 = vmatprep.subr.mxu0 0.0
    %2890 = vmatpush1.msra.mxu0 0.0
    %2891 = vmatprep.subr.mxu0 0.0
    %2892 = vmatpush1.msra.mxu0 0.0
    %2893 = vmatprep.subr.mxu0 0.0
    %2894 = vmatpush1.msra.mxu0 0.0
    %2895 = vmatprep.subr.mxu0 0.0
    %2896 = vmatpush1.msra.mxu0 0.0
    %2897 = vmatprep.subr.mxu0 0.0
    %2898 = vmatpush1.msra.mxu0 0.0
    %2899 = vmatprep.subr.mxu0 0.0
    %2900 = vmatpush1.msra.mxu0 0.0
    %2901 = vmatprep.subr.mxu0 0.0
    %2902 = vmatpush1.msra.mxu0 0.0
    %2903 = vmatprep.subr.mxu0 0.0
    %2904 = vmatpush1.msra.mxu0 0.0
    %2905 = vmatprep.subr.mxu0 0.0
    %v2906 = vand.u32 %v2876, 4294901760
    %2907 = vmatpush1.msra.mxu0 %v2906
    %2908 = vmatprep.subr.mxu0 0.0
    %v2909 = vand.u32 %v2875, 4294901760
    %2910 = vmatpush1.msra.mxu0 %v2909
    %2911 = vmatprep.subr.mxu0 0.0
    %2912 = vmatpush2.msra.mxu0 0.0
    %2913 = vmatprep.subr.mxu0 0.0
    %2914 = vmatpush2.msra.mxu0 0.0
    %2915 = vmatprep.subr.mxu0 0.0
    %2916 = vmatpush2.msra.mxu0 0.0
    %2917 = vmatprep.subr.mxu0 0.0
    %2918 = vmatpush2.msra.mxu0 0.0
    %2919 = vmatprep.subr.mxu0 0.0
    %2920 = vmatpush2.msra.mxu0 0.0
    %2921 = vmatprep.subr.mxu0 0.0
    %2922 = vmatpush2.msra.mxu0 0.0
    %2923 = vmatprep.subr.mxu0 0.0
    %2924 = vmatpush2.msra.mxu0 0.0
    %2925 = vmatprep.subr.mxu0 0.0
    %2926 = vmatpush2.msra.mxu0 0.0
    %2927 = vmatprep.subr.mxu0 0.0
    %2928 = vmatpush2.msra.mxu0 0.0
    %2929 = vmatprep.subr.mxu0 0.0
    %2930 = vmatpush2.msra.mxu0 0.0
    %2931 = vmatprep.subr.mxu0 0.0
    %2932 = vmatpush2.msra.mxu0 0.0
    %2933 = vmatprep.subr.mxu0 0.0
    %2934 = vmatpush2.msra.mxu0 0.0
    %2935 = vmatprep.subr.mxu0 0.0
    %2936 = vmatpush2.msra.mxu0 0.0
    %2937 = vmatprep.subr.mxu0 0.0
    %2938 = vmatpush2.msra.mxu0 0.0
    %2939 = vmatprep.subr.mxu0 0.0
    %2940 = vmatpush2.msra.mxu0 0.0
    %2941 = vmatprep.subr.mxu0 0.0
    %2942 = vmatpush2.msra.mxu0 0.0
    %2943 = vmatprep.mubr.f32.mxu0 0.0
    %v2944 = vand.u32 %v29, 4294901760
    %v2945 = vsub.f32 %v29, %v2944
    %v2946 = vand.u32 %v2945, 4294901760
    %v2947 = vsub.f32 %v2945, %v2946
    %v2948 = vand.u32 %v2947, 4294901760
    %2949 = vmatmul.mubr.f32.gmra.mxu0 %v2948
    %v2950 = vpop.f32.mrf.mxu0
    %v2951 = vadd.f32 0.0, %v2950
    %v2952 = vpop.f32.mrf.mxu0
    %2953 = vdwg.mxu0
    %2954 = vmatprep.subr.mxu0 0.0
    %2955 = vmatpush1.msra.mxu0 0.0
    %2956 = vmatprep.subr.mxu0 0.0
    %2957 = vmatpush1.msra.mxu0 0.0
    %2958 = vmatprep.subr.mxu0 0.0
    %2959 = vmatpush1.msra.mxu0 0.0
    %2960 = vmatprep.subr.mxu0 0.0
    %2961 = vmatpush1.msra.mxu0 0.0
    %2962 = vmatprep.subr.mxu0 0.0
    %2963 = vmatpush1.msra.mxu0 0.0
    %2964 = vmatprep.subr.mxu0 0.0
    %2965 = vmatpush1.msra.mxu0 0.0
    %2966 = vmatprep.subr.mxu0 0.0
    %2967 = vmatpush1.msra.mxu0 0.0
    %2968 = vmatprep.subr.mxu0 0.0
    %2969 = vmatpush1.msra.mxu0 0.0
    %2970 = vmatprep.subr.mxu0 0.0
    %2971 = vmatpush1.msra.mxu0 0.0
    %2972 = vmatprep.subr.mxu0 0.0
    %2973 = vmatpush1.msra.mxu0 0.0
    %2974 = vmatprep.subr.mxu0 0.0
    %2975 = vmatpush1.msra.mxu0 0.0
    %2976 = vmatprep.subr.mxu0 0.0
    %2977 = vmatpush1.msra.mxu0 0.0
    %2978 = vmatprep.subr.mxu0 0.0
    %2979 = vmatpush1.msra.mxu0 0.0
    %2980 = vmatprep.subr.mxu0 0.0
    %2981 = vmatpush1.msra.mxu0 0.0
    %2982 = vmatprep.subr.mxu0 0.0
    %v2983 = vand.u32 %v2876, 4294901760
    %v2984 = vsub.f32 %v2876, %v2983
    %v2985 = vand.u32 %v2984, 4294901760
    %v2986 = vsub.f32 %v2984, %v2985
    %v2987 = vand.u32 %v2986, 4294901760
    %2988 = vmatpush1.msra.mxu0 %v2987
    %2989 = vmatprep.subr.mxu0 0.0
    %v2990 = vand.u32 %v2875, 4294901760
    %v2991 = vsub.f32 %v2875, %v2990
    %v2992 = vand.u32 %v2991, 4294901760
    %v2993 = vsub.f32 %v2991, %v2992
    %v2994 = vand.u32 %v2993, 4294901760
    %2995 = vmatpush1.msra.mxu0 %v2994
    %2996 = vmatprep.subr.mxu0 0.0
    %2997 = vmatpush2.msra.mxu0 0.0
    %2998 = vmatprep.subr.mxu0 0.0
    %2999 = vmatpush2.msra.mxu0 0.0
    %3000 = vmatprep.subr.mxu0 0.0
    %3001 = vmatpush2.msra.mxu0 0.0
    %3002 = vmatprep.subr.mxu0 0.0
    %3003 = vmatpush2.msra.mxu0 0.0
    %3004 = vmatprep.subr.mxu0 0.0
    %3005 = vmatpush2.msra.mxu0 0.0
    %3006 = vmatprep.subr.mxu0 0.0
    %3007 = vmatpush2.msra.mxu0 0.0
    %3008 = vmatprep.subr.mxu0 0.0
    %3009 = vmatpush2.msra.mxu0 0.0
    %3010 = vmatprep.subr.mxu0 0.0
    %3011 = vmatpush2.msra.mxu0 0.0
    %3012 = vmatprep.subr.mxu0 0.0
    %3013 = vmatpush2.msra.mxu0 0.0
    %3014 = vmatprep.subr.mxu0 0.0
    %3015 = vmatpush2.msra.mxu0 0.0
    %3016 = vmatprep.subr.mxu0 0.0
    %3017 = vmatpush2.msra.mxu0 0.0
    %3018 = vmatprep.subr.mxu0 0.0
    %3019 = vmatpush2.msra.mxu0 0.0
    %3020 = vmatprep.subr.mxu0 0.0
    %3021 = vmatpush2.msra.mxu0 0.0
    %3022 = vmatprep.subr.mxu0 0.0
    %3023 = vmatpush2.msra.mxu0 0.0
    %3024 = vmatprep.subr.mxu0 0.0
    %3025 = vmatpush2.msra.mxu0 0.0
    %3026 = vmatprep.subr.mxu0 0.0
    %3027 = vmatpush2.msra.mxu0 0.0
    %3028 = vmatprep.mubr.f32.mxu0 0.0
    %v3029 = vand.u32 %v29, 4294901760
    %3030 = vmatmul.mubr.f32.gmra.mxu0 %v3029
    %v3031 = vpop.f32.mrf.mxu0
    %v3032 = vadd.f32 %v2951, %v3031
    %v3033 = vpop.f32.mrf.mxu0
    %3034 = vdwg.mxu0
    %3035 = vmatprep.subr.mxu0 0.0
    %3036 = vmatpush1.msra.mxu0 0.0
    %3037 = vmatprep.subr.mxu0 0.0
    %3038 = vmatpush1.msra.mxu0 0.0
    %3039 = vmatprep.subr.mxu0 0.0
    %3040 = vmatpush1.msra.mxu0 0.0
    %3041 = vmatprep.subr.mxu0 0.0
    %3042 = vmatpush1.msra.mxu0 0.0
    %3043 = vmatprep.subr.mxu0 0.0
    %3044 = vmatpush1.msra.mxu0 0.0
    %3045 = vmatprep.subr.mxu0 0.0
    %3046 = vmatpush1.msra.mxu0 0.0
    %3047 = vmatprep.subr.mxu0 0.0
    %3048 = vmatpush1.msra.mxu0 0.0
    %3049 = vmatprep.subr.mxu0 0.0
    %3050 = vmatpush1.msra.mxu0 0.0
    %3051 = vmatprep.subr.mxu0 0.0
    %3052 = vmatpush1.msra.mxu0 0.0
    %3053 = vmatprep.subr.mxu0 0.0
    %3054 = vmatpush1.msra.mxu0 0.0
    %3055 = vmatprep.subr.mxu0 0.0
    %3056 = vmatpush1.msra.mxu0 0.0
    %3057 = vmatprep.subr.mxu0 0.0
    %3058 = vmatpush1.msra.mxu0 0.0
    %3059 = vmatprep.subr.mxu0 0.0
    %3060 = vmatpush1.msra.mxu0 0.0
    %3061 = vmatprep.subr.mxu0 0.0
    %3062 = vmatpush1.msra.mxu0 0.0
    %3063 = vmatprep.subr.mxu0 0.0
    %v3064 = vand.u32 %v2876, 4294901760
    %v3065 = vsub.f32 %v2876, %v3064
    %3066 = vmatpush1.msra.mxu0 %v3065
    %3067 = vmatprep.subr.mxu0 0.0
    %v3068 = vand.u32 %v2875, 4294901760
    %v3069 = vsub.f32 %v2875, %v3068
    %3070 = vmatpush1.msra.mxu0 %v3069
    %3071 = vmatprep.subr.mxu0 0.0
    %3072 = vmatpush2.msra.mxu0 0.0
    %3073 = vmatprep.subr.mxu0 0.0
    %3074 = vmatpush2.msra.mxu0 0.0
    %3075 = vmatprep.subr.mxu0 0.0
    %3076 = vmatpush2.msra.mxu0 0.0
    %3077 = vmatprep.subr.mxu0 0.0
    %3078 = vmatpush2.msra.mxu0 0.0
    %3079 = vmatprep.subr.mxu0 0.0
    %3080 = vmatpush2.msra.mxu0 0.0
    %3081 = vmatprep.subr.mxu0 0.0
    %3082 = vmatpush2.msra.mxu0 0.0
    %3083 = vmatprep.subr.mxu0 0.0
    %3084 = vmatpush2.msra.mxu0 0.0
    %3085 = vmatprep.subr.mxu0 0.0
    %3086 = vmatpush2.msra.mxu0 0.0
    %3087 = vmatprep.subr.mxu0 0.0
    %3088 = vmatpush2.msra.mxu0 0.0
    %3089 = vmatprep.subr.mxu0 0.0
    %3090 = vmatpush2.msra.mxu0 0.0
    %3091 = vmatprep.subr.mxu0 0.0
    %3092 = vmatpush2.msra.mxu0 0.0
    %3093 = vmatprep.subr.mxu0 0.0
    %3094 = vmatpush2.msra.mxu0 0.0
    %3095 = vmatprep.subr.mxu0 0.0
    %3096 = vmatpush2.msra.mxu0 0.0
    %3097 = vmatprep.subr.mxu0 0.0
    %3098 = vmatpush2.msra.mxu0 0.0
    %3099 = vmatprep.subr.mxu0 0.0
    %3100 = vmatpush2.msra.mxu0 0.0
    %3101 = vmatprep.subr.mxu0 0.0
    %3102 = vmatpush2.msra.mxu0 0.0
    %3103 = vmatprep.mubr.f32.mxu0 0.0
    %v3104 = vand.u32 %v29, 4294901760
    %v3105 = vsub.f32 %v29, %v3104
    %3106 = vmatmul.mubr.f32.gmra.mxu0 %v3105
    %v3107 = vpop.f32.mrf.mxu0
    %v3108 = vadd.f32 %v3032, %v3107
    %v3109 = vpop.f32.mrf.mxu0
    %3110 = vdwg.mxu0
    %3111 = vmatprep.subr.mxu0 0.0
    %3112 = vmatpush1.msra.mxu0 0.0
    %3113 = vmatprep.subr.mxu0 0.0
    %3114 = vmatpush1.msra.mxu0 0.0
    %3115 = vmatprep.subr.mxu0 0.0
    %3116 = vmatpush1.msra.mxu0 0.0
    %3117 = vmatprep.subr.mxu0 0.0
    %3118 = vmatpush1.msra.mxu0 0.0
    %3119 = vmatprep.subr.mxu0 0.0
    %3120 = vmatpush1.msra.mxu0 0.0
    %3121 = vmatprep.subr.mxu0 0.0
    %3122 = vmatpush1.msra.mxu0 0.0
    %3123 = vmatprep.subr.mxu0 0.0
    %3124 = vmatpush1.msra.mxu0 0.0
    %3125 = vmatprep.subr.mxu0 0.0
    %3126 = vmatpush1.msra.mxu0 0.0
    %3127 = vmatprep.subr.mxu0 0.0
    %3128 = vmatpush1.msra.mxu0 0.0
    %3129 = vmatprep.subr.mxu0 0.0
    %3130 = vmatpush1.msra.mxu0 0.0
    %3131 = vmatprep.subr.mxu0 0.0
    %3132 = vmatpush1.msra.mxu0 0.0
    %3133 = vmatprep.subr.mxu0 0.0
    %3134 = vmatpush1.msra.mxu0 0.0
    %3135 = vmatprep.subr.mxu0 0.0
    %3136 = vmatpush1.msra.mxu0 0.0
    %3137 = vmatprep.subr.mxu0 0.0
    %3138 = vmatpush1.msra.mxu0 0.0
    %3139 = vmatprep.subr.mxu0 0.0
    %v3140 = vand.u32 %v2876, 4294901760
    %3141 = vmatpush1.msra.mxu0 %v3140
    %3142 = vmatprep.subr.mxu0 0.0
    %v3143 = vand.u32 %v2875, 4294901760
    %3144 = vmatpush1.msra.mxu0 %v3143
    %3145 = vmatprep.subr.mxu0 0.0
    %3146 = vmatpush2.msra.mxu0 0.0
    %3147 = vmatprep.subr.mxu0 0.0
    %3148 = vmatpush2.msra.mxu0 0.0
    %3149 = vmatprep.subr.mxu0 0.0
    %3150 = vmatpush2.msra.mxu0 0.0
    %3151 = vmatprep.subr.mxu0 0.0
    %3152 = vmatpush2.msra.mxu0 0.0
    %3153 = vmatprep.subr.mxu0 0.0
    %3154 = vmatpush2.msra.mxu0 0.0
    %3155 = vmatprep.subr.mxu0 0.0
    %3156 = vmatpush2.msra.mxu0 0.0
    %3157 = vmatprep.subr.mxu0 0.0
    %3158 = vmatpush2.msra.mxu0 0.0
    %3159 = vmatprep.subr.mxu0 0.0
    %3160 = vmatpush2.msra.mxu0 0.0
    %3161 = vmatprep.subr.mxu0 0.0
    %3162 = vmatpush2.msra.mxu0 0.0
    %3163 = vmatprep.subr.mxu0 0.0
    %3164 = vmatpush2.msra.mxu0 0.0
    %3165 = vmatprep.subr.mxu0 0.0
    %3166 = vmatpush2.msra.mxu0 0.0
    %3167 = vmatprep.subr.mxu0 0.0
    %3168 = vmatpush2.msra.mxu0 0.0
    %3169 = vmatprep.subr.mxu0 0.0
    %3170 = vmatpush2.msra.mxu0 0.0
    %3171 = vmatprep.subr.mxu0 0.0
    %3172 = vmatpush2.msra.mxu0 0.0
    %3173 = vmatprep.subr.mxu0 0.0
    %3174 = vmatpush2.msra.mxu0 0.0
    %3175 = vmatprep.subr.mxu0 0.0
    %3176 = vmatpush2.msra.mxu0 0.0
    %3177 = vmatprep.mubr.f32.mxu0 0.0
    %v3178 = vand.u32 %v29, 4294901760
    %v3179 = vsub.f32 %v29, %v3178
    %v3180 = vand.u32 %v3179, 4294901760
    %3181 = vmatmul.mubr.f32.gmra.mxu0 %v3180
    %v3182 = vpop.f32.mrf.mxu0
    %v3183 = vadd.f32 %v3108, %v3182
    %v3184 = vpop.f32.mrf.mxu0
    %3185 = vdwg.mxu0
    %3186 = vmatprep.subr.mxu0 0.0
    %3187 = vmatpush1.msra.mxu0 0.0
    %3188 = vmatprep.subr.mxu0 0.0
    %3189 = vmatpush1.msra.mxu0 0.0
    %3190 = vmatprep.subr.mxu0 0.0
    %3191 = vmatpush1.msra.mxu0 0.0
    %3192 = vmatprep.subr.mxu0 0.0
    %3193 = vmatpush1.msra.mxu0 0.0
    %3194 = vmatprep.subr.mxu0 0.0
    %3195 = vmatpush1.msra.mxu0 0.0
    %3196 = vmatprep.subr.mxu0 0.0
    %3197 = vmatpush1.msra.mxu0 0.0
    %3198 = vmatprep.subr.mxu0 0.0
    %3199 = vmatpush1.msra.mxu0 0.0
    %3200 = vmatprep.subr.mxu0 0.0
    %3201 = vmatpush1.msra.mxu0 0.0
    %3202 = vmatprep.subr.mxu0 0.0
    %3203 = vmatpush1.msra.mxu0 0.0
    %3204 = vmatprep.subr.mxu0 0.0
    %3205 = vmatpush1.msra.mxu0 0.0
    %3206 = vmatprep.subr.mxu0 0.0
    %3207 = vmatpush1.msra.mxu0 0.0
    %3208 = vmatprep.subr.mxu0 0.0
    %3209 = vmatpush1.msra.mxu0 0.0
    %3210 = vmatprep.subr.mxu0 0.0
    %3211 = vmatpush1.msra.mxu0 0.0
    %3212 = vmatprep.subr.mxu0 0.0
    %3213 = vmatpush1.msra.mxu0 0.0
    %3214 = vmatprep.subr.mxu0 0.0
    %v3215 = vand.u32 %v2876, 4294901760
    %v3216 = vsub.f32 %v2876, %v3215
    %v3217 = vand.u32 %v3216, 4294901760
    %3218 = vmatpush1.msra.mxu0 %v3217
    %3219 = vmatprep.subr.mxu0 0.0
    %v3220 = vand.u32 %v2875, 4294901760
    %v3221 = vsub.f32 %v2875, %v3220
    %v3222 = vand.u32 %v3221, 4294901760
    %3223 = vmatpush1.msra.mxu0 %v3222
    %3224 = vmatprep.subr.mxu0 0.0
    %3225 = vmatpush2.msra.mxu0 0.0
    %3226 = vmatprep.subr.mxu0 0.0
    %3227 = vmatpush2.msra.mxu0 0.0
    %3228 = vmatprep.subr.mxu0 0.0
    %3229 = vmatpush2.msra.mxu0 0.0
    %3230 = vmatprep.subr.mxu0 0.0
    %3231 = vmatpush2.msra.mxu0 0.0
    %3232 = vmatprep.subr.mxu0 0.0
    %3233 = vmatpush2.msra.mxu0 0.0
    %3234 = vmatprep.subr.mxu0 0.0
    %3235 = vmatpush2.msra.mxu0 0.0
    %3236 = vmatprep.subr.mxu0 0.0
    %3237 = vmatpush2.msra.mxu0 0.0
    %3238 = vmatprep.subr.mxu0 0.0
    %3239 = vmatpush2.msra.mxu0 0.0
    %3240 = vmatprep.subr.mxu0 0.0
    %3241 = vmatpush2.msra.mxu0 0.0
    %3242 = vmatprep.subr.mxu0 0.0
    %3243 = vmatpush2.msra.mxu0 0.0
    %3244 = vmatprep.subr.mxu0 0.0
    %3245 = vmatpush2.msra.mxu0 0.0
    %3246 = vmatprep.subr.mxu0 0.0
    %3247 = vmatpush2.msra.mxu0 0.0
    %3248 = vmatprep.subr.mxu0 0.0
    %3249 = vmatpush2.msra.mxu0 0.0
    %3250 = vmatprep.subr.mxu0 0.0
    %3251 = vmatpush2.msra.mxu0 0.0
    %3252 = vmatprep.subr.mxu0 0.0
    %3253 = vmatpush2.msra.mxu0 0.0
    %3254 = vmatprep.subr.mxu0 0.0
    %3255 = vmatpush2.msra.mxu0 0.0
    %3256 = vmatprep.mubr.f32.mxu0 0.0
    %v3257 = vand.u32 %v29, 4294901760
    %3258 = vmatmul.mubr.f32.gmra.mxu0 %v3257
    %v3259 = vpop.f32.mrf.mxu0
    %v3260 = vadd.f32 %v3183, %v3259
    %v3261 = vpop.f32.mrf.mxu0
    %3262 = vdwg.mxu0
    %3263 = vmatprep.subr.mxu0 0.0
    %3264 = vmatpush1.msra.mxu0 0.0
    %3265 = vmatprep.subr.mxu0 0.0
    %3266 = vmatpush1.msra.mxu0 0.0
    %3267 = vmatprep.subr.mxu0 0.0
    %3268 = vmatpush1.msra.mxu0 0.0
    %3269 = vmatprep.subr.mxu0 0.0
    %3270 = vmatpush1.msra.mxu0 0.0
    %3271 = vmatprep.subr.mxu0 0.0
    %3272 = vmatpush1.msra.mxu0 0.0
    %3273 = vmatprep.subr.mxu0 0.0
    %3274 = vmatpush1.msra.mxu0 0.0
    %3275 = vmatprep.subr.mxu0 0.0
    %3276 = vmatpush1.msra.mxu0 0.0
    %3277 = vmatprep.subr.mxu0 0.0
    %3278 = vmatpush1.msra.mxu0 0.0
    %3279 = vmatprep.subr.mxu0 0.0
    %3280 = vmatpush1.msra.mxu0 0.0
    %3281 = vmatprep.subr.mxu0 0.0
    %3282 = vmatpush1.msra.mxu0 0.0
    %3283 = vmatprep.subr.mxu0 0.0
    %3284 = vmatpush1.msra.mxu0 0.0
    %3285 = vmatprep.subr.mxu0 0.0
    %3286 = vmatpush1.msra.mxu0 0.0
    %3287 = vmatprep.subr.mxu0 0.0
    %3288 = vmatpush1.msra.mxu0 0.0
    %3289 = vmatprep.subr.mxu0 0.0
    %3290 = vmatpush1.msra.mxu0 0.0
    %3291 = vmatprep.subr.mxu0 0.0
    %v3292 = vand.u32 %v2876, 4294901760
    %3293 = vmatpush1.msra.mxu0 %v3292
    %3294 = vmatprep.subr.mxu0 0.0
    %v3295 = vand.u32 %v2875, 4294901760
    %3296 = vmatpush1.msra.mxu0 %v3295
    %3297 = vmatprep.subr.mxu0 0.0
    %3298 = vmatpush2.msra.mxu0 0.0
    %3299 = vmatprep.subr.mxu0 0.0
    %3300 = vmatpush2.msra.mxu0 0.0
    %3301 = vmatprep.subr.mxu0 0.0
    %3302 = vmatpush2.msra.mxu0 0.0
    %3303 = vmatprep.subr.mxu0 0.0
    %3304 = vmatpush2.msra.mxu0 0.0
    %3305 = vmatprep.subr.mxu0 0.0
    %3306 = vmatpush2.msra.mxu0 0.0
    %3307 = vmatprep.subr.mxu0 0.0
    %3308 = vmatpush2.msra.mxu0 0.0
    %3309 = vmatprep.subr.mxu0 0.0
    %3310 = vmatpush2.msra.mxu0 0.0
    %3311 = vmatprep.subr.mxu0 0.0
    %3312 = vmatpush2.msra.mxu0 0.0
    %3313 = vmatprep.subr.mxu0 0.0
    %3314 = vmatpush2.msra.mxu0 0.0
    %3315 = vmatprep.subr.mxu0 0.0
    %3316 = vmatpush2.msra.mxu0 0.0
    %3317 = vmatprep.subr.mxu0 0.0
    %3318 = vmatpush2.msra.mxu0 0.0
    %3319 = vmatprep.subr.mxu0 0.0
    %3320 = vmatpush2.msra.mxu0 0.0
    %3321 = vmatprep.subr.mxu0 0.0
    %3322 = vmatpush2.msra.mxu0 0.0
    %3323 = vmatprep.subr.mxu0 0.0
    %3324 = vmatpush2.msra.mxu0 0.0
    %3325 = vmatprep.subr.mxu0 0.0
    %3326 = vmatpush2.msra.mxu0 0.0
    %3327 = vmatprep.subr.mxu0 0.0
    %3328 = vmatpush2.msra.mxu0 0.0
    %3329 = vmatprep.mubr.f32.mxu0 0.0
    %v3330 = vand.u32 %v29, 4294901760
    %3331 = vmatmul.mubr.f32.gmra.mxu0 %v3330
    %v3332 = vpop.f32.mrf.mxu0
    %v3333 = vadd.f32 %v3260, %v3332
    %v3334 = vpop.f32.mrf.mxu0
    %3335 = vdwg.mxu0
    %v3337 = vsel %vm490, %v3333, 0
    %3339 = vmatprep.subr.mxu0 0.0
    %3340 = vmatpush1.msra.mxu0 0.0
    %3341 = vmatprep.subr.mxu0 0.0
    %3342 = vmatpush1.msra.mxu0 0.0
    %3343 = vmatprep.subr.mxu0 0.0
    %3344 = vmatpush1.msra.mxu0 0.0
    %3345 = vmatprep.subr.mxu0 0.0
    %3346 = vmatpush1.msra.mxu0 0.0
    %3347 = vmatprep.subr.mxu0 0.0
    %3348 = vmatpush1.msra.mxu0 0.0
    %3349 = vmatprep.subr.mxu0 0.0
    %3350 = vmatpush1.msra.mxu0 0.0
    %3351 = vmatprep.subr.mxu0 0.0
    %3352 = vmatpush1.msra.mxu0 0.0
    %3353 = vmatprep.subr.mxu0 0.0
    %3354 = vmatpush1.msra.mxu0 0.0
    %3355 = vmatprep.subr.mxu0 0.0
    %3356 = vmatpush1.msra.mxu0 0.0
    %3357 = vmatprep.subr.mxu0 0.0
    %3358 = vmatpush1.msra.mxu0 0.0
    %3359 = vmatprep.subr.mxu0 0.0
    %3360 = vmatpush1.msra.mxu0 0.0
    %3361 = vmatprep.subr.mxu0 0.0
    %3362 = vmatpush1.msra.mxu0 0.0
    %3363 = vmatprep.subr.mxu0 0.0
    %v3364 = vand.u32 %v26, 4294901760
    %3365 = vmatpush1.msra.mxu0 %v3364
    %3366 = vmatprep.subr.mxu0 0.0
    %v3367 = vand.u32 %v25, 4294901760
    %3368 = vmatpush1.msra.mxu0 %v3367
    %3369 = vmatprep.subr.mxu0 0.0
    %v3370 = vand.u32 %v24, 4294901760
    %3371 = vmatpush1.msra.mxu0 %v3370
    %3372 = vmatprep.subr.mxu0 0.0
    %v3373 = vand.u32 %v23, 4294901760
    %3374 = vmatpush1.msra.mxu0 %v3373
    %3375 = vmatprep.subr.mxu0 0.0
    %3376 = vmatpush2.msra.mxu0 0.0
    %3377 = vmatprep.subr.mxu0 0.0
    %3378 = vmatpush2.msra.mxu0 0.0
    %3379 = vmatprep.subr.mxu0 0.0
    %3380 = vmatpush2.msra.mxu0 0.0
    %3381 = vmatprep.subr.mxu0 0.0
    %3382 = vmatpush2.msra.mxu0 0.0
    %3383 = vmatprep.subr.mxu0 0.0
    %3384 = vmatpush2.msra.mxu0 0.0
    %3385 = vmatprep.subr.mxu0 0.0
    %3386 = vmatpush2.msra.mxu0 0.0
    %3387 = vmatprep.subr.mxu0 0.0
    %3388 = vmatpush2.msra.mxu0 0.0
    %3389 = vmatprep.subr.mxu0 0.0
    %3390 = vmatpush2.msra.mxu0 0.0
    %3391 = vmatprep.subr.mxu0 0.0
    %3392 = vmatpush2.msra.mxu0 0.0
    %3393 = vmatprep.subr.mxu0 0.0
    %3394 = vmatpush2.msra.mxu0 0.0
    %3395 = vmatprep.subr.mxu0 0.0
    %3396 = vmatpush2.msra.mxu0 0.0
    %3397 = vmatprep.subr.mxu0 0.0
    %3398 = vmatpush2.msra.mxu0 0.0
    %3399 = vmatprep.subr.mxu0 0.0
    %3400 = vmatpush2.msra.mxu0 0.0
    %3401 = vmatprep.subr.mxu0 0.0
    %3402 = vmatpush2.msra.mxu0 0.0
    %3403 = vmatprep.subr.mxu0 0.0
    %3404 = vmatpush2.msra.mxu0 0.0
    %3405 = vmatprep.subr.mxu0 0.0
    %3406 = vmatpush2.msra.mxu0 0.0
    %3407 = vmatprep.mubr.f32.mxu0 0.0
    %v3408 = vand.u32 %v3337, 4294901760
    %v3409 = vsub.f32 %v3337, %v3408
    %v3410 = vand.u32 %v3409, 4294901760
    %v3411 = vsub.f32 %v3409, %v3410
    %v3412 = vand.u32 %v3411, 4294901760
    %3413 = vmatmul.mubr.f32.gmra.mxu0 %v3412
    %v3414 = vpop.f32.mrf.mxu0
    %v3415 = vadd.f32 0.0, %v3414
    %v3416 = vpop.f32.mrf.mxu0
    %3417 = vdwg.mxu0
    %3418 = vmatprep.subr.mxu0 0.0
    %3419 = vmatpush1.msra.mxu0 0.0
    %3420 = vmatprep.subr.mxu0 0.0
    %3421 = vmatpush1.msra.mxu0 0.0
    %3422 = vmatprep.subr.mxu0 0.0
    %3423 = vmatpush1.msra.mxu0 0.0
    %3424 = vmatprep.subr.mxu0 0.0
    %3425 = vmatpush1.msra.mxu0 0.0
    %3426 = vmatprep.subr.mxu0 0.0
    %3427 = vmatpush1.msra.mxu0 0.0
    %3428 = vmatprep.subr.mxu0 0.0
    %3429 = vmatpush1.msra.mxu0 0.0
    %3430 = vmatprep.subr.mxu0 0.0
    %3431 = vmatpush1.msra.mxu0 0.0
    %3432 = vmatprep.subr.mxu0 0.0
    %3433 = vmatpush1.msra.mxu0 0.0
    %3434 = vmatprep.subr.mxu0 0.0
    %3435 = vmatpush1.msra.mxu0 0.0
    %3436 = vmatprep.subr.mxu0 0.0
    %3437 = vmatpush1.msra.mxu0 0.0
    %3438 = vmatprep.subr.mxu0 0.0
    %3439 = vmatpush1.msra.mxu0 0.0
    %3440 = vmatprep.subr.mxu0 0.0
    %3441 = vmatpush1.msra.mxu0 0.0
    %3442 = vmatprep.subr.mxu0 0.0
    %v3443 = vand.u32 %v26, 4294901760
    %v3444 = vsub.f32 %v26, %v3443
    %v3445 = vand.u32 %v3444, 4294901760
    %v3446 = vsub.f32 %v3444, %v3445
    %v3447 = vand.u32 %v3446, 4294901760
    %3448 = vmatpush1.msra.mxu0 %v3447
    %3449 = vmatprep.subr.mxu0 0.0
    %v3450 = vand.u32 %v25, 4294901760
    %v3451 = vsub.f32 %v25, %v3450
    %v3452 = vand.u32 %v3451, 4294901760
    %v3453 = vsub.f32 %v3451, %v3452
    %v3454 = vand.u32 %v3453, 4294901760
    %3455 = vmatpush1.msra.mxu0 %v3454
    %3456 = vmatprep.subr.mxu0 0.0
    %v3457 = vand.u32 %v24, 4294901760
    %v3458 = vsub.f32 %v24, %v3457
    %v3459 = vand.u32 %v3458, 4294901760
    %v3460 = vsub.f32 %v3458, %v3459
    %v3461 = vand.u32 %v3460, 4294901760
    %3462 = vmatpush1.msra.mxu0 %v3461
    %3463 = vmatprep.subr.mxu0 0.0
    %v3464 = vand.u32 %v23, 4294901760
    %v3465 = vsub.f32 %v23, %v3464
    %v3466 = vand.u32 %v3465, 4294901760
    %v3467 = vsub.f32 %v3465, %v3466
    %v3468 = vand.u32 %v3467, 4294901760
    %3469 = vmatpush1.msra.mxu0 %v3468
    %3470 = vmatprep.subr.mxu0 0.0
    %3471 = vmatpush2.msra.mxu0 0.0
    %3472 = vmatprep.subr.mxu0 0.0
    %3473 = vmatpush2.msra.mxu0 0.0
    %3474 = vmatprep.subr.mxu0 0.0
    %3475 = vmatpush2.msra.mxu0 0.0
    %3476 = vmatprep.subr.mxu0 0.0
    %3477 = vmatpush2.msra.mxu0 0.0
    %3478 = vmatprep.subr.mxu0 0.0
    %3479 = vmatpush2.msra.mxu0 0.0
    %3480 = vmatprep.subr.mxu0 0.0
    %3481 = vmatpush2.msra.mxu0 0.0
    %3482 = vmatprep.subr.mxu0 0.0
    %3483 = vmatpush2.msra.mxu0 0.0
    %3484 = vmatprep.subr.mxu0 0.0
    %3485 = vmatpush2.msra.mxu0 0.0
    %3486 = vmatprep.subr.mxu0 0.0
    %3487 = vmatpush2.msra.mxu0 0.0
    %3488 = vmatprep.subr.mxu0 0.0
    %3489 = vmatpush2.msra.mxu0 0.0
    %3490 = vmatprep.subr.mxu0 0.0
    %3491 = vmatpush2.msra.mxu0 0.0
    %3492 = vmatprep.subr.mxu0 0.0
    %3493 = vmatpush2.msra.mxu0 0.0
    %3494 = vmatprep.subr.mxu0 0.0
    %3495 = vmatpush2.msra.mxu0 0.0
    %3496 = vmatprep.subr.mxu0 0.0
    %3497 = vmatpush2.msra.mxu0 0.0
    %3498 = vmatprep.subr.mxu0 0.0
    %3499 = vmatpush2.msra.mxu0 0.0
    %3500 = vmatprep.subr.mxu0 0.0
    %3501 = vmatpush2.msra.mxu0 0.0
    %3502 = vmatprep.mubr.f32.mxu0 0.0
    %v3503 = vand.u32 %v3337, 4294901760
    %3504 = vmatmul.mubr.f32.gmra.mxu0 %v3503
    %v3505 = vpop.f32.mrf.mxu0
    %v3506 = vadd.f32 %v3415, %v3505
    %v3507 = vpop.f32.mrf.mxu0
    %3508 = vdwg.mxu0
    %3509 = vmatprep.subr.mxu0 0.0
    %3510 = vmatpush1.msra.mxu0 0.0
    %3511 = vmatprep.subr.mxu0 0.0
    %3512 = vmatpush1.msra.mxu0 0.0
    %3513 = vmatprep.subr.mxu0 0.0
    %3514 = vmatpush1.msra.mxu0 0.0
    %3515 = vmatprep.subr.mxu0 0.0
    %3516 = vmatpush1.msra.mxu0 0.0
    %3517 = vmatprep.subr.mxu0 0.0
    %3518 = vmatpush1.msra.mxu0 0.0
    %3519 = vmatprep.subr.mxu0 0.0
    %3520 = vmatpush1.msra.mxu0 0.0
    %3521 = vmatprep.subr.mxu0 0.0
    %3522 = vmatpush1.msra.mxu0 0.0
    %3523 = vmatprep.subr.mxu0 0.0
    %3524 = vmatpush1.msra.mxu0 0.0
    %3525 = vmatprep.subr.mxu0 0.0
    %3526 = vmatpush1.msra.mxu0 0.0
    %3527 = vmatprep.subr.mxu0 0.0
    %3528 = vmatpush1.msra.mxu0 0.0
    %3529 = vmatprep.subr.mxu0 0.0
    %3530 = vmatpush1.msra.mxu0 0.0
    %3531 = vmatprep.subr.mxu0 0.0
    %3532 = vmatpush1.msra.mxu0 0.0
    %3533 = vmatprep.subr.mxu0 0.0
    %v3534 = vand.u32 %v26, 4294901760
    %v3535 = vsub.f32 %v26, %v3534
    %3536 = vmatpush1.msra.mxu0 %v3535
    %3537 = vmatprep.subr.mxu0 0.0
    %v3538 = vand.u32 %v25, 4294901760
    %v3539 = vsub.f32 %v25, %v3538
    %3540 = vmatpush1.msra.mxu0 %v3539
    %3541 = vmatprep.subr.mxu0 0.0
    %v3542 = vand.u32 %v24, 4294901760
    %v3543 = vsub.f32 %v24, %v3542
    %3544 = vmatpush1.msra.mxu0 %v3543
    %3545 = vmatprep.subr.mxu0 0.0
    %v3546 = vand.u32 %v23, 4294901760
    %v3547 = vsub.f32 %v23, %v3546
    %3548 = vmatpush1.msra.mxu0 %v3547
    %3549 = vmatprep.subr.mxu0 0.0
    %3550 = vmatpush2.msra.mxu0 0.0
    %3551 = vmatprep.subr.mxu0 0.0
    %3552 = vmatpush2.msra.mxu0 0.0
    %3553 = vmatprep.subr.mxu0 0.0
    %3554 = vmatpush2.msra.mxu0 0.0
    %3555 = vmatprep.subr.mxu0 0.0
    %3556 = vmatpush2.msra.mxu0 0.0
    %3557 = vmatprep.subr.mxu0 0.0
    %3558 = vmatpush2.msra.mxu0 0.0
    %3559 = vmatprep.subr.mxu0 0.0
    %3560 = vmatpush2.msra.mxu0 0.0
    %3561 = vmatprep.subr.mxu0 0.0
    %3562 = vmatpush2.msra.mxu0 0.0
    %3563 = vmatprep.subr.mxu0 0.0
    %3564 = vmatpush2.msra.mxu0 0.0
    %3565 = vmatprep.subr.mxu0 0.0
    %3566 = vmatpush2.msra.mxu0 0.0
    %3567 = vmatprep.subr.mxu0 0.0
    %3568 = vmatpush2.msra.mxu0 0.0
    %3569 = vmatprep.subr.mxu0 0.0
    %3570 = vmatpush2.msra.mxu0 0.0
    %3571 = vmatprep.subr.mxu0 0.0
    %3572 = vmatpush2.msra.mxu0 0.0
    %3573 = vmatprep.subr.mxu0 0.0
    %3574 = vmatpush2.msra.mxu0 0.0
    %3575 = vmatprep.subr.mxu0 0.0
    %3576 = vmatpush2.msra.mxu0 0.0
    %3577 = vmatprep.subr.mxu0 0.0
    %3578 = vmatpush2.msra.mxu0 0.0
    %3579 = vmatprep.subr.mxu0 0.0
    %3580 = vmatpush2.msra.mxu0 0.0
    %3581 = vmatprep.mubr.f32.mxu0 0.0
    %v3582 = vand.u32 %v3337, 4294901760
    %v3583 = vsub.f32 %v3337, %v3582
    %3584 = vmatmul.mubr.f32.gmra.mxu0 %v3583
    %v3585 = vpop.f32.mrf.mxu0
    %v3586 = vadd.f32 %v3506, %v3585
    %v3587 = vpop.f32.mrf.mxu0
    %3588 = vdwg.mxu0
    %3589 = vmatprep.subr.mxu0 0.0
    %3590 = vmatpush1.msra.mxu0 0.0
    %3591 = vmatprep.subr.mxu0 0.0
    %3592 = vmatpush1.msra.mxu0 0.0
    %3593 = vmatprep.subr.mxu0 0.0
    %3594 = vmatpush1.msra.mxu0 0.0
    %3595 = vmatprep.subr.mxu0 0.0
    %3596 = vmatpush1.msra.mxu0 0.0
    %3597 = vmatprep.subr.mxu0 0.0
    %3598 = vmatpush1.msra.mxu0 0.0
    %3599 = vmatprep.subr.mxu0 0.0
    %3600 = vmatpush1.msra.mxu0 0.0
    %3601 = vmatprep.subr.mxu0 0.0
    %3602 = vmatpush1.msra.mxu0 0.0
    %3603 = vmatprep.subr.mxu0 0.0
    %3604 = vmatpush1.msra.mxu0 0.0
    %3605 = vmatprep.subr.mxu0 0.0
    %3606 = vmatpush1.msra.mxu0 0.0
    %3607 = vmatprep.subr.mxu0 0.0
    %3608 = vmatpush1.msra.mxu0 0.0
    %3609 = vmatprep.subr.mxu0 0.0
    %3610 = vmatpush1.msra.mxu0 0.0
    %3611 = vmatprep.subr.mxu0 0.0
    %3612 = vmatpush1.msra.mxu0 0.0
    %3613 = vmatprep.subr.mxu0 0.0
    %v3614 = vand.u32 %v26, 4294901760
    %3615 = vmatpush1.msra.mxu0 %v3614
    %3616 = vmatprep.subr.mxu0 0.0
    %v3617 = vand.u32 %v25, 4294901760
    %3618 = vmatpush1.msra.mxu0 %v3617
    %3619 = vmatprep.subr.mxu0 0.0
    %v3620 = vand.u32 %v24, 4294901760
    %3621 = vmatpush1.msra.mxu0 %v3620
    %3622 = vmatprep.subr.mxu0 0.0
    %v3623 = vand.u32 %v23, 4294901760
    %3624 = vmatpush1.msra.mxu0 %v3623
    %3625 = vmatprep.subr.mxu0 0.0
    %3626 = vmatpush2.msra.mxu0 0.0
    %3627 = vmatprep.subr.mxu0 0.0
    %3628 = vmatpush2.msra.mxu0 0.0
    %3629 = vmatprep.subr.mxu0 0.0
    %3630 = vmatpush2.msra.mxu0 0.0
    %3631 = vmatprep.subr.mxu0 0.0
    %3632 = vmatpush2.msra.mxu0 0.0
    %3633 = vmatprep.subr.mxu0 0.0
    %3634 = vmatpush2.msra.mxu0 0.0
    %3635 = vmatprep.subr.mxu0 0.0
    %3636 = vmatpush2.msra.mxu0 0.0
    %3637 = vmatprep.subr.mxu0 0.0
    %3638 = vmatpush2.msra.mxu0 0.0
    %3639 = vmatprep.subr.mxu0 0.0
    %3640 = vmatpush2.msra.mxu0 0.0
    %3641 = vmatprep.subr.mxu0 0.0
    %3642 = vmatpush2.msra.mxu0 0.0
    %3643 = vmatprep.subr.mxu0 0.0
    %3644 = vmatpush2.msra.mxu0 0.0
    %3645 = vmatprep.subr.mxu0 0.0
    %3646 = vmatpush2.msra.mxu0 0.0
    %3647 = vmatprep.subr.mxu0 0.0
    %3648 = vmatpush2.msra.mxu0 0.0
    %3649 = vmatprep.subr.mxu0 0.0
    %3650 = vmatpush2.msra.mxu0 0.0
    %3651 = vmatprep.subr.mxu0 0.0
    %3652 = vmatpush2.msra.mxu0 0.0
    %3653 = vmatprep.subr.mxu0 0.0
    %3654 = vmatpush2.msra.mxu0 0.0
    %3655 = vmatprep.subr.mxu0 0.0
    %3656 = vmatpush2.msra.mxu0 0.0
    %3657 = vmatprep.mubr.f32.mxu0 0.0
    %v3658 = vand.u32 %v3337, 4294901760
    %v3659 = vsub.f32 %v3337, %v3658
    %v3660 = vand.u32 %v3659, 4294901760
    %3661 = vmatmul.mubr.f32.gmra.mxu0 %v3660
    %v3662 = vpop.f32.mrf.mxu0
    %v3663 = vadd.f32 %v3586, %v3662
    %v3664 = vpop.f32.mrf.mxu0
    %3665 = vdwg.mxu0
    %3666 = vmatprep.subr.mxu0 0.0
    %3667 = vmatpush1.msra.mxu0 0.0
    %3668 = vmatprep.subr.mxu0 0.0
    %3669 = vmatpush1.msra.mxu0 0.0
    %3670 = vmatprep.subr.mxu0 0.0
    %3671 = vmatpush1.msra.mxu0 0.0
    %3672 = vmatprep.subr.mxu0 0.0
    %3673 = vmatpush1.msra.mxu0 0.0
    %3674 = vmatprep.subr.mxu0 0.0
    %3675 = vmatpush1.msra.mxu0 0.0
    %3676 = vmatprep.subr.mxu0 0.0
    %3677 = vmatpush1.msra.mxu0 0.0
    %3678 = vmatprep.subr.mxu0 0.0
    %3679 = vmatpush1.msra.mxu0 0.0
    %3680 = vmatprep.subr.mxu0 0.0
    %3681 = vmatpush1.msra.mxu0 0.0
    %3682 = vmatprep.subr.mxu0 0.0
    %3683 = vmatpush1.msra.mxu0 0.0
    %3684 = vmatprep.subr.mxu0 0.0
    %3685 = vmatpush1.msra.mxu0 0.0
    %3686 = vmatprep.subr.mxu0 0.0
    %3687 = vmatpush1.msra.mxu0 0.0
    %3688 = vmatprep.subr.mxu0 0.0
    %3689 = vmatpush1.msra.mxu0 0.0
    %3690 = vmatprep.subr.mxu0 0.0
    %v3691 = vand.u32 %v26, 4294901760
    %v3692 = vsub.f32 %v26, %v3691
    %v3693 = vand.u32 %v3692, 4294901760
    %3694 = vmatpush1.msra.mxu0 %v3693
    %3695 = vmatprep.subr.mxu0 0.0
    %v3696 = vand.u32 %v25, 4294901760
    %v3697 = vsub.f32 %v25, %v3696
    %v3698 = vand.u32 %v3697, 4294901760
    %3699 = vmatpush1.msra.mxu0 %v3698
    %3700 = vmatprep.subr.mxu0 0.0
    %v3701 = vand.u32 %v24, 4294901760
    %v3702 = vsub.f32 %v24, %v3701
    %v3703 = vand.u32 %v3702, 4294901760
    %3704 = vmatpush1.msra.mxu0 %v3703
    %3705 = vmatprep.subr.mxu0 0.0
    %v3706 = vand.u32 %v23, 4294901760
    %v3707 = vsub.f32 %v23, %v3706
    %v3708 = vand.u32 %v3707, 4294901760
    %3709 = vmatpush1.msra.mxu0 %v3708
    %3710 = vmatprep.subr.mxu0 0.0
    %3711 = vmatpush2.msra.mxu0 0.0
    %3712 = vmatprep.subr.mxu0 0.0
    %3713 = vmatpush2.msra.mxu0 0.0
    %3714 = vmatprep.subr.mxu0 0.0
    %3715 = vmatpush2.msra.mxu0 0.0
    %3716 = vmatprep.subr.mxu0 0.0
    %3717 = vmatpush2.msra.mxu0 0.0
    %3718 = vmatprep.subr.mxu0 0.0
    %3719 = vmatpush2.msra.mxu0 0.0
    %3720 = vmatprep.subr.mxu0 0.0
    %3721 = vmatpush2.msra.mxu0 0.0
    %3722 = vmatprep.subr.mxu0 0.0
    %3723 = vmatpush2.msra.mxu0 0.0
    %3724 = vmatprep.subr.mxu0 0.0
    %3725 = vmatpush2.msra.mxu0 0.0
    %3726 = vmatprep.subr.mxu0 0.0
    %3727 = vmatpush2.msra.mxu0 0.0
    %3728 = vmatprep.subr.mxu0 0.0
    %3729 = vmatpush2.msra.mxu0 0.0
    %3730 = vmatprep.subr.mxu0 0.0
    %3731 = vmatpush2.msra.mxu0 0.0
    %3732 = vmatprep.subr.mxu0 0.0
    %3733 = vmatpush2.msra.mxu0 0.0
    %3734 = vmatprep.subr.mxu0 0.0
    %3735 = vmatpush2.msra.mxu0 0.0
    %3736 = vmatprep.subr.mxu0 0.0
    %3737 = vmatpush2.msra.mxu0 0.0
    %3738 = vmatprep.subr.mxu0 0.0
    %3739 = vmatpush2.msra.mxu0 0.0
    %3740 = vmatprep.subr.mxu0 0.0
    %3741 = vmatpush2.msra.mxu0 0.0
    %3742 = vmatprep.mubr.f32.mxu0 0.0
    %v3743 = vand.u32 %v3337, 4294901760
    %3744 = vmatmul.mubr.f32.gmra.mxu0 %v3743
    %v3745 = vpop.f32.mrf.mxu0
    %v3746 = vadd.f32 %v3663, %v3745
    %v3747 = vpop.f32.mrf.mxu0
    %3748 = vdwg.mxu0
    %3749 = vmatprep.subr.mxu0 0.0
    %3750 = vmatpush1.msra.mxu0 0.0
    %3751 = vmatprep.subr.mxu0 0.0
    %3752 = vmatpush1.msra.mxu0 0.0
    %3753 = vmatprep.subr.mxu0 0.0
    %3754 = vmatpush1.msra.mxu0 0.0
    %3755 = vmatprep.subr.mxu0 0.0
    %3756 = vmatpush1.msra.mxu0 0.0
    %3757 = vmatprep.subr.mxu0 0.0
    %3758 = vmatpush1.msra.mxu0 0.0
    %3759 = vmatprep.subr.mxu0 0.0
    %3760 = vmatpush1.msra.mxu0 0.0
    %3761 = vmatprep.subr.mxu0 0.0
    %3762 = vmatpush1.msra.mxu0 0.0
    %3763 = vmatprep.subr.mxu0 0.0
    %3764 = vmatpush1.msra.mxu0 0.0
    %3765 = vmatprep.subr.mxu0 0.0
    %3766 = vmatpush1.msra.mxu0 0.0
    %3767 = vmatprep.subr.mxu0 0.0
    %3768 = vmatpush1.msra.mxu0 0.0
    %3769 = vmatprep.subr.mxu0 0.0
    %3770 = vmatpush1.msra.mxu0 0.0
    %3771 = vmatprep.subr.mxu0 0.0
    %3772 = vmatpush1.msra.mxu0 0.0
    %3773 = vmatprep.subr.mxu0 0.0
    %v3774 = vand.u32 %v26, 4294901760
    %3775 = vmatpush1.msra.mxu0 %v3774
    %3776 = vmatprep.subr.mxu0 0.0
    %v3777 = vand.u32 %v25, 4294901760
    %3778 = vmatpush1.msra.mxu0 %v3777
    %3779 = vmatprep.subr.mxu0 0.0
    %v3780 = vand.u32 %v24, 4294901760
    %3781 = vmatpush1.msra.mxu0 %v3780
    %3782 = vmatprep.subr.mxu0 0.0
    %v3783 = vand.u32 %v23, 4294901760
    %3784 = vmatpush1.msra.mxu0 %v3783
    %3785 = vmatprep.subr.mxu0 0.0
    %3786 = vmatpush2.msra.mxu0 0.0
    %3787 = vmatprep.subr.mxu0 0.0
    %3788 = vmatpush2.msra.mxu0 0.0
    %3789 = vmatprep.subr.mxu0 0.0
    %3790 = vmatpush2.msra.mxu0 0.0
    %3791 = vmatprep.subr.mxu0 0.0
    %3792 = vmatpush2.msra.mxu0 0.0
    %3793 = vmatprep.subr.mxu0 0.0
    %3794 = vmatpush2.msra.mxu0 0.0
    %3795 = vmatprep.subr.mxu0 0.0
    %3796 = vmatpush2.msra.mxu0 0.0
    %3797 = vmatprep.subr.mxu0 0.0
    %3798 = vmatpush2.msra.mxu0 0.0
    %3799 = vmatprep.subr.mxu0 0.0
    %3800 = vmatpush2.msra.mxu0 0.0
    %3801 = vmatprep.subr.mxu0 0.0
    %3802 = vmatpush2.msra.mxu0 0.0
    %3803 = vmatprep.subr.mxu0 0.0
    %3804 = vmatpush2.msra.mxu0 0.0
    %3805 = vmatprep.subr.mxu0 0.0
    %3806 = vmatpush2.msra.mxu0 0.0
    %3807 = vmatprep.subr.mxu0 0.0
    %3808 = vmatpush2.msra.mxu0 0.0
    %3809 = vmatprep.subr.mxu0 0.0
    %3810 = vmatpush2.msra.mxu0 0.0
    %3811 = vmatprep.subr.mxu0 0.0
    %3812 = vmatpush2.msra.mxu0 0.0
    %3813 = vmatprep.subr.mxu0 0.0
    %3814 = vmatpush2.msra.mxu0 0.0
    %3815 = vmatprep.subr.mxu0 0.0
    %3816 = vmatpush2.msra.mxu0 0.0
    %3817 = vmatprep.mubr.f32.mxu0 0.0
    %v3818 = vand.u32 %v3337, 4294901760
    %3819 = vmatmul.mubr.f32.gmra.mxu0 %v3818
    %v3820 = vpop.f32.mrf.mxu0
    %v3821 = vadd.f32 %v3746, %v3820
    %v3822 = vpop.f32.mrf.mxu0
    %3823 = vdwg.mxu0
    %v3824 = vmul.f32 %v18, %v20
    %v3825 = vmul.f32 %v19, %v21
    %3826 = vmatprep.subr.mxu0 0.0
    %3827 = vmatpush1.msra.mxu0 0.0
    %3828 = vmatprep.subr.mxu0 0.0
    %3829 = vmatpush1.msra.mxu0 0.0
    %3830 = vmatprep.subr.mxu0 0.0
    %3831 = vmatpush1.msra.mxu0 0.0
    %3832 = vmatprep.subr.mxu0 0.0
    %3833 = vmatpush1.msra.mxu0 0.0
    %3834 = vmatprep.subr.mxu0 0.0
    %3835 = vmatpush1.msra.mxu0 0.0
    %3836 = vmatprep.subr.mxu0 0.0
    %3837 = vmatpush1.msra.mxu0 0.0
    %3838 = vmatprep.subr.mxu0 0.0
    %3839 = vmatpush1.msra.mxu0 0.0
    %3840 = vmatprep.subr.mxu0 0.0
    %3841 = vmatpush1.msra.mxu0 0.0
    %3842 = vmatprep.subr.mxu0 0.0
    %3843 = vmatpush1.msra.mxu0 0.0
    %3844 = vmatprep.subr.mxu0 0.0
    %3845 = vmatpush1.msra.mxu0 0.0
    %3846 = vmatprep.subr.mxu0 0.0
    %3847 = vmatpush1.msra.mxu0 0.0
    %3848 = vmatprep.subr.mxu0 0.0
    %3849 = vmatpush1.msra.mxu0 0.0
    %3850 = vmatprep.subr.mxu0 0.0
    %3851 = vmatpush1.msra.mxu0 0.0
    %3852 = vmatprep.subr.mxu0 0.0
    %3853 = vmatpush1.msra.mxu0 0.0
    %3854 = vmatprep.subr.mxu0 0.0
    %v3855 = vand.u32 %v3825, 4294901760
    %3856 = vmatpush1.msra.mxu0 %v3855
    %3857 = vmatprep.subr.mxu0 0.0
    %v3858 = vand.u32 %v3824, 4294901760
    %3859 = vmatpush1.msra.mxu0 %v3858
    %3860 = vmatprep.subr.mxu0 0.0
    %3861 = vmatpush2.msra.mxu0 0.0
    %3862 = vmatprep.subr.mxu0 0.0
    %3863 = vmatpush2.msra.mxu0 0.0
    %3864 = vmatprep.subr.mxu0 0.0
    %3865 = vmatpush2.msra.mxu0 0.0
    %3866 = vmatprep.subr.mxu0 0.0
    %3867 = vmatpush2.msra.mxu0 0.0
    %3868 = vmatprep.subr.mxu0 0.0
    %3869 = vmatpush2.msra.mxu0 0.0
    %3870 = vmatprep.subr.mxu0 0.0
    %3871 = vmatpush2.msra.mxu0 0.0
    %3872 = vmatprep.subr.mxu0 0.0
    %3873 = vmatpush2.msra.mxu0 0.0
    %3874 = vmatprep.subr.mxu0 0.0
    %3875 = vmatpush2.msra.mxu0 0.0
    %3876 = vmatprep.subr.mxu0 0.0
    %3877 = vmatpush2.msra.mxu0 0.0
    %3878 = vmatprep.subr.mxu0 0.0
    %3879 = vmatpush2.msra.mxu0 0.0
    %3880 = vmatprep.subr.mxu0 0.0
    %3881 = vmatpush2.msra.mxu0 0.0
    %3882 = vmatprep.subr.mxu0 0.0
    %3883 = vmatpush2.msra.mxu0 0.0
    %3884 = vmatprep.subr.mxu0 0.0
    %3885 = vmatpush2.msra.mxu0 0.0
    %3886 = vmatprep.subr.mxu0 0.0
    %3887 = vmatpush2.msra.mxu0 0.0
    %3888 = vmatprep.subr.mxu0 0.0
    %3889 = vmatpush2.msra.mxu0 0.0
    %3890 = vmatprep.subr.mxu0 0.0
    %3891 = vmatpush2.msra.mxu0 0.0
    %3892 = vmatprep.mubr.f32.mxu0 0.0
    %v3893 = vand.u32 %v29, 4294901760
    %v3894 = vsub.f32 %v29, %v3893
    %v3895 = vand.u32 %v3894, 4294901760
    %v3896 = vsub.f32 %v3894, %v3895
    %v3897 = vand.u32 %v3896, 4294901760
    %3898 = vmatmul.mubr.f32.gmra.mxu0 %v3897
    %v3899 = vpop.f32.mrf.mxu0
    %v3900 = vadd.f32 0.0, %v3899
    %v3901 = vpop.f32.mrf.mxu0
    %3902 = vdwg.mxu0
    %3903 = vmatprep.subr.mxu0 0.0
    %3904 = vmatpush1.msra.mxu0 0.0
    %3905 = vmatprep.subr.mxu0 0.0
    %3906 = vmatpush1.msra.mxu0 0.0
    %3907 = vmatprep.subr.mxu0 0.0
    %3908 = vmatpush1.msra.mxu0 0.0
    %3909 = vmatprep.subr.mxu0 0.0
    %3910 = vmatpush1.msra.mxu0 0.0
    %3911 = vmatprep.subr.mxu0 0.0
    %3912 = vmatpush1.msra.mxu0 0.0
    %3913 = vmatprep.subr.mxu0 0.0
    %3914 = vmatpush1.msra.mxu0 0.0
    %3915 = vmatprep.subr.mxu0 0.0
    %3916 = vmatpush1.msra.mxu0 0.0
    %3917 = vmatprep.subr.mxu0 0.0
    %3918 = vmatpush1.msra.mxu0 0.0
    %3919 = vmatprep.subr.mxu0 0.0
    %3920 = vmatpush1.msra.mxu0 0.0
    %3921 = vmatprep.subr.mxu0 0.0
    %3922 = vmatpush1.msra.mxu0 0.0
    %3923 = vmatprep.subr.mxu0 0.0
    %3924 = vmatpush1.msra.mxu0 0.0
    %3925 = vmatprep.subr.mxu0 0.0
    %3926 = vmatpush1.msra.mxu0 0.0
    %3927 = vmatprep.subr.mxu0 0.0
    %3928 = vmatpush1.msra.mxu0 0.0
    %3929 = vmatprep.subr.mxu0 0.0
    %3930 = vmatpush1.msra.mxu0 0.0
    %3931 = vmatprep.subr.mxu0 0.0
    %v3932 = vand.u32 %v3825, 4294901760
    %v3933 = vsub.f32 %v3825, %v3932
    %v3934 = vand.u32 %v3933, 4294901760
    %v3935 = vsub.f32 %v3933, %v3934
    %v3936 = vand.u32 %v3935, 4294901760
    %3937 = vmatpush1.msra.mxu0 %v3936
    %3938 = vmatprep.subr.mxu0 0.0
    %v3939 = vand.u32 %v3824, 4294901760
    %v3940 = vsub.f32 %v3824, %v3939
    %v3941 = vand.u32 %v3940, 4294901760
    %v3942 = vsub.f32 %v3940, %v3941
    %v3943 = vand.u32 %v3942, 4294901760
    %3944 = vmatpush1.msra.mxu0 %v3943
    %3945 = vmatprep.subr.mxu0 0.0
    %3946 = vmatpush2.msra.mxu0 0.0
    %3947 = vmatprep.subr.mxu0 0.0
    %3948 = vmatpush2.msra.mxu0 0.0
    %3949 = vmatprep.subr.mxu0 0.0
    %3950 = vmatpush2.msra.mxu0 0.0
    %3951 = vmatprep.subr.mxu0 0.0
    %3952 = vmatpush2.msra.mxu0 0.0
    %3953 = vmatprep.subr.mxu0 0.0
    %3954 = vmatpush2.msra.mxu0 0.0
    %3955 = vmatprep.subr.mxu0 0.0
    %3956 = vmatpush2.msra.mxu0 0.0
    %3957 = vmatprep.subr.mxu0 0.0
    %3958 = vmatpush2.msra.mxu0 0.0
    %3959 = vmatprep.subr.mxu0 0.0
    %3960 = vmatpush2.msra.mxu0 0.0
    %3961 = vmatprep.subr.mxu0 0.0
    %3962 = vmatpush2.msra.mxu0 0.0
    %3963 = vmatprep.subr.mxu0 0.0
    %3964 = vmatpush2.msra.mxu0 0.0
    %3965 = vmatprep.subr.mxu0 0.0
    %3966 = vmatpush2.msra.mxu0 0.0
    %3967 = vmatprep.subr.mxu0 0.0
    %3968 = vmatpush2.msra.mxu0 0.0
    %3969 = vmatprep.subr.mxu0 0.0
    %3970 = vmatpush2.msra.mxu0 0.0
    %3971 = vmatprep.subr.mxu0 0.0
    %3972 = vmatpush2.msra.mxu0 0.0
    %3973 = vmatprep.subr.mxu0 0.0
    %3974 = vmatpush2.msra.mxu0 0.0
    %3975 = vmatprep.subr.mxu0 0.0
    %3976 = vmatpush2.msra.mxu0 0.0
    %3977 = vmatprep.mubr.f32.mxu0 0.0
    %v3978 = vand.u32 %v29, 4294901760
    %3979 = vmatmul.mubr.f32.gmra.mxu0 %v3978
    %v3980 = vpop.f32.mrf.mxu0
    %v3981 = vadd.f32 %v3900, %v3980
    %v3982 = vpop.f32.mrf.mxu0
    %3983 = vdwg.mxu0
    %3984 = vmatprep.subr.mxu0 0.0
    %3985 = vmatpush1.msra.mxu0 0.0
    %3986 = vmatprep.subr.mxu0 0.0
    %3987 = vmatpush1.msra.mxu0 0.0
    %3988 = vmatprep.subr.mxu0 0.0
    %3989 = vmatpush1.msra.mxu0 0.0
    %3990 = vmatprep.subr.mxu0 0.0
    %3991 = vmatpush1.msra.mxu0 0.0
    %3992 = vmatprep.subr.mxu0 0.0
    %3993 = vmatpush1.msra.mxu0 0.0
    %3994 = vmatprep.subr.mxu0 0.0
    %3995 = vmatpush1.msra.mxu0 0.0
    %3996 = vmatprep.subr.mxu0 0.0
    %3997 = vmatpush1.msra.mxu0 0.0
    %3998 = vmatprep.subr.mxu0 0.0
    %3999 = vmatpush1.msra.mxu0 0.0
    %4000 = vmatprep.subr.mxu0 0.0
    %4001 = vmatpush1.msra.mxu0 0.0
    %4002 = vmatprep.subr.mxu0 0.0
    %4003 = vmatpush1.msra.mxu0 0.0
    %4004 = vmatprep.subr.mxu0 0.0
    %4005 = vmatpush1.msra.mxu0 0.0
    %4006 = vmatprep.subr.mxu0 0.0
    %4007 = vmatpush1.msra.mxu0 0.0
    %4008 = vmatprep.subr.mxu0 0.0
    %4009 = vmatpush1.msra.mxu0 0.0
    %4010 = vmatprep.subr.mxu0 0.0
    %4011 = vmatpush1.msra.mxu0 0.0
    %4012 = vmatprep.subr.mxu0 0.0
    %v4013 = vand.u32 %v3825, 4294901760
    %v4014 = vsub.f32 %v3825, %v4013
    %4015 = vmatpush1.msra.mxu0 %v4014
    %4016 = vmatprep.subr.mxu0 0.0
    %v4017 = vand.u32 %v3824, 4294901760
    %v4018 = vsub.f32 %v3824, %v4017
    %4019 = vmatpush1.msra.mxu0 %v4018
    %4020 = vmatprep.subr.mxu0 0.0
    %4021 = vmatpush2.msra.mxu0 0.0
    %4022 = vmatprep.subr.mxu0 0.0
    %4023 = vmatpush2.msra.mxu0 0.0
    %4024 = vmatprep.subr.mxu0 0.0
    %4025 = vmatpush2.msra.mxu0 0.0
    %4026 = vmatprep.subr.mxu0 0.0
    %4027 = vmatpush2.msra.mxu0 0.0
    %4028 = vmatprep.subr.mxu0 0.0
    %4029 = vmatpush2.msra.mxu0 0.0
    %4030 = vmatprep.subr.mxu0 0.0
    %4031 = vmatpush2.msra.mxu0 0.0
    %4032 = vmatprep.subr.mxu0 0.0
    %4033 = vmatpush2.msra.mxu0 0.0
    %4034 = vmatprep.subr.mxu0 0.0
    %4035 = vmatpush2.msra.mxu0 0.0
    %4036 = vmatprep.subr.mxu0 0.0
    %4037 = vmatpush2.msra.mxu0 0.0
    %4038 = vmatprep.subr.mxu0 0.0
    %4039 = vmatpush2.msra.mxu0 0.0
    %4040 = vmatprep.subr.mxu0 0.0
    %4041 = vmatpush2.msra.mxu0 0.0
    %4042 = vmatprep.subr.mxu0 0.0
    %4043 = vmatpush2.msra.mxu0 0.0
    %4044 = vmatprep.subr.mxu0 0.0
    %4045 = vmatpush2.msra.mxu0 0.0
    %4046 = vmatprep.subr.mxu0 0.0
    %4047 = vmatpush2.msra.mxu0 0.0
    %4048 = vmatprep.subr.mxu0 0.0
    %4049 = vmatpush2.msra.mxu0 0.0
    %4050 = vmatprep.subr.mxu0 0.0
    %4051 = vmatpush2.msra.mxu0 0.0
    %4052 = vmatprep.mubr.f32.mxu0 0.0
    %v4053 = vand.u32 %v29, 4294901760
    %v4054 = vsub.f32 %v29, %v4053
    %4055 = vmatmul.mubr.f32.gmra.mxu0 %v4054
    %v4056 = vpop.f32.mrf.mxu0
    %v4057 = vadd.f32 %v3981, %v4056
    %v4058 = vpop.f32.mrf.mxu0
    %4059 = vdwg.mxu0
    %4060 = vmatprep.subr.mxu0 0.0
    %4061 = vmatpush1.msra.mxu0 0.0
    %4062 = vmatprep.subr.mxu0 0.0
    %4063 = vmatpush1.msra.mxu0 0.0
    %4064 = vmatprep.subr.mxu0 0.0
    %4065 = vmatpush1.msra.mxu0 0.0
    %4066 = vmatprep.subr.mxu0 0.0
    %4067 = vmatpush1.msra.mxu0 0.0
    %4068 = vmatprep.subr.mxu0 0.0
    %4069 = vmatpush1.msra.mxu0 0.0
    %4070 = vmatprep.subr.mxu0 0.0
    %4071 = vmatpush1.msra.mxu0 0.0
    %4072 = vmatprep.subr.mxu0 0.0
    %4073 = vmatpush1.msra.mxu0 0.0
    %4074 = vmatprep.subr.mxu0 0.0
    %4075 = vmatpush1.msra.mxu0 0.0
    %4076 = vmatprep.subr.mxu0 0.0
    %4077 = vmatpush1.msra.mxu0 0.0
    %4078 = vmatprep.subr.mxu0 0.0
    %4079 = vmatpush1.msra.mxu0 0.0
    %4080 = vmatprep.subr.mxu0 0.0
    %4081 = vmatpush1.msra.mxu0 0.0
    %4082 = vmatprep.subr.mxu0 0.0
    %4083 = vmatpush1.msra.mxu0 0.0
    %4084 = vmatprep.subr.mxu0 0.0
    %4085 = vmatpush1.msra.mxu0 0.0
    %4086 = vmatprep.subr.mxu0 0.0
    %4087 = vmatpush1.msra.mxu0 0.0
    %4088 = vmatprep.subr.mxu0 0.0
    %v4089 = vand.u32 %v3825, 4294901760
    %4090 = vmatpush1.msra.mxu0 %v4089
    %4091 = vmatprep.subr.mxu0 0.0
    %v4092 = vand.u32 %v3824, 4294901760
    %4093 = vmatpush1.msra.mxu0 %v4092
    %4094 = vmatprep.subr.mxu0 0.0
    %4095 = vmatpush2.msra.mxu0 0.0
    %4096 = vmatprep.subr.mxu0 0.0
    %4097 = vmatpush2.msra.mxu0 0.0
    %4098 = vmatprep.subr.mxu0 0.0
    %4099 = vmatpush2.msra.mxu0 0.0
    %4100 = vmatprep.subr.mxu0 0.0
    %4101 = vmatpush2.msra.mxu0 0.0
    %4102 = vmatprep.subr.mxu0 0.0
    %4103 = vmatpush2.msra.mxu0 0.0
    %4104 = vmatprep.subr.mxu0 0.0
    %4105 = vmatpush2.msra.mxu0 0.0
    %4106 = vmatprep.subr.mxu0 0.0
    %4107 = vmatpush2.msra.mxu0 0.0
    %4108 = vmatprep.subr.mxu0 0.0
    %4109 = vmatpush2.msra.mxu0 0.0
    %4110 = vmatprep.subr.mxu0 0.0
    %4111 = vmatpush2.msra.mxu0 0.0
    %4112 = vmatprep.subr.mxu0 0.0
    %4113 = vmatpush2.msra.mxu0 0.0
    %4114 = vmatprep.subr.mxu0 0.0
    %4115 = vmatpush2.msra.mxu0 0.0
    %4116 = vmatprep.subr.mxu0 0.0
    %4117 = vmatpush2.msra.mxu0 0.0
    %4118 = vmatprep.subr.mxu0 0.0
    %4119 = vmatpush2.msra.mxu0 0.0
    %4120 = vmatprep.subr.mxu0 0.0
    %4121 = vmatpush2.msra.mxu0 0.0
    %4122 = vmatprep.subr.mxu0 0.0
    %4123 = vmatpush2.msra.mxu0 0.0
    %4124 = vmatprep.subr.mxu0 0.0
    %4125 = vmatpush2.msra.mxu0 0.0
    %4126 = vmatprep.mubr.f32.mxu0 0.0
    %v4127 = vand.u32 %v29, 4294901760
    %v4128 = vsub.f32 %v29, %v4127
    %v4129 = vand.u32 %v4128, 4294901760
    %4130 = vmatmul.mubr.f32.gmra.mxu0 %v4129
    %v4131 = vpop.f32.mrf.mxu0
    %v4132 = vadd.f32 %v4057, %v4131
    %v4133 = vpop.f32.mrf.mxu0
    %4134 = vdwg.mxu0
    %4135 = vmatprep.subr.mxu0 0.0
    %4136 = vmatpush1.msra.mxu0 0.0
    %4137 = vmatprep.subr.mxu0 0.0
    %4138 = vmatpush1.msra.mxu0 0.0
    %4139 = vmatprep.subr.mxu0 0.0
    %4140 = vmatpush1.msra.mxu0 0.0
    %4141 = vmatprep.subr.mxu0 0.0
    %4142 = vmatpush1.msra.mxu0 0.0
    %4143 = vmatprep.subr.mxu0 0.0
    %4144 = vmatpush1.msra.mxu0 0.0
    %4145 = vmatprep.subr.mxu0 0.0
    %4146 = vmatpush1.msra.mxu0 0.0
    %4147 = vmatprep.subr.mxu0 0.0
    %4148 = vmatpush1.msra.mxu0 0.0
    %4149 = vmatprep.subr.mxu0 0.0
    %4150 = vmatpush1.msra.mxu0 0.0
    %4151 = vmatprep.subr.mxu0 0.0
    %4152 = vmatpush1.msra.mxu0 0.0
    %4153 = vmatprep.subr.mxu0 0.0
    %4154 = vmatpush1.msra.mxu0 0.0
    %4155 = vmatprep.subr.mxu0 0.0
    %4156 = vmatpush1.msra.mxu0 0.0
    %4157 = vmatprep.subr.mxu0 0.0
    %4158 = vmatpush1.msra.mxu0 0.0
    %4159 = vmatprep.subr.mxu0 0.0
    %4160 = vmatpush1.msra.mxu0 0.0
    %4161 = vmatprep.subr.mxu0 0.0
    %4162 = vmatpush1.msra.mxu0 0.0
    %4163 = vmatprep.subr.mxu0 0.0
    %v4164 = vand.u32 %v3825, 4294901760
    %v4165 = vsub.f32 %v3825, %v4164
    %v4166 = vand.u32 %v4165, 4294901760
    %4167 = vmatpush1.msra.mxu0 %v4166
    %4168 = vmatprep.subr.mxu0 0.0
    %v4169 = vand.u32 %v3824, 4294901760
    %v4170 = vsub.f32 %v3824, %v4169
    %v4171 = vand.u32 %v4170, 4294901760
    %4172 = vmatpush1.msra.mxu0 %v4171
    %4173 = vmatprep.subr.mxu0 0.0
    %4174 = vmatpush2.msra.mxu0 0.0
    %4175 = vmatprep.subr.mxu0 0.0
    %4176 = vmatpush2.msra.mxu0 0.0
    %4177 = vmatprep.subr.mxu0 0.0
    %4178 = vmatpush2.msra.mxu0 0.0
    %4179 = vmatprep.subr.mxu0 0.0
    %4180 = vmatpush2.msra.mxu0 0.0
    %4181 = vmatprep.subr.mxu0 0.0
    %4182 = vmatpush2.msra.mxu0 0.0
    %4183 = vmatprep.subr.mxu0 0.0
    %4184 = vmatpush2.msra.mxu0 0.0
    %4185 = vmatprep.subr.mxu0 0.0
    %4186 = vmatpush2.msra.mxu0 0.0
    %4187 = vmatprep.subr.mxu0 0.0
    %4188 = vmatpush2.msra.mxu0 0.0
    %4189 = vmatprep.subr.mxu0 0.0
    %4190 = vmatpush2.msra.mxu0 0.0
    %4191 = vmatprep.subr.mxu0 0.0
    %4192 = vmatpush2.msra.mxu0 0.0
    %4193 = vmatprep.subr.mxu0 0.0
    %4194 = vmatpush2.msra.mxu0 0.0
    %4195 = vmatprep.subr.mxu0 0.0
    %4196 = vmatpush2.msra.mxu0 0.0
    %4197 = vmatprep.subr.mxu0 0.0
    %4198 = vmatpush2.msra.mxu0 0.0
    %4199 = vmatprep.subr.mxu0 0.0
    %4200 = vmatpush2.msra.mxu0 0.0
    %4201 = vmatprep.subr.mxu0 0.0
    %4202 = vmatpush2.msra.mxu0 0.0
    %4203 = vmatprep.subr.mxu0 0.0
    %4204 = vmatpush2.msra.mxu0 0.0
    %4205 = vmatprep.mubr.f32.mxu0 0.0
    %v4206 = vand.u32 %v29, 4294901760
    %4207 = vmatmul.mubr.f32.gmra.mxu0 %v4206
    %v4208 = vpop.f32.mrf.mxu0
    %v4209 = vadd.f32 %v4132, %v4208
    %v4210 = vpop.f32.mrf.mxu0
    %4211 = vdwg.mxu0
    %4212 = vmatprep.subr.mxu0 0.0
    %4213 = vmatpush1.msra.mxu0 0.0
    %4214 = vmatprep.subr.mxu0 0.0
    %4215 = vmatpush1.msra.mxu0 0.0
    %4216 = vmatprep.subr.mxu0 0.0
    %4217 = vmatpush1.msra.mxu0 0.0
    %4218 = vmatprep.subr.mxu0 0.0
    %4219 = vmatpush1.msra.mxu0 0.0
    %4220 = vmatprep.subr.mxu0 0.0
    %4221 = vmatpush1.msra.mxu0 0.0
    %4222 = vmatprep.subr.mxu0 0.0
    %4223 = vmatpush1.msra.mxu0 0.0
    %4224 = vmatprep.subr.mxu0 0.0
    %4225 = vmatpush1.msra.mxu0 0.0
    %4226 = vmatprep.subr.mxu0 0.0
    %4227 = vmatpush1.msra.mxu0 0.0
    %4228 = vmatprep.subr.mxu0 0.0
    %4229 = vmatpush1.msra.mxu0 0.0
    %4230 = vmatprep.subr.mxu0 0.0
    %4231 = vmatpush1.msra.mxu0 0.0
    %4232 = vmatprep.subr.mxu0 0.0
    %4233 = vmatpush1.msra.mxu0 0.0
    %4234 = vmatprep.subr.mxu0 0.0
    %4235 = vmatpush1.msra.mxu0 0.0
    %4236 = vmatprep.subr.mxu0 0.0
    %4237 = vmatpush1.msra.mxu0 0.0
    %4238 = vmatprep.subr.mxu0 0.0
    %4239 = vmatpush1.msra.mxu0 0.0
    %4240 = vmatprep.subr.mxu0 0.0
    %v4241 = vand.u32 %v3825, 4294901760
    %4242 = vmatpush1.msra.mxu0 %v4241
    %4243 = vmatprep.subr.mxu0 0.0
    %v4244 = vand.u32 %v3824, 4294901760
    %4245 = vmatpush1.msra.mxu0 %v4244
    %4246 = vmatprep.subr.mxu0 0.0
    %4247 = vmatpush2.msra.mxu0 0.0
    %4248 = vmatprep.subr.mxu0 0.0
    %4249 = vmatpush2.msra.mxu0 0.0
    %4250 = vmatprep.subr.mxu0 0.0
    %4251 = vmatpush2.msra.mxu0 0.0
    %4252 = vmatprep.subr.mxu0 0.0
    %4253 = vmatpush2.msra.mxu0 0.0
    %4254 = vmatprep.subr.mxu0 0.0
    %4255 = vmatpush2.msra.mxu0 0.0
    %4256 = vmatprep.subr.mxu0 0.0
    %4257 = vmatpush2.msra.mxu0 0.0
    %4258 = vmatprep.subr.mxu0 0.0
    %4259 = vmatpush2.msra.mxu0 0.0
    %4260 = vmatprep.subr.mxu0 0.0
    %4261 = vmatpush2.msra.mxu0 0.0
    %4262 = vmatprep.subr.mxu0 0.0
    %4263 = vmatpush2.msra.mxu0 0.0
    %4264 = vmatprep.subr.mxu0 0.0
    %4265 = vmatpush2.msra.mxu0 0.0
    %4266 = vmatprep.subr.mxu0 0.0
    %4267 = vmatpush2.msra.mxu0 0.0
    %4268 = vmatprep.subr.mxu0 0.0
    %4269 = vmatpush2.msra.mxu0 0.0
    %4270 = vmatprep.subr.mxu0 0.0
    %4271 = vmatpush2.msra.mxu0 0.0
    %4272 = vmatprep.subr.mxu0 0.0
    %4273 = vmatpush2.msra.mxu0 0.0
    %4274 = vmatprep.subr.mxu0 0.0
    %4275 = vmatpush2.msra.mxu0 0.0
    %4276 = vmatprep.subr.mxu0 0.0
    %4277 = vmatpush2.msra.mxu0 0.0
    %4278 = vmatprep.mubr.f32.mxu0 0.0
    %v4279 = vand.u32 %v29, 4294901760
    %4280 = vmatmul.mubr.f32.gmra.mxu0 %v4279
    %v4281 = vpop.f32.mrf.mxu0
    %v4282 = vadd.f32 %v4209, %v4281
    %v4283 = vpop.f32.mrf.mxu0
    %4284 = vdwg.mxu0
    %v4286 = vsel %vm490, %v4282, 0
    %4288 = vmatprep.subr.mxu0 0.0
    %4289 = vmatpush1.msra.mxu0 0.0
    %4290 = vmatprep.subr.mxu0 0.0
    %4291 = vmatpush1.msra.mxu0 0.0
    %4292 = vmatprep.subr.mxu0 0.0
    %4293 = vmatpush1.msra.mxu0 0.0
    %4294 = vmatprep.subr.mxu0 0.0
    %4295 = vmatpush1.msra.mxu0 0.0
    %4296 = vmatprep.subr.mxu0 0.0
    %4297 = vmatpush1.msra.mxu0 0.0
    %4298 = vmatprep.subr.mxu0 0.0
    %4299 = vmatpush1.msra.mxu0 0.0
    %4300 = vmatprep.subr.mxu0 0.0
    %4301 = vmatpush1.msra.mxu0 0.0
    %4302 = vmatprep.subr.mxu0 0.0
    %4303 = vmatpush1.msra.mxu0 0.0
    %4304 = vmatprep.subr.mxu0 0.0
    %4305 = vmatpush1.msra.mxu0 0.0
    %4306 = vmatprep.subr.mxu0 0.0
    %4307 = vmatpush1.msra.mxu0 0.0
    %4308 = vmatprep.subr.mxu0 0.0
    %4309 = vmatpush1.msra.mxu0 0.0
    %4310 = vmatprep.subr.mxu0 0.0
    %4311 = vmatpush1.msra.mxu0 0.0
    %4312 = vmatprep.subr.mxu0 0.0
    %v4313 = vand.u32 %v26, 4294901760
    %4314 = vmatpush1.msra.mxu0 %v4313
    %4315 = vmatprep.subr.mxu0 0.0
    %v4316 = vand.u32 %v25, 4294901760
    %4317 = vmatpush1.msra.mxu0 %v4316
    %4318 = vmatprep.subr.mxu0 0.0
    %v4319 = vand.u32 %v24, 4294901760
    %4320 = vmatpush1.msra.mxu0 %v4319
    %4321 = vmatprep.subr.mxu0 0.0
    %v4322 = vand.u32 %v23, 4294901760
    %4323 = vmatpush1.msra.mxu0 %v4322
    %4324 = vmatprep.subr.mxu0 0.0
    %4325 = vmatpush2.msra.mxu0 0.0
    %4326 = vmatprep.subr.mxu0 0.0
    %4327 = vmatpush2.msra.mxu0 0.0
    %4328 = vmatprep.subr.mxu0 0.0
    %4329 = vmatpush2.msra.mxu0 0.0
    %4330 = vmatprep.subr.mxu0 0.0
    %4331 = vmatpush2.msra.mxu0 0.0
    %4332 = vmatprep.subr.mxu0 0.0
    %4333 = vmatpush2.msra.mxu0 0.0
    %4334 = vmatprep.subr.mxu0 0.0
    %4335 = vmatpush2.msra.mxu0 0.0
    %4336 = vmatprep.subr.mxu0 0.0
    %4337 = vmatpush2.msra.mxu0 0.0
    %4338 = vmatprep.subr.mxu0 0.0
    %4339 = vmatpush2.msra.mxu0 0.0
    %4340 = vmatprep.subr.mxu0 0.0
    %4341 = vmatpush2.msra.mxu0 0.0
    %4342 = vmatprep.subr.mxu0 0.0
    %4343 = vmatpush2.msra.mxu0 0.0
    %4344 = vmatprep.subr.mxu0 0.0
    %4345 = vmatpush2.msra.mxu0 0.0
    %4346 = vmatprep.subr.mxu0 0.0
    %4347 = vmatpush2.msra.mxu0 0.0
    %4348 = vmatprep.subr.mxu0 0.0
    %4349 = vmatpush2.msra.mxu0 0.0
    %4350 = vmatprep.subr.mxu0 0.0
    %4351 = vmatpush2.msra.mxu0 0.0
    %4352 = vmatprep.subr.mxu0 0.0
    %4353 = vmatpush2.msra.mxu0 0.0
    %4354 = vmatprep.subr.mxu0 0.0
    %4355 = vmatpush2.msra.mxu0 0.0
    %4356 = vmatprep.mubr.f32.mxu0 0.0
    %v4357 = vand.u32 %v4286, 4294901760
    %v4358 = vsub.f32 %v4286, %v4357
    %v4359 = vand.u32 %v4358, 4294901760
    %v4360 = vsub.f32 %v4358, %v4359
    %v4361 = vand.u32 %v4360, 4294901760
    %4362 = vmatmul.mubr.f32.gmra.mxu0 %v4361
    %v4363 = vpop.f32.mrf.mxu0
    %v4364 = vadd.f32 0.0, %v4363
    %v4365 = vpop.f32.mrf.mxu0
    %4366 = vdwg.mxu0
    %4367 = vmatprep.subr.mxu0 0.0
    %4368 = vmatpush1.msra.mxu0 0.0
    %4369 = vmatprep.subr.mxu0 0.0
    %4370 = vmatpush1.msra.mxu0 0.0
    %4371 = vmatprep.subr.mxu0 0.0
    %4372 = vmatpush1.msra.mxu0 0.0
    %4373 = vmatprep.subr.mxu0 0.0
    %4374 = vmatpush1.msra.mxu0 0.0
    %4375 = vmatprep.subr.mxu0 0.0
    %4376 = vmatpush1.msra.mxu0 0.0
    %4377 = vmatprep.subr.mxu0 0.0
    %4378 = vmatpush1.msra.mxu0 0.0
    %4379 = vmatprep.subr.mxu0 0.0
    %4380 = vmatpush1.msra.mxu0 0.0
    %4381 = vmatprep.subr.mxu0 0.0
    %4382 = vmatpush1.msra.mxu0 0.0
    %4383 = vmatprep.subr.mxu0 0.0
    %4384 = vmatpush1.msra.mxu0 0.0
    %4385 = vmatprep.subr.mxu0 0.0
    %4386 = vmatpush1.msra.mxu0 0.0
    %4387 = vmatprep.subr.mxu0 0.0
    %4388 = vmatpush1.msra.mxu0 0.0
    %4389 = vmatprep.subr.mxu0 0.0
    %4390 = vmatpush1.msra.mxu0 0.0
    %4391 = vmatprep.subr.mxu0 0.0
    %v4392 = vand.u32 %v26, 4294901760
    %v4393 = vsub.f32 %v26, %v4392
    %v4394 = vand.u32 %v4393, 4294901760
    %v4395 = vsub.f32 %v4393, %v4394
    %v4396 = vand.u32 %v4395, 4294901760
    %4397 = vmatpush1.msra.mxu0 %v4396
    %4398 = vmatprep.subr.mxu0 0.0
    %v4399 = vand.u32 %v25, 4294901760
    %v4400 = vsub.f32 %v25, %v4399
    %v4401 = vand.u32 %v4400, 4294901760
    %v4402 = vsub.f32 %v4400, %v4401
    %v4403 = vand.u32 %v4402, 4294901760
    %4404 = vmatpush1.msra.mxu0 %v4403
    %4405 = vmatprep.subr.mxu0 0.0
    %v4406 = vand.u32 %v24, 4294901760
    %v4407 = vsub.f32 %v24, %v4406
    %v4408 = vand.u32 %v4407, 4294901760
    %v4409 = vsub.f32 %v4407, %v4408
    %v4410 = vand.u32 %v4409, 4294901760
    %4411 = vmatpush1.msra.mxu0 %v4410
    %4412 = vmatprep.subr.mxu0 0.0
    %v4413 = vand.u32 %v23, 4294901760
    %v4414 = vsub.f32 %v23, %v4413
    %v4415 = vand.u32 %v4414, 4294901760
    %v4416 = vsub.f32 %v4414, %v4415
    %v4417 = vand.u32 %v4416, 4294901760
    %4418 = vmatpush1.msra.mxu0 %v4417
    %4419 = vmatprep.subr.mxu0 0.0
    %4420 = vmatpush2.msra.mxu0 0.0
    %4421 = vmatprep.subr.mxu0 0.0
    %4422 = vmatpush2.msra.mxu0 0.0
    %4423 = vmatprep.subr.mxu0 0.0
    %4424 = vmatpush2.msra.mxu0 0.0
    %4425 = vmatprep.subr.mxu0 0.0
    %4426 = vmatpush2.msra.mxu0 0.0
    %4427 = vmatprep.subr.mxu0 0.0
    %4428 = vmatpush2.msra.mxu0 0.0
    %4429 = vmatprep.subr.mxu0 0.0
    %4430 = vmatpush2.msra.mxu0 0.0
    %4431 = vmatprep.subr.mxu0 0.0
    %4432 = vmatpush2.msra.mxu0 0.0
    %4433 = vmatprep.subr.mxu0 0.0
    %4434 = vmatpush2.msra.mxu0 0.0
    %4435 = vmatprep.subr.mxu0 0.0
    %4436 = vmatpush2.msra.mxu0 0.0
    %4437 = vmatprep.subr.mxu0 0.0
    %4438 = vmatpush2.msra.mxu0 0.0
    %4439 = vmatprep.subr.mxu0 0.0
    %4440 = vmatpush2.msra.mxu0 0.0
    %4441 = vmatprep.subr.mxu0 0.0
    %4442 = vmatpush2.msra.mxu0 0.0
    %4443 = vmatprep.subr.mxu0 0.0
    %4444 = vmatpush2.msra.mxu0 0.0
    %4445 = vmatprep.subr.mxu0 0.0
    %4446 = vmatpush2.msra.mxu0 0.0
    %4447 = vmatprep.subr.mxu0 0.0
    %4448 = vmatpush2.msra.mxu0 0.0
    %4449 = vmatprep.subr.mxu0 0.0
    %4450 = vmatpush2.msra.mxu0 0.0
    %4451 = vmatprep.mubr.f32.mxu0 0.0
    %v4452 = vand.u32 %v4286, 4294901760
    %4453 = vmatmul.mubr.f32.gmra.mxu0 %v4452
    %v4454 = vpop.f32.mrf.mxu0
    %v4455 = vadd.f32 %v4364, %v4454
    %v4456 = vpop.f32.mrf.mxu0
    %4457 = vdwg.mxu0
    %4458 = vmatprep.subr.mxu0 0.0
    %4459 = vmatpush1.msra.mxu0 0.0
    %4460 = vmatprep.subr.mxu0 0.0
    %4461 = vmatpush1.msra.mxu0 0.0
    %4462 = vmatprep.subr.mxu0 0.0
    %4463 = vmatpush1.msra.mxu0 0.0
    %4464 = vmatprep.subr.mxu0 0.0
    %4465 = vmatpush1.msra.mxu0 0.0
    %4466 = vmatprep.subr.mxu0 0.0
    %4467 = vmatpush1.msra.mxu0 0.0
    %4468 = vmatprep.subr.mxu0 0.0
    %4469 = vmatpush1.msra.mxu0 0.0
    %4470 = vmatprep.subr.mxu0 0.0
    %4471 = vmatpush1.msra.mxu0 0.0
    %4472 = vmatprep.subr.mxu0 0.0
    %4473 = vmatpush1.msra.mxu0 0.0
    %4474 = vmatprep.subr.mxu0 0.0
    %4475 = vmatpush1.msra.mxu0 0.0
    %4476 = vmatprep.subr.mxu0 0.0
    %4477 = vmatpush1.msra.mxu0 0.0
    %4478 = vmatprep.subr.mxu0 0.0
    %4479 = vmatpush1.msra.mxu0 0.0
    %4480 = vmatprep.subr.mxu0 0.0
    %4481 = vmatpush1.msra.mxu0 0.0
    %4482 = vmatprep.subr.mxu0 0.0
    %v4483 = vand.u32 %v26, 4294901760
    %v4484 = vsub.f32 %v26, %v4483
    %4485 = vmatpush1.msra.mxu0 %v4484
    %4486 = vmatprep.subr.mxu0 0.0
    %v4487 = vand.u32 %v25, 4294901760
    %v4488 = vsub.f32 %v25, %v4487
    %4489 = vmatpush1.msra.mxu0 %v4488
    %4490 = vmatprep.subr.mxu0 0.0
    %v4491 = vand.u32 %v24, 4294901760
    %v4492 = vsub.f32 %v24, %v4491
    %4493 = vmatpush1.msra.mxu0 %v4492
    %4494 = vmatprep.subr.mxu0 0.0
    %v4495 = vand.u32 %v23, 4294901760
    %v4496 = vsub.f32 %v23, %v4495
    %4497 = vmatpush1.msra.mxu0 %v4496
    %4498 = vmatprep.subr.mxu0 0.0
    %4499 = vmatpush2.msra.mxu0 0.0
    %4500 = vmatprep.subr.mxu0 0.0
    %4501 = vmatpush2.msra.mxu0 0.0
    %4502 = vmatprep.subr.mxu0 0.0
    %4503 = vmatpush2.msra.mxu0 0.0
    %4504 = vmatprep.subr.mxu0 0.0
    %4505 = vmatpush2.msra.mxu0 0.0
    %4506 = vmatprep.subr.mxu0 0.0
    %4507 = vmatpush2.msra.mxu0 0.0
    %4508 = vmatprep.subr.mxu0 0.0
    %4509 = vmatpush2.msra.mxu0 0.0
    %4510 = vmatprep.subr.mxu0 0.0
    %4511 = vmatpush2.msra.mxu0 0.0
    %4512 = vmatprep.subr.mxu0 0.0
    %4513 = vmatpush2.msra.mxu0 0.0
    %4514 = vmatprep.subr.mxu0 0.0
    %4515 = vmatpush2.msra.mxu0 0.0
    %4516 = vmatprep.subr.mxu0 0.0
    %4517 = vmatpush2.msra.mxu0 0.0
    %4518 = vmatprep.subr.mxu0 0.0
    %4519 = vmatpush2.msra.mxu0 0.0
    %4520 = vmatprep.subr.mxu0 0.0
    %4521 = vmatpush2.msra.mxu0 0.0
    %4522 = vmatprep.subr.mxu0 0.0
    %4523 = vmatpush2.msra.mxu0 0.0
    %4524 = vmatprep.subr.mxu0 0.0
    %4525 = vmatpush2.msra.mxu0 0.0
    %4526 = vmatprep.subr.mxu0 0.0
    %4527 = vmatpush2.msra.mxu0 0.0
    %4528 = vmatprep.subr.mxu0 0.0
    %4529 = vmatpush2.msra.mxu0 0.0
    %4530 = vmatprep.mubr.f32.mxu0 0.0
    %v4531 = vand.u32 %v4286, 4294901760
    %v4532 = vsub.f32 %v4286, %v4531
    %4533 = vmatmul.mubr.f32.gmra.mxu0 %v4532
    %v4534 = vpop.f32.mrf.mxu0
    %v4535 = vadd.f32 %v4455, %v4534
    %v4536 = vpop.f32.mrf.mxu0
    %4537 = vdwg.mxu0
    %4538 = vmatprep.subr.mxu0 0.0
    %4539 = vmatpush1.msra.mxu0 0.0
    %4540 = vmatprep.subr.mxu0 0.0
    %4541 = vmatpush1.msra.mxu0 0.0
    %4542 = vmatprep.subr.mxu0 0.0
    %4543 = vmatpush1.msra.mxu0 0.0
    %4544 = vmatprep.subr.mxu0 0.0
    %4545 = vmatpush1.msra.mxu0 0.0
    %4546 = vmatprep.subr.mxu0 0.0
    %4547 = vmatpush1.msra.mxu0 0.0
    %4548 = vmatprep.subr.mxu0 0.0
    %4549 = vmatpush1.msra.mxu0 0.0
    %4550 = vmatprep.subr.mxu0 0.0
    %4551 = vmatpush1.msra.mxu0 0.0
    %4552 = vmatprep.subr.mxu0 0.0
    %4553 = vmatpush1.msra.mxu0 0.0
    %4554 = vmatprep.subr.mxu0 0.0
    %4555 = vmatpush1.msra.mxu0 0.0
    %4556 = vmatprep.subr.mxu0 0.0
    %4557 = vmatpush1.msra.mxu0 0.0
    %4558 = vmatprep.subr.mxu0 0.0
    %4559 = vmatpush1.msra.mxu0 0.0
    %4560 = vmatprep.subr.mxu0 0.0
    %4561 = vmatpush1.msra.mxu0 0.0
    %4562 = vmatprep.subr.mxu0 0.0
    %v4563 = vand.u32 %v26, 4294901760
    %4564 = vmatpush1.msra.mxu0 %v4563
    %4565 = vmatprep.subr.mxu0 0.0
    %v4566 = vand.u32 %v25, 4294901760
    %4567 = vmatpush1.msra.mxu0 %v4566
    %4568 = vmatprep.subr.mxu0 0.0
    %v4569 = vand.u32 %v24, 4294901760
    %4570 = vmatpush1.msra.mxu0 %v4569
    %4571 = vmatprep.subr.mxu0 0.0
    %v4572 = vand.u32 %v23, 4294901760
    %4573 = vmatpush1.msra.mxu0 %v4572
    %4574 = vmatprep.subr.mxu0 0.0
    %4575 = vmatpush2.msra.mxu0 0.0
    %4576 = vmatprep.subr.mxu0 0.0
    %4577 = vmatpush2.msra.mxu0 0.0
    %4578 = vmatprep.subr.mxu0 0.0
    %4579 = vmatpush2.msra.mxu0 0.0
    %4580 = vmatprep.subr.mxu0 0.0
    %4581 = vmatpush2.msra.mxu0 0.0
    %4582 = vmatprep.subr.mxu0 0.0
    %4583 = vmatpush2.msra.mxu0 0.0
    %4584 = vmatprep.subr.mxu0 0.0
    %4585 = vmatpush2.msra.mxu0 0.0
    %4586 = vmatprep.subr.mxu0 0.0
    %4587 = vmatpush2.msra.mxu0 0.0
    %4588 = vmatprep.subr.mxu0 0.0
    %4589 = vmatpush2.msra.mxu0 0.0
    %4590 = vmatprep.subr.mxu0 0.0
    %4591 = vmatpush2.msra.mxu0 0.0
    %4592 = vmatprep.subr.mxu0 0.0
    %4593 = vmatpush2.msra.mxu0 0.0
    %4594 = vmatprep.subr.mxu0 0.0
    %4595 = vmatpush2.msra.mxu0 0.0
    %4596 = vmatprep.subr.mxu0 0.0
    %4597 = vmatpush2.msra.mxu0 0.0
    %4598 = vmatprep.subr.mxu0 0.0
    %4599 = vmatpush2.msra.mxu0 0.0
    %4600 = vmatprep.subr.mxu0 0.0
    %4601 = vmatpush2.msra.mxu0 0.0
    %4602 = vmatprep.subr.mxu0 0.0
    %4603 = vmatpush2.msra.mxu0 0.0
    %4604 = vmatprep.subr.mxu0 0.0
    %4605 = vmatpush2.msra.mxu0 0.0
    %4606 = vmatprep.mubr.f32.mxu0 0.0
    %v4607 = vand.u32 %v4286, 4294901760
    %v4608 = vsub.f32 %v4286, %v4607
    %v4609 = vand.u32 %v4608, 4294901760
    %4610 = vmatmul.mubr.f32.gmra.mxu0 %v4609
    %v4611 = vpop.f32.mrf.mxu0
    %v4612 = vadd.f32 %v4535, %v4611
    %v4613 = vpop.f32.mrf.mxu0
    %4614 = vdwg.mxu0
    %4615 = vmatprep.subr.mxu0 0.0
    %4616 = vmatpush1.msra.mxu0 0.0
    %4617 = vmatprep.subr.mxu0 0.0
    %4618 = vmatpush1.msra.mxu0 0.0
    %4619 = vmatprep.subr.mxu0 0.0
    %4620 = vmatpush1.msra.mxu0 0.0
    %4621 = vmatprep.subr.mxu0 0.0
    %4622 = vmatpush1.msra.mxu0 0.0
    %4623 = vmatprep.subr.mxu0 0.0
    %4624 = vmatpush1.msra.mxu0 0.0
    %4625 = vmatprep.subr.mxu0 0.0
    %4626 = vmatpush1.msra.mxu0 0.0
    %4627 = vmatprep.subr.mxu0 0.0
    %4628 = vmatpush1.msra.mxu0 0.0
    %4629 = vmatprep.subr.mxu0 0.0
    %4630 = vmatpush1.msra.mxu0 0.0
    %4631 = vmatprep.subr.mxu0 0.0
    %4632 = vmatpush1.msra.mxu0 0.0
    %4633 = vmatprep.subr.mxu0 0.0
    %4634 = vmatpush1.msra.mxu0 0.0
    %4635 = vmatprep.subr.mxu0 0.0
    %4636 = vmatpush1.msra.mxu0 0.0
    %4637 = vmatprep.subr.mxu0 0.0
    %4638 = vmatpush1.msra.mxu0 0.0
    %4639 = vmatprep.subr.mxu0 0.0
    %v4640 = vand.u32 %v26, 4294901760
    %v4641 = vsub.f32 %v26, %v4640
    %v4642 = vand.u32 %v4641, 4294901760
    %4643 = vmatpush1.msra.mxu0 %v4642
    %4644 = vmatprep.subr.mxu0 0.0
    %v4645 = vand.u32 %v25, 4294901760
    %v4646 = vsub.f32 %v25, %v4645
    %v4647 = vand.u32 %v4646, 4294901760
    %4648 = vmatpush1.msra.mxu0 %v4647
    %4649 = vmatprep.subr.mxu0 0.0
    %v4650 = vand.u32 %v24, 4294901760
    %v4651 = vsub.f32 %v24, %v4650
    %v4652 = vand.u32 %v4651, 4294901760
    %4653 = vmatpush1.msra.mxu0 %v4652
    %4654 = vmatprep.subr.mxu0 0.0
    %v4655 = vand.u32 %v23, 4294901760
    %v4656 = vsub.f32 %v23, %v4655
    %v4657 = vand.u32 %v4656, 4294901760
    %4658 = vmatpush1.msra.mxu0 %v4657
    %4659 = vmatprep.subr.mxu0 0.0
    %4660 = vmatpush2.msra.mxu0 0.0
    %4661 = vmatprep.subr.mxu0 0.0
    %4662 = vmatpush2.msra.mxu0 0.0
    %4663 = vmatprep.subr.mxu0 0.0
    %4664 = vmatpush2.msra.mxu0 0.0
    %4665 = vmatprep.subr.mxu0 0.0
    %4666 = vmatpush2.msra.mxu0 0.0
    %4667 = vmatprep.subr.mxu0 0.0
    %4668 = vmatpush2.msra.mxu0 0.0
    %4669 = vmatprep.subr.mxu0 0.0
    %4670 = vmatpush2.msra.mxu0 0.0
    %4671 = vmatprep.subr.mxu0 0.0
    %4672 = vmatpush2.msra.mxu0 0.0
    %4673 = vmatprep.subr.mxu0 0.0
    %4674 = vmatpush2.msra.mxu0 0.0
    %4675 = vmatprep.subr.mxu0 0.0
    %4676 = vmatpush2.msra.mxu0 0.0
    %4677 = vmatprep.subr.mxu0 0.0
    %4678 = vmatpush2.msra.mxu0 0.0
    %4679 = vmatprep.subr.mxu0 0.0
    %4680 = vmatpush2.msra.mxu0 0.0
    %4681 = vmatprep.subr.mxu0 0.0
    %4682 = vmatpush2.msra.mxu0 0.0
    %4683 = vmatprep.subr.mxu0 0.0
    %4684 = vmatpush2.msra.mxu0 0.0
    %4685 = vmatprep.subr.mxu0 0.0
    %4686 = vmatpush2.msra.mxu0 0.0
    %4687 = vmatprep.subr.mxu0 0.0
    %4688 = vmatpush2.msra.mxu0 0.0
    %4689 = vmatprep.subr.mxu0 0.0
    %4690 = vmatpush2.msra.mxu0 0.0
    %4691 = vmatprep.mubr.f32.mxu0 0.0
    %v4692 = vand.u32 %v4286, 4294901760
    %4693 = vmatmul.mubr.f32.gmra.mxu0 %v4692
    %v4694 = vpop.f32.mrf.mxu0
    %v4695 = vadd.f32 %v4612, %v4694
    %v4696 = vpop.f32.mrf.mxu0
    %4697 = vdwg.mxu0
    %4698 = vmatprep.subr.mxu0 0.0
    %4699 = vmatpush1.msra.mxu0 0.0
    %4700 = vmatprep.subr.mxu0 0.0
    %4701 = vmatpush1.msra.mxu0 0.0
    %4702 = vmatprep.subr.mxu0 0.0
    %4703 = vmatpush1.msra.mxu0 0.0
    %4704 = vmatprep.subr.mxu0 0.0
    %4705 = vmatpush1.msra.mxu0 0.0
    %4706 = vmatprep.subr.mxu0 0.0
    %4707 = vmatpush1.msra.mxu0 0.0
    %4708 = vmatprep.subr.mxu0 0.0
    %4709 = vmatpush1.msra.mxu0 0.0
    %4710 = vmatprep.subr.mxu0 0.0
    %4711 = vmatpush1.msra.mxu0 0.0
    %4712 = vmatprep.subr.mxu0 0.0
    %4713 = vmatpush1.msra.mxu0 0.0
    %4714 = vmatprep.subr.mxu0 0.0
    %4715 = vmatpush1.msra.mxu0 0.0
    %4716 = vmatprep.subr.mxu0 0.0
    %4717 = vmatpush1.msra.mxu0 0.0
    %4718 = vmatprep.subr.mxu0 0.0
    %4719 = vmatpush1.msra.mxu0 0.0
    %4720 = vmatprep.subr.mxu0 0.0
    %4721 = vmatpush1.msra.mxu0 0.0
    %4722 = vmatprep.subr.mxu0 0.0
    %v4723 = vand.u32 %v26, 4294901760
    %4724 = vmatpush1.msra.mxu0 %v4723
    %4725 = vmatprep.subr.mxu0 0.0
    %v4726 = vand.u32 %v25, 4294901760
    %4727 = vmatpush1.msra.mxu0 %v4726
    %4728 = vmatprep.subr.mxu0 0.0
    %v4729 = vand.u32 %v24, 4294901760
    %4730 = vmatpush1.msra.mxu0 %v4729
    %4731 = vmatprep.subr.mxu0 0.0
    %v4732 = vand.u32 %v23, 4294901760
    %4733 = vmatpush1.msra.mxu0 %v4732
    %4734 = vmatprep.subr.mxu0 0.0
    %4735 = vmatpush2.msra.mxu0 0.0
    %4736 = vmatprep.subr.mxu0 0.0
    %4737 = vmatpush2.msra.mxu0 0.0
    %4738 = vmatprep.subr.mxu0 0.0
    %4739 = vmatpush2.msra.mxu0 0.0
    %4740 = vmatprep.subr.mxu0 0.0
    %4741 = vmatpush2.msra.mxu0 0.0
    %4742 = vmatprep.subr.mxu0 0.0
    %4743 = vmatpush2.msra.mxu0 0.0
    %4744 = vmatprep.subr.mxu0 0.0
    %4745 = vmatpush2.msra.mxu0 0.0
    %4746 = vmatprep.subr.mxu0 0.0
    %4747 = vmatpush2.msra.mxu0 0.0
    %4748 = vmatprep.subr.mxu0 0.0
    %4749 = vmatpush2.msra.mxu0 0.0
    %4750 = vmatprep.subr.mxu0 0.0
    %4751 = vmatpush2.msra.mxu0 0.0
    %4752 = vmatprep.subr.mxu0 0.0
    %4753 = vmatpush2.msra.mxu0 0.0
    %4754 = vmatprep.subr.mxu0 0.0
    %4755 = vmatpush2.msra.mxu0 0.0
    %4756 = vmatprep.subr.mxu0 0.0
    %4757 = vmatpush2.msra.mxu0 0.0
    %4758 = vmatprep.subr.mxu0 0.0
    %4759 = vmatpush2.msra.mxu0 0.0
    %4760 = vmatprep.subr.mxu0 0.0
    %4761 = vmatpush2.msra.mxu0 0.0
    %4762 = vmatprep.subr.mxu0 0.0
    %4763 = vmatpush2.msra.mxu0 0.0
    %4764 = vmatprep.subr.mxu0 0.0
    %4765 = vmatpush2.msra.mxu0 0.0
    %4766 = vmatprep.mubr.f32.mxu0 0.0
    %v4767 = vand.u32 %v4286, 4294901760
    %4768 = vmatmul.mubr.f32.gmra.mxu0 %v4767
    %v4769 = vpop.f32.mrf.mxu0
    %v4770 = vadd.f32 %v4695, %v4769
    %v4771 = vpop.f32.mrf.mxu0
    %4772 = vdwg.mxu0
    %v4773 = vmul.f32 %v976, %v976
    %v4774 = vmul.f32 %v1923, %v1923
    %v4775 = vmul.f32 %v976, %v1923
    %v4776 = vsub.f32 %v2872, %v4773
    %v4777 = vsub.f32 %v3821, %v4774
    %v4778 = vsub.f32 %v4770, %v4775
    %v4779 = vmul.f32 %v4775, 2.0
    %v4780 = vadd.f32 %v4779, 0.0001
    %v4781 = vmul.f32 %v4778, 2.0
    %v4782 = vadd.f32 %v4781, 0.0009
    %v4783 = vmul.f32 %v4780, %v4782
    %v4784 = vadd.f32 %v4773, %v4774
    %v4785 = vadd.f32 %v4784, 0.0001
    %v4786 = vadd.f32 %v4776, %v4777
    %v4787 = vadd.f32 %v4786, 0.0009
    %v4788 = vmul.f32 %v4785, %v4787
    %v4789 = vrcp.pop %v4788
    %v4790 = vmul.f32 %v4788, %v4789
    %v4791 = vsub.f32 2.0, %v4790
    %v4792 = vmul.f32 %v4789, %v4791
    %v4793 = vmul.f32 %v4783, %v4792
    %vm4794 = vcmask 95232
    %v4795 = vsel %vm4794, %v4793, 0.0
    %4796 = vadd.xlane.f32.xlu0 %v4795
    %v4797 = vpop.xlane.xlu0 %4796
    %v4798 = vrot.slane %v4797, 4
    %v4799 = vadd.f32 %v4797, %v4798
    %v4800 = vrot.slane %v4799, 2
    %v4801 = vadd.f32 %v4799, %v4800
    %v4802 = vrot.slane %v4801, 1
    %v4803 = vadd.f32 %v4801, %v4802
    %vm4804 = vcmask 0
    %4805 = vst.msk [vmem:[#allocation2] sm:$0x1] %vm4804, %v4803
    // Predicated region
    $region18: #{tpu_custom_call.1} parent=1 // pred_check
      _
    $region19: #{tpu_custom_call.1} parent=1 // pred_check_branch
      %4807 = sbr.rel (0) target = $region21
    $region20: #{tpu_custom_call.1} parent=1 // pred_region
      %s4809 = ssub.s32 16, 16
      %4810 = vsyncadd [#allocation3], %s4809
      %s4812 = sshll.u32 [#allocation2], 4
      %s4813 = int_to_ptr.vmem [resolvable:$true] %s4812
      %4815 = dma.vmem_to_hbm [thread:$0]  %s4813, 16, %s4, [#allocation3]
    $region21: #{tpu_custom_call.1} parent=1 // pred_fallthru
      _
    // Predicated region
    $region22: #{tpu_custom_call.1} parent=1 // pred_check
      _
    $region23: #{tpu_custom_call.1} parent=1 // pred_check_branch
      %4817 = sbr.rel (0) target = $region25
    $region24: #{tpu_custom_call.1} parent=1 // pred_region
      %4818 = dma.done [#allocation3], 16
    $region25: #{tpu_custom_call.1} parent=1 // pred_fallthru
      _
    %4819 = vsyncpa [#allocation3], 1

</llo_original>
